<compile_context>
chip_gen: v6e
topology: v6e:2x2x1
jax: 0.10.0
libtpu: 0.0.40
codegen_flags: <defaults>
</compile_context>

<pallas_src>
import functools
import itertools

import jax
import jax.numpy as jnp
from jax import lax
from jax.experimental import pallas as pl
from jax.experimental.pallas import tpu as pltpu

EPS = 1e-5                      # PyTorch BatchNorm default eps
LANE = 128                      # TPU lane width: output channels padded to this
VMEM_LIMIT = 32 * 1024 * 1024   # scoped-VMEM budget safe on v5e/v6e/v7x


def _ceil_to(x, m):
    return (x + m - 1) // m * m


# ----------------------------------------------------------------------------
# Pallas kernels
# ----------------------------------------------------------------------------
def _conv_relu_stats_kernel(x_ref, w_ref, b_ref, y_ref, ps_ref, *, taps, Ho, Wo):
    """One image per grid step: conv (in-VMEM windowing over taps) + bias + ReLU.

    x_ref : (P, Hg, Wg, Cin_p)  bf16   stride-phase split of the padded image
    w_ref : (T, Cin_p, Cpad)    bf16   one (Cin_p, Cpad) matrix per kernel tap
    b_ref : (1, Cpad)           f32
    y_ref : (1, Ho, Wo, Cpad)   bf16   raw (pre-BatchNorm, post-ReLU) output
    ps_ref: (1, 2, Cpad)        f32    per-image partial sums (sum, sum of sq)
    """
    cpad = w_ref.shape[-1]
    ps_ref[...] = jnp.zeros_like(ps_ref)

    def row_body(r, carry):
        acc = jnp.zeros((Wo, cpad), jnp.float32)
        for t, (phase, qi, qj) in enumerate(taps):
            row = x_ref[phase, r + qi]                      # (Wg, Cin_p) bf16
            acc = acc + jnp.dot(row[qj:qj + Wo, :], w_ref[t],
                                preferred_element_type=jnp.float32)
        z = jnp.maximum(acc + b_ref[...], 0.0)              # bias + ReLU, f32
        ps_ref[0, 0:1, :] += jnp.sum(z, axis=0, keepdims=True)
        ps_ref[0, 1:2, :] += jnp.sum(z * z, axis=0, keepdims=True)
        y_ref[0, r] = z.astype(y_ref.dtype)
        return carry

    lax.fori_loop(0, Ho, row_body, 0)


def _bn_apply_kernel(y_ref, sc_ref, sh_ref, o_ref):
    o_ref[...] = (y_ref[...].astype(jnp.float32) * sc_ref[...]
                  + sh_ref[...]).astype(o_ref.dtype)


def _bottleneck_kernel(flat_ref, we_ref, be_ref, ge_ref, bte_ref,
                       wd_ref, bd_ref, gd_ref, btd_ref, eps_ref,
                       d_ref, mu_ref, lv_ref, *, latent):
    """Fused bottleneck: Linear+BN1d -> mu/logvar -> reparameterise -> Linear+BN1d.

    All tensors are tiny (batch x features) and whole-batch resident, so the
    BatchNorm1d statistics are exact in a single pass.
    """
    h = jnp.dot(flat_ref[...], we_ref[...],
                preferred_element_type=jnp.float32) + be_ref[...]
    m = jnp.mean(h, axis=0, keepdims=True)
    v = jnp.mean((h - m) ** 2, axis=0, keepdims=True)
    hn = ge_ref[...] * (h - m) * lax.rsqrt(v + EPS) + bte_ref[...]
    mu = hn[:, :latent]                      # mu columns in lanes [0, L)
    lv = hn[:, LANE:LANE + latent]           # logvar columns in lanes [128, 128+L)
    # reparameterise (training mode): z = eps * exp(0.5*logvar) + mu
    z = eps_ref[...] * jnp.exp(0.5 * lv) + mu
    d = jnp.dot(z, wd_ref[...], preferred_element_type=jnp.float32) + bd_ref[...]
    dm = jnp.mean(d, axis=0, keepdims=True)
    dv = jnp.mean((d - dm) ** 2, axis=0, keepdims=True)
    d_ref[...] = gd_ref[...] * (d - dm) * lax.rsqrt(dv + EPS) + btd_ref[...]
    mu_ref[...] = mu
    lv_ref[...] = lv


# ----------------------------------------------------------------------------
# Pallas call wrappers
# ----------------------------------------------------------------------------
def conv_layer(phases, wmat, bias, *, batch, Ho, Wo, taps):
    bp, hg, wg, cin_p = phases.shape
    P = bp // batch
    T, _, cpad = wmat.shape
    kern = functools.partial(_conv_relu_stats_kernel, taps=taps, Ho=Ho, Wo=Wo)
    return pl.pallas_call(
        kern,
        out_shape=(jax.ShapeDtypeStruct((batch, Ho, Wo, cpad), jnp.bfloat16),
                   jax.ShapeDtypeStruct((batch, 2, cpad), jnp.float32)),
        grid=(batch,),
        in_specs=[pl.BlockSpec((P, hg, wg, cin_p), lambda b: (b, 0, 0, 0)),
                  pl.BlockSpec((T, cin_p, cpad), lambda b: (0, 0, 0)),
                  pl.BlockSpec((1, cpad), lambda b: (0, 0))],
        out_specs=(pl.BlockSpec((1, Ho, Wo, cpad), lambda b: (b, 0, 0, 0)),
                   pl.BlockSpec((1, 2, cpad), lambda b: (b, 0, 0))),
        compiler_params=pltpu.CompilerParams(
            dimension_semantics=("parallel",),
            vmem_limit_bytes=VMEM_LIMIT),
    )(phases, wmat, bias)


def bn_apply(y, scale, shift):
    batch, h, w, cp = y.shape
    return pl.pallas_call(
        _bn_apply_kernel,
        out_shape=jax.ShapeDtypeStruct((batch, h, w, cp), jnp.float32),
        grid=(batch,),
        in_specs=[pl.BlockSpec((1, h, w, cp), lambda b: (b, 0, 0, 0)),
                  pl.BlockSpec((1, cp), lambda b: (0, 0)),
                  pl.BlockSpec((1, cp), lambda b: (0, 0))],
        out_specs=pl.BlockSpec((1, h, w, cp), lambda b: (b, 0, 0, 0)),
        compiler_params=pltpu.CompilerParams(
            dimension_semantics=("parallel",),
            vmem_limit_bytes=VMEM_LIMIT),
    )(y, scale.reshape(1, cp), shift.reshape(1, cp))


def bottleneck(flat, pe, pd, eps_noise, latent):
    batch = flat.shape[0]
    fdp = pd['w'].shape[1]
    kern = functools.partial(_bottleneck_kernel, latent=latent)
    return pl.pallas_call(
        kern,
        out_shape=(jax.ShapeDtypeStruct((batch, fdp), jnp.float32),
                   jax.ShapeDtypeStruct((batch, latent), jnp.float32),
                   jax.ShapeDtypeStruct((batch, latent), jnp.float32)),
        in_specs=[pl.BlockSpec(memory_space=pltpu.MemorySpace.VMEM)] * 10,
        out_specs=(pl.BlockSpec(memory_space=pltpu.MemorySpace.VMEM),) * 3,
        compiler_params=pltpu.CompilerParams(vmem_limit_bytes=VMEM_LIMIT),
    )(flat.astype(jnp.float32), pe['w'], pe['b'], pe['gamma'], pe['beta'],
      pd['w'], pd['b'], pd['gamma'], pd['beta'], eps_noise.astype(jnp.float32))


# ----------------------------------------------------------------------------
# Plain-JAX glue (layout only; XLA fuses the folded BN-apply into these passes)
# ----------------------------------------------------------------------------
def _pad_channels(a, mult=8):
    c = a.shape[-1]
    cp = _ceil_to(max(c, 1), mult)
    if cp != c:
        a = jnp.pad(a, ((0, 0), (0, 0), (0, 0), (0, cp - c)))
    return a


def _phase_split(a, pad_hw, stride):
    """NHWC pad + split into stride-phases (B*s*s, Hp2/s, Wp2/s, C) with phase
    index ph = (row % s) * s + (col % s).  Lets the conv kernel access strided
    windows through plain unit-stride slices (no HBM im2col duplication)."""
    (pt, pb), (pw_l, pw_r) = pad_hw
    s = stride
    x = jnp.pad(a, ((0, 0), (pt, pb), (pw_l, pw_r), (0, 0)))
    batch, hp, wp, c = x.shape
    hp2, wp2 = _ceil_to(hp, s), _ceil_to(wp, s)
    x = jnp.pad(x, ((0, 0), (0, hp2 - hp), (0, wp2 - wp), (0, 0)))
    hg, wg = hp2 // s, wp2 // s
    x = x.reshape(batch, hg, s, wg, s, c)
    x = x.transpose(0, 2, 4, 1, 3, 5).reshape(batch * s * s, hg, wg, c)
    return x, hp, wp


def _conv_taps(kh, kw, stride, dil):
    dh, dw = dil
    s = stride
    taps = []
    for i in range(kh):
        for j in range(kw):
            taps.append(((i * dh) % s * s + (j * dw) % s,
                         (i * dh) // s, (j * dw) // s))
    return tuple(taps)


def _bn_finalize(psums, count, gamma, beta):
    """Two-phase BatchNorm finalize: combine per-grid-step partial sums."""
    s = jnp.sum(psums, axis=0)                               # (2, Cpad)
    mean = s[0] / count
    var = jnp.maximum(s[1] / count - mean * mean, 0.0)       # biased (training)
    inv = lax.rsqrt(var + EPS)
    scale = gamma * inv
    shift = beta - mean * scale
    return scale, shift


# ----------------------------------------------------------------------------
# Configuration (mirrors VAE.__init__ shape / padding logic)
# ----------------------------------------------------------------------------
def build_config(input_shape, conv_filters, conv_kernels, conv_strides,
                 latent_space_dim):
    n = len(conv_filters)
    enc_in = [input_shape[0]] + conv_filters[:-1]
    enc_out = list(conv_filters)

    encoder_shape = []
    inp = list(input_shape)
    for k in range(n):
        K, S, P = conv_kernels[k], conv_strides[k], 1
        out = [conv_filters[k]] + [int((W - K + 2 * P) / S + 1) for W in inp[1:]]
        encoder_shape.append(out)
        inp = out
    shape_before_bottleneck = encoder_shape[-1]

    dec_kernels = conv_kernels[::-1]
    dec_strides = conv_strides[::-1]
    conv_t_filters = conv_filters[:-1][::-1] + [1]
    decoder_shape = []
    inp = encoder_shape[-1]
    for k in range(n):
        K, S, P = dec_kernels[k], dec_strides[k], 1
        out = [conv_t_filters[k]] + [int((W - 1) * S - 2 * P + K) for W in inp[1:]]
        decoder_shape.append(out)
        inp = out

    dec_in = enc_out[::-1]
    dec_out = enc_in[::-1]

    def compute_padding(dim_in, dim_out, stride, kernel):
        cands = sorted(itertools.product(range(min(input_shape[-2:])), repeat=3),
                       key=sum)
        for padding, output_padding, dilation in cands:
            if (dilation > 0 and dim_out == (dim_in - 1) * stride - 2 * padding
                    + dilation * (kernel - 1) + output_padding + 1):
                return padding, output_padding, dilation
        raise ValueError("no valid padding found")

    enc_layers = [dict(cin=enc_in[b], cout=enc_out[b], k=conv_kernels[b],
                       stride=conv_strides[b]) for b in range(n)]
    dec_layers = []
    for b in range(n):
        stride, kernel = dec_strides[b], dec_kernels[b]
        if b == n - 1:
            h_in, w_in = decoder_shape[b - 1][-2], decoder_shape[b - 1][-1]
            h_out, w_out = input_shape[-2], input_shape[-1]
            p0, op0, d0 = compute_padding(h_in, h_out, stride, kernel)
            p1, op1, d1 = compute_padding(w_in, w_out, stride, kernel)
            padding, output_padding, dilation = (p0, p1), (op0, op1), (d0, d1)
        else:
            padding, output_padding, dilation = (1, 1), (0, 0), (1, 1)
        dec_layers.append(dict(cin=dec_in[b], cout=dec_out[b], k=kernel,
                               stride=stride, padding=padding,
                               output_padding=output_padding, dilation=dilation))
    return dict(enc_layers=enc_layers, dec_layers=dec_layers,
                shape_before_bottleneck=shape_before_bottleneck,
                latent=latent_space_dim)


def init_params(cfg, key):
    keys = iter(jax.random.split(key, 64))
    cb, hb, wb = cfg['shape_before_bottleneck']
    flat = cb * hb * wb
    lat = cfg['latent']

    def bn(c):
        return dict(gamma=jnp.ones((c,), jnp.float32),
                    beta=jnp.zeros((c,), jnp.float32))

    params = {'enc_conv': [], 'dec_conv': []}
    for L in cfg['enc_layers']:
        params['enc_conv'].append(dict(
            w=0.1 * jax.random.normal(next(keys),
                                      (L['cout'], L['cin'], L['k'], L['k']),
                                      jnp.float32),
            b=jnp.zeros((L['cout'],), jnp.float32), **bn(L['cout'])))
    params['enc_lin'] = dict(
        w=0.1 * jax.random.normal(next(keys), (flat, 2 * lat), jnp.float32),
        b=jnp.zeros((2 * lat,), jnp.float32), **bn(2 * lat))
    params['dec_lin'] = dict(
        w=0.1 * jax.random.normal(next(keys), (lat, flat), jnp.float32),
        b=jnp.zeros((flat,), jnp.float32), **bn(flat))
    for L in cfg['dec_layers']:
        params['dec_conv'].append(dict(
            w=0.1 * jax.random.normal(next(keys),
                                      (L['cin'], L['cout'], L['k'], L['k']),
                                      jnp.float32),
            b=jnp.zeros((L['cout'],), jnp.float32), **bn(L['cout'])))
    return params


def prepare_params(cfg, params):
    """One-time weight layout prep (hoisted out of the forward pass):
    tap-major bf16 conv weights padded to (Cin_p multiple of 8, Cout -> 128
    lanes), ConvTranspose kernels pre-flipped/transposed, linear weights padded
    column-wise to lane-aligned groups."""
    lat = cfg['latent']
    assert lat <= LANE
    cb, hb, wb = cfg['shape_before_bottleneck']
    fd = cb * hb * wb
    prep = {'enc_conv': [], 'dec_conv': []}

    def conv_prep(w_tap, b, gamma, beta):
        T, cin, cout = w_tap.shape
        cin_p = _ceil_to(max(cin, 1), 8)
        cpad = _ceil_to(cout, LANE)
        w = jnp.pad(w_tap, ((0, 0), (0, cin_p - cin), (0, cpad - cout)))
        return dict(w=w.astype(jnp.bfloat16),
                    b=jnp.pad(b, (0, cpad - cout)).reshape(1, cpad),
                    gamma=jnp.pad(gamma, (0, cpad - cout)),
                    beta=jnp.pad(beta, (0, cpad - cout)))

    for p in params['enc_conv']:
        cout, cin, kh, kw = p['w'].shape
        w = jnp.transpose(p['w'], (2, 3, 1, 0)).reshape(kh * kw, cin, cout)
        prep['enc_conv'].append(conv_prep(w, p['b'], p['gamma'], p['beta']))

    for p in params['dec_conv']:
        cin, cout, kh, kw = p['w'].shape
        wf = jnp.flip(p['w'], axis=(2, 3))                 # equivalent-conv flip
        w = jnp.transpose(wf, (2, 3, 0, 1)).reshape(kh * kw, cin, cout)
        prep['dec_conv'].append(conv_prep(w, p['b'], p['gamma'], p['beta']))

    # Encoder linear: scatter the (mu | logvar) column groups into lane-aligned
    # slots [0, L) and [128, 128+L) so the in-kernel split uses aligned slices.
    pe = params['enc_lin']

    def scat_cols(v):
        out = jnp.zeros(v.shape[:-1] + (2 * LANE,), jnp.float32)
        out = out.at[..., :lat].set(v[..., :lat])
        out = out.at[..., LANE:LANE + lat].set(v[..., lat:])
        return out

    prep['enc_lin'] = dict(w=scat_cols(pe['w']),
                           b=scat_cols(pe['b']).reshape(1, -1),
                           gamma=scat_cols(pe['gamma']).reshape(1, -1),
                           beta=scat_cols(pe['beta']).reshape(1, -1))

    pd = params['dec_lin']
    fdp = _ceil_to(fd, LANE)
    prep['dec_lin'] = dict(w=jnp.pad(pd['w'], ((0, 0), (0, fdp - fd))),
                           b=jnp.pad(pd['b'], (0, fdp - fd)).reshape(1, -1),
                           gamma=jnp.pad(pd['gamma'], (0, fdp - fd)).reshape(1, -1),
                           beta=jnp.pad(pd['beta'], (0, fdp - fd)).reshape(1, -1))
    return prep


# ----------------------------------------------------------------------------
# Forward pass (mirrors VAE.forward in training mode)
# ----------------------------------------------------------------------------
def vae_forward(cfg, prep, x_nchw, noise):
    batch = x_nchw.shape[0]
    lat = cfg['latent']
    # NHWC end-to-end; single layout transpose at entry / exit.
    # NOTE: flatten/unflatten use NHWC ordering; with self-initialized random
    # weights this is an equivalent reparameterization of the PyTorch module.
    a = jnp.transpose(x_nchw, (0, 2, 3, 1)).astype(jnp.float32)

    # --- encoder: [Conv2d(pad=1) -> ReLU -> BatchNorm2d] * n ------------------
    for L, p in zip(cfg['enc_layers'], prep['enc_conv']):
        s, k = L['stride'], L['k']
        phases, hp, wp = _phase_split(_pad_channels(a).astype(jnp.bfloat16),
                                      ((1, 1), (1, 1)), s)
        ho = (hp - k) // s + 1
        wo = (wp - k) // s + 1
        y, ps = conv_layer(phases, p['w'], p['b'], batch=batch, Ho=ho, Wo=wo,
                           taps=_conv_taps(k, k, s, (1, 1)))
        scale, shift = _bn_finalize(ps, batch * ho * wo, p['gamma'], p['beta'])
        cout = L['cout']
        # BatchNorm apply is folded into the next layer's XLA-fused layout glue.
        a = y[..., :cout].astype(jnp.float32) * scale[:cout] + shift[:cout]

    # --- bottleneck (single fused Pallas kernel) ------------------------------
    cb, hb, wb = cfg['shape_before_bottleneck']
    flat = a.reshape(batch, -1)
    d, mu, logvar = bottleneck(flat, prep['enc_lin'], prep['dec_lin'], noise, lat)
    a = d[:, :cb * hb * wb].reshape(batch, hb, wb, cb)

    # --- decoder: [ConvTranspose2d -> ReLU -> BatchNorm2d] * n ----------------
    n_dec = len(cfg['dec_layers'])
    out = None
    for idx, (L, p) in enumerate(zip(cfg['dec_layers'], prep['dec_conv'])):
        s, k = L['stride'], L['k']
        p_h, p_w = L['padding']
        oph, opw = L['output_padding']
        dh, dw = L['dilation']
        if s > 1:
            # TODO(synk): a stride**2 output-phase decomposition would avoid
            # feeding ~(1 - 1/s^2) zero taps into the MXU here.
            b_, h_, w_, c_ = a.shape
            up = jnp.zeros((b_, (h_ - 1) * s + 1, (w_ - 1) * s + 1, c_), a.dtype)
            up = up.at[:, ::s, ::s, :].set(a)
        else:
            up = a
        pad_t = dh * (k - 1) - p_h
        pad_l = dw * (k - 1) - p_w
        # TODO(synk): negative equivalent padding would require output cropping.
        assert pad_t >= 0 and pad_l >= 0
        phases, hp, wp = _phase_split(
            _pad_channels(up).astype(jnp.bfloat16),
            ((pad_t, pad_t + oph), (pad_l, pad_l + opw)), 1)
        ho = hp - dh * (k - 1)
        wo = wp - dw * (k - 1)
        y, ps = conv_layer(phases, p['w'], p['b'], batch=batch, Ho=ho, Wo=wo,
                           taps=_conv_taps(k, k, 1, (dh, dw)))
        scale, shift = _bn_finalize(ps, batch * ho * wo, p['gamma'], p['beta'])
        cout = L['cout']
        if idx + 1 < n_dec:
            a = y[..., :cout].astype(jnp.float32) * scale[:cout] + shift[:cout]
        else:
            out = bn_apply(y, scale, shift)[..., :cout]     # final BN in Pallas

    recon = jnp.transpose(out, (0, 3, 1, 2))                # back to NCHW once
    return recon, mu, logvar


if __name__ == "__main__":
    key = jax.random.PRNGKey(0)
    kx, kp, kn = jax.random.split(key, 3)

    # Small configuration consistent with the module's constructor arguments.
    input_shape = (1, 16, 16)          # (C, H, W)
    conv_filters = [4, 8]
    conv_kernels = [3, 3]
    conv_strides = [2, 2]
    latent_space_dim = 8
    batch = 2

    cfg = build_config(input_shape, conv_filters, conv_kernels, conv_strides,
                       latent_space_dim)
    params = init_params(cfg, kp)
    prep = prepare_params(cfg, params)   # one-time weight layout prep (hoisted)

    x = jax.random.normal(kx, (batch,) + input_shape, jnp.float32)
    # TODO(synk): torch's in-place .normal_() RNG stream cannot be reproduced;
    # the standard-normal eps for reparameterisation is generated with
    # jax.random and passed in.
    noise = jax.random.normal(kn, (batch, latent_space_dim), jnp.float32)

    fwd = jax.jit(lambda prep, x, noise: vae_forward(cfg, prep, x, noise))
    recon, mu, logvar = fwd(prep, x, noise)
    jax.block_until_ready((recon, mu, logvar))

    assert recon.shape == (batch,) + input_shape, recon.shape
    assert mu.shape == (batch, latent_space_dim), mu.shape
    assert logvar.shape == (batch, latent_space_dim), logvar.shape
    assert bool(jnp.all(jnp.isfinite(recon)))
    print("KERNEL_OK")
</pallas_src>

<mosaic_0001>
module attributes {stable_mosaic.version = 11 : i64} {
  func.func @_conv_relu_stats_kernel(%arg0: i32, %arg1: memref<4x9x9x8xbf16, #tpu.memory_space<vmem>>, %arg2: memref<9x8x128xbf16, #tpu.memory_space<vmem>>, %arg3: memref<1x128xf32, #tpu.memory_space<vmem>>, %arg4: memref<1x8x8x128xbf16, #tpu.memory_space<vmem>>, %arg5: memref<1x2x128xf32, #tpu.memory_space<vmem>>) attributes {dimension_semantics = [#tpu.dimension_semantics<parallel>], iteration_bounds = array<i64: 2>, scalar_prefetch = 0 : i64, scratch_operands = 0 : i64, tpu.core_type = #tpu.core_type<tc>, window_params = [{transform_indices = @transform_0, window_bounds = array<i64: 4, 9, 9, 8>}, {pipeline_mode = #tpu.pipeline_mode<synchronous>, transform_indices = @transform_1, window_bounds = array<i64: 9, 8, 128>}, {pipeline_mode = #tpu.pipeline_mode<synchronous>, transform_indices = @transform_2, window_bounds = array<i64: 1, 128>}, {transform_indices = @transform_3, window_bounds = array<i64: 1, 8, 8, 128>}, {transform_indices = @transform_4, window_bounds = array<i64: 1, 2, 128>}]} {
    %cst = arith.constant 0.000000e+00 : f32
    %0 = vector.broadcast %cst : f32 to vector<1x2x128xf32>
    %c0 = arith.constant 0 : index
    %c0_0 = arith.constant 0 : index
    %c0_1 = arith.constant 0 : index
    %1 = vector.load %arg5[%c0, %c0_0, %c0_1] : memref<1x2x128xf32, #tpu.memory_space<vmem>>, vector<1x2x128xf32>
    tpu.vector_store %arg5[%c0, %c0_0, %c0_1], %0 {strides = array<i32>} : memref<1x2x128xf32, #tpu.memory_space<vmem>>, vector<1x2x128xf32>,
    %c0_i32 = arith.constant 0 : i32
    %c8_i32 = arith.constant 8 : i32
    %2 = arith.addi %c0_i32, %c8_i32 : i32
    %c1_i32 = arith.constant 1 : i32
    scf.for %arg6 = %c0_i32 to %2 step %c1_i32  : i32 {
      %cst_3 = arith.constant 0.000000e+00 : f32
      %3 = vector.broadcast %cst_3 : f32 to vector<8x128xf32>
      %c0_i32_4 = arith.constant 0 : i32
      %4 = arith.addi %arg6, %c0_i32_4 : i32
      %c0_5 = arith.constant 0 : index
      %5 = arith.index_cast %4 : i32 to index
      %c0_6 = arith.constant 0 : index
      %c0_7 = arith.constant 0 : index
      %6 = vector.load %arg1[%c0_5, %5, %c0_6, %c0_7] : memref<4x9x9x8xbf16, #tpu.memory_space<vmem>>, vector<1x1x9x8xbf16>
      %7 = vector.shape_cast %6 : vector<1x1x9x8xbf16> to vector<9x8xbf16>
      %8 = vector.extract_strided_slice %7 {offsets = [0, 0], sizes = [8, 8], strides = [1, 1]} : vector<9x8xbf16> to vector<8x8xbf16>
      %c0_8 = arith.constant 0 : index
      %c0_9 = arith.constant 0 : index
      %c0_10 = arith.constant 0 : index
      %9 = vector.load %arg2[%c0_8, %c0_9, %c0_10] : memref<9x8x128xbf16, #tpu.memory_space<vmem>>, vector<1x8x128xbf16>
      %10 = vector.shape_cast %9 : vector<1x8x128xbf16> to vector<8x128xbf16>
      %cst_11 = arith.constant dense<0.000000e+00> : vector<8x128xf32>
      %11 = tpu.matmul %8, %10, %cst_11 {dimension_numbers = #tpu.dot_dimension_numbers<[1], [0], [0], [1], [0, 0, 1, 1], [], []>} : vector<8x8xbf16>, vector<8x128xbf16>, vector<8x128xf32> -> vector<8x128xf32>
      %12 = arith.addf %3, %11 : vector<8x128xf32>
      %c0_i32_12 = arith.constant 0 : i32
      %13 = arith.addi %arg6, %c0_i32_12 : i32
      %c1 = arith.constant 1 : index
      %14 = arith.index_cast %13 : i32 to index
      %c0_13 = arith.constant 0 : index
      %c0_14 = arith.constant 0 : index
      %15 = vector.load %arg1[%c1, %14, %c0_13, %c0_14] : memref<4x9x9x8xbf16, #tpu.memory_space<vmem>>, vector<1x1x9x8xbf16>
      %16 = vector.shape_cast %15 : vector<1x1x9x8xbf16> to vector<9x8xbf16>
      %17 = vector.extract_strided_slice %16 {offsets = [0, 0], sizes = [8, 8], strides = [1, 1]} : vector<9x8xbf16> to vector<8x8xbf16>
      %c1_15 = arith.constant 1 : index
      %c0_16 = arith.constant 0 : index
      %c0_17 = arith.constant 0 : index
      %18 = vector.load %arg2[%c1_15, %c0_16, %c0_17] : memref<9x8x128xbf16, #tpu.memory_space<vmem>>, vector<1x8x128xbf16>
      %19 = vector.shape_cast %18 : vector<1x8x128xbf16> to vector<8x128xbf16>
      %cst_18 = arith.constant dense<0.000000e+00> : vector<8x128xf32>
      %20 = tpu.matmul %17, %19, %cst_18 {dimension_numbers = #tpu.dot_dimension_numbers<[1], [0], [0], [1], [0, 0, 1, 1], [], []>} : vector<8x8xbf16>, vector<8x128xbf16>, vector<8x128xf32> -> vector<8x128xf32>
      %21 = arith.addf %12, %20 : vector<8x128xf32>
      %c0_i32_19 = arith.constant 0 : i32
      %22 = arith.addi %arg6, %c0_i32_19 : i32
      %c0_20 = arith.constant 0 : index
      %23 = arith.index_cast %22 : i32 to index
      %c0_21 = arith.constant 0 : index
      %c0_22 = arith.constant 0 : index
      %24 = vector.load %arg1[%c0_20, %23, %c0_21, %c0_22] : memref<4x9x9x8xbf16, #tpu.memory_space<vmem>>, vector<1x1x9x8xbf16>
      %25 = vector.shape_cast %24 : vector<1x1x9x8xbf16> to vector<9x8xbf16>
      %26 = vector.extract_strided_slice %25 {offsets = [1, 0], sizes = [8, 8], strides = [1, 1]} : vector<9x8xbf16> to vector<8x8xbf16>
      %c2 = arith.constant 2 : index
      %c0_23 = arith.constant 0 : index
      %c0_24 = arith.constant 0 : index
      %27 = vector.load %arg2[%c2, %c0_23, %c0_24] : memref<9x8x128xbf16, #tpu.memory_space<vmem>>, vector<1x8x128xbf16>
      %28 = vector.shape_cast %27 : vector<1x8x128xbf16> to vector<8x128xbf16>
      %cst_25 = arith.constant dense<0.000000e+00> : vector<8x128xf32>
      %29 = tpu.matmul %26, %28, %cst_25 {dimension_numbers = #tpu.dot_dimension_numbers<[1], [0], [0], [1], [0, 0, 1, 1], [], []>} : vector<8x8xbf16>, vector<8x128xbf16>, vector<8x128xf32> -> vector<8x128xf32>
      %30 = arith.addf %21, %29 : vector<8x128xf32>
      %c0_i32_26 = arith.constant 0 : i32
      %31 = arith.addi %arg6, %c0_i32_26 : i32
      %c2_27 = arith.constant 2 : index
      %32 = arith.index_cast %31 : i32 to index
      %c0_28 = arith.constant 0 : index
      %c0_29 = arith.constant 0 : index
      %33 = vector.load %arg1[%c2_27, %32, %c0_28, %c0_29] : memref<4x9x9x8xbf16, #tpu.memory_space<vmem>>, vector<1x1x9x8xbf16>
      %34 = vector.shape_cast %33 : vector<1x1x9x8xbf16> to vector<9x8xbf16>
      %35 = vector.extract_strided_slice %34 {offsets = [0, 0], sizes = [8, 8], strides = [1, 1]} : vector<9x8xbf16> to vector<8x8xbf16>
      %c3 = arith.constant 3 : index
      %c0_30 = arith.constant 0 : index
      %c0_31 = arith.constant 0 : index
      %36 = vector.load %arg2[%c3, %c0_30, %c0_31] : memref<9x8x128xbf16, #tpu.memory_space<vmem>>, vector<1x8x128xbf16>
      %37 = vector.shape_cast %36 : vector<1x8x128xbf16> to vector<8x128xbf16>
      %cst_32 = arith.constant dense<0.000000e+00> : vector<8x128xf32>
      %38 = tpu.matmul %35, %37, %cst_32 {dimension_numbers = #tpu.dot_dimension_numbers<[1], [0], [0], [1], [0, 0, 1, 1], [], []>} : vector<8x8xbf16>, vector<8x128xbf16>, vector<8x128xf32> -> vector<8x128xf32>
      %39 = arith.addf %30, %38 : vector<8x128xf32>
      %c0_i32_33 = arith.constant 0 : i32
      %40 = arith.addi %arg6, %c0_i32_33 : i32
      %c3_34 = arith.constant 3 : index
      %41 = arith.index_cast %40 : i32 to index
      %c0_35 = arith.constant 0 : index
      %c0_36 = arith.constant 0 : index
      %42 = vector.load %arg1[%c3_34, %41, %c0_35, %c0_36] : memref<4x9x9x8xbf16, #tpu.memory_space<vmem>>, vector<1x1x9x8xbf16>
      %43 = vector.shape_cast %42 : vector<1x1x9x8xbf16> to vector<9x8xbf16>
      %44 = vector.extract_strided_slice %43 {offsets = [0, 0], sizes = [8, 8], strides = [1, 1]} : vector<9x8xbf16> to vector<8x8xbf16>
      %c4 = arith.constant 4 : index
      %c0_37 = arith.constant 0 : index
      %c0_38 = arith.constant 0 : index
      %45 = vector.load %arg2[%c4, %c0_37, %c0_38] : memref<9x8x128xbf16, #tpu.memory_space<vmem>>, vector<1x8x128xbf16>
      %46 = vector.shape_cast %45 : vector<1x8x128xbf16> to vector<8x128xbf16>
      %cst_39 = arith.constant dense<0.000000e+00> : vector<8x128xf32>
      %47 = tpu.matmul %44, %46, %cst_39 {dimension_numbers = #tpu.dot_dimension_numbers<[1], [0], [0], [1], [0, 0, 1, 1], [], []>} : vector<8x8xbf16>, vector<8x128xbf16>, vector<8x128xf32> -> vector<8x128xf32>
      %48 = arith.addf %39, %47 : vector<8x128xf32>
      %c0_i32_40 = arith.constant 0 : i32
      %49 = arith.addi %arg6, %c0_i32_40 : i32
      %c2_41 = arith.constant 2 : index
      %50 = arith.index_cast %49 : i32 to index
      %c0_42 = arith.constant 0 : index
      %c0_43 = arith.constant 0 : index
      %51 = vector.load %arg1[%c2_41, %50, %c0_42, %c0_43] : memref<4x9x9x8xbf16, #tpu.memory_space<vmem>>, vector<1x1x9x8xbf16>
      %52 = vector.shape_cast %51 : vector<1x1x9x8xbf16> to vector<9x8xbf16>
      %53 = vector.extract_strided_slice %52 {offsets = [1, 0], sizes = [8, 8], strides = [1, 1]} : vector<9x8xbf16> to vector<8x8xbf16>
      %c5 = arith.constant 5 : index
      %c0_44 = arith.constant 0 : index
      %c0_45 = arith.constant 0 : index
      %54 = vector.load %arg2[%c5, %c0_44, %c0_45] : memref<9x8x128xbf16, #tpu.memory_space<vmem>>, vector<1x8x128xbf16>
      %55 = vector.shape_cast %54 : vector<1x8x128xbf16> to vector<8x128xbf16>
      %cst_46 = arith.constant dense<0.000000e+00> : vector<8x128xf32>
      %56 = tpu.matmul %53, %55, %cst_46 {dimension_numbers = #tpu.dot_dimension_numbers<[1], [0], [0], [1], [0, 0, 1, 1], [], []>} : vector<8x8xbf16>, vector<8x128xbf16>, vector<8x128xf32> -> vector<8x128xf32>
      %57 = arith.addf %48, %56 : vector<8x128xf32>
      %c1_i32_47 = arith.constant 1 : i32
      %58 = arith.addi %arg6, %c1_i32_47 : i32
      %c0_48 = arith.constant 0 : index
      %59 = arith.index_cast %58 : i32 to index
      %c0_49 = arith.constant 0 : index
      %c0_50 = arith.constant 0 : index
      %60 = vector.load %arg1[%c0_48, %59, %c0_49, %c0_50] : memref<4x9x9x8xbf16, #tpu.memory_space<vmem>>, vector<1x1x9x8xbf16>
      %61 = vector.shape_cast %60 : vector<1x1x9x8xbf16> to vector<9x8xbf16>
      %62 = vector.extract_strided_slice %61 {offsets = [0, 0], sizes = [8, 8], strides = [1, 1]} : vector<9x8xbf16> to vector<8x8xbf16>
      %c6 = arith.constant 6 : index
      %c0_51 = arith.constant 0 : index
      %c0_52 = arith.constant 0 : index
      %63 = vector.load %arg2[%c6, %c0_51, %c0_52] : memref<9x8x128xbf16, #tpu.memory_space<vmem>>, vector<1x8x128xbf16>
      %64 = vector.shape_cast %63 : vector<1x8x128xbf16> to vector<8x128xbf16>
      %cst_53 = arith.constant dense<0.000000e+00> : vector<8x128xf32>
      %65 = tpu.matmul %62, %64, %cst_53 {dimension_numbers = #tpu.dot_dimension_numbers<[1], [0], [0], [1], [0, 0, 1, 1], [], []>} : vector<8x8xbf16>, vector<8x128xbf16>, vector<8x128xf32> -> vector<8x128xf32>
      %66 = arith.addf %57, %65 : vector<8x128xf32>
      %c1_i32_54 = arith.constant 1 : i32
      %67 = arith.addi %arg6, %c1_i32_54 : i32
      %c1_55 = arith.constant 1 : index
      %68 = arith.index_cast %67 : i32 to index
      %c0_56 = arith.constant 0 : index
      %c0_57 = arith.constant 0 : index
      %69 = vector.load %arg1[%c1_55, %68, %c0_56, %c0_57] : memref<4x9x9x8xbf16, #tpu.memory_space<vmem>>, vector<1x1x9x8xbf16>
      %70 = vector.shape_cast %69 : vector<1x1x9x8xbf16> to vector<9x8xbf16>
      %71 = vector.extract_strided_slice %70 {offsets = [0, 0], sizes = [8, 8], strides = [1, 1]} : vector<9x8xbf16> to vector<8x8xbf16>
      %c7 = arith.constant 7 : index
      %c0_58 = arith.constant 0 : index
      %c0_59 = arith.constant 0 : index
      %72 = vector.load %arg2[%c7, %c0_58, %c0_59] : memref<9x8x128xbf16, #tpu.memory_space<vmem>>, vector<1x8x128xbf16>
      %73 = vector.shape_cast %72 : vector<1x8x128xbf16> to vector<8x128xbf16>
      %cst_60 = arith.constant dense<0.000000e+00> : vector<8x128xf32>
      %74 = tpu.matmul %71, %73, %cst_60 {dimension_numbers = #tpu.dot_dimension_numbers<[1], [0], [0], [1], [0, 0, 1, 1], [], []>} : vector<8x8xbf16>, vector<8x128xbf16>, vector<8x128xf32> -> vector<8x128xf32>
      %75 = arith.addf %66, %74 : vector<8x128xf32>
      %c1_i32_61 = arith.constant 1 : i32
      %76 = arith.addi %arg6, %c1_i32_61 : i32
      %c0_62 = arith.constant 0 : index
      %77 = arith.index_cast %76 : i32 to index
      %c0_63 = arith.constant 0 : index
      %c0_64 = arith.constant 0 : index
      %78 = vector.load %arg1[%c0_62, %77, %c0_63, %c0_64] : memref<4x9x9x8xbf16, #tpu.memory_space<vmem>>, vector<1x1x9x8xbf16>
      %79 = vector.shape_cast %78 : vector<1x1x9x8xbf16> to vector<9x8xbf16>
      %80 = vector.extract_strided_slice %79 {offsets = [1, 0], sizes = [8, 8], strides = [1, 1]} : vector<9x8xbf16> to vector<8x8xbf16>
      %c8 = arith.constant 8 : index
      %c0_65 = arith.constant 0 : index
      %c0_66 = arith.constant 0 : index
      %81 = vector.load %arg2[%c8, %c0_65, %c0_66] : memref<9x8x128xbf16, #tpu.memory_space<vmem>>, vector<1x8x128xbf16>
      %82 = vector.shape_cast %81 : vector<1x8x128xbf16> to vector<8x128xbf16>
      %cst_67 = arith.constant dense<0.000000e+00> : vector<8x128xf32>
      %83 = tpu.matmul %80, %82, %cst_67 {dimension_numbers = #tpu.dot_dimension_numbers<[1], [0], [0], [1], [0, 0, 1, 1], [], []>} : vector<8x8xbf16>, vector<8x128xbf16>, vector<8x128xf32> -> vector<8x128xf32>
      %84 = arith.addf %75, %83 : vector<8x128xf32>
      %c0_68 = arith.constant 0 : index
      %c0_69 = arith.constant 0 : index
      %85 = vector.load %arg3[%c0_68, %c0_69] : memref<1x128xf32, #tpu.memory_space<vmem>>, vector<1x128xf32>
      %86 = vector.broadcast %85 : vector<1x128xf32> to vector<8x128xf32>
      %87 = arith.addf %84, %86 : vector<8x128xf32>
      %cst_70 = arith.constant 0.000000e+00 : f32
      %88 = vector.broadcast %cst_70 : f32 to vector<8x128xf32>
      %89 = arith.maximumf %87, %88 : vector<8x128xf32>
      %c0_71 = arith.constant 0 : index
      %c0_72 = arith.constant 0 : index
      %c0_73 = arith.constant 0 : index
      %90 = vector.load %arg5[%c0_71, %c0_72, %c0_73] : memref<1x2x128xf32, #tpu.memory_space<vmem>>, vector<1x1x128xf32>
      %91 = vector.shape_cast %90 : vector<1x1x128xf32> to vector<1x128xf32>
      %cst_74 = arith.constant dense<0.000000e+00> : vector<128xf32>
      %92 = vector.multi_reduction <add>, %89, %cst_74 [0] : vector<8x128xf32> to vector<128xf32>
      %93 = vector.shape_cast %92 : vector<128xf32> to vector<1x128xf32>
      %94 = arith.addf %91, %93 : vector<1x128xf32>
      %c0_75 = arith.constant 0 : index
      %c0_76 = arith.constant 0 : index
      %c0_77 = arith.constant 0 : index
      %95 = vector.load %arg5[%c0_75, %c0_76, %c0_77] : memref<1x2x128xf32, #tpu.memory_space<vmem>>, vector<1x1x128xf32>
      %96 = vector.shape_cast %95 : vector<1x1x128xf32> to vector<1x128xf32>
      %97 = vector.shape_cast %94 : vector<1x128xf32> to vector<1x1x128xf32>
      tpu.vector_store %arg5[%c0_75, %c0_76, %c0_77], %97 {strides = array<i32>} : memref<1x2x128xf32, #tpu.memory_space<vmem>>, vector<1x1x128xf32>,
      %c0_78 = arith.constant 0 : index
      %c1_79 = arith.constant 1 : index
      %c0_80 = arith.constant 0 : index
      %98 = vector.load %arg5[%c0_78, %c1_79, %c0_80] : memref<1x2x128xf32, #tpu.memory_space<vmem>>, vector<1x1x128xf32>
      %99 = vector.shape_cast %98 : vector<1x1x128xf32> to vector<1x128xf32>
      %100 = arith.mulf %89, %89 : vector<8x128xf32>
      %cst_81 = arith.constant dense<0.000000e+00> : vector<128xf32>
      %101 = vector.multi_reduction <add>, %100, %cst_81 [0] : vector<8x128xf32> to vector<128xf32>
      %102 = vector.shape_cast %101 : vector<128xf32> to vector<1x128xf32>
      %103 = arith.addf %99, %102 : vector<1x128xf32>
      %c0_82 = arith.constant 0 : index
      %c1_83 = arith.constant 1 : index
      %c0_84 = arith.constant 0 : index
      %104 = vector.load %arg5[%c0_82, %c1_83, %c0_84] : memref<1x2x128xf32, #tpu.memory_space<vmem>>, vector<1x1x128xf32>
      %105 = vector.shape_cast %104 : vector<1x1x128xf32> to vector<1x128xf32>
      %106 = vector.shape_cast %103 : vector<1x128xf32> to vector<1x1x128xf32>
      tpu.vector_store %arg5[%c0_82, %c1_83, %c0_84], %106 {strides = array<i32>} : memref<1x2x128xf32, #tpu.memory_space<vmem>>, vector<1x1x128xf32>,
      %107 = arith.truncf %89 : vector<8x128xf32> to vector<8x128xbf16>
      %c0_85 = arith.constant 0 : index
      %108 = arith.index_cast %arg6 : i32 to index
      %c0_86 = arith.constant 0 : index
      %c0_87 = arith.constant 0 : index
      %109 = vector.load %arg4[%c0_85, %108, %c0_86, %c0_87] : memref<1x8x8x128xbf16, #tpu.memory_space<vmem>>, vector<1x1x8x128xbf16>
      %110 = vector.shape_cast %109 : vector<1x1x8x128xbf16> to vector<8x128xbf16>
      %111 = vector.shape_cast %107 : vector<8x128xbf16> to vector<1x1x8x128xbf16>
      tpu.vector_store %arg4[%c0_85, %108, %c0_86, %c0_87], %111 {strides = array<i32>} : memref<1x8x8x128xbf16, #tpu.memory_space<vmem>>, vector<1x1x8x128xbf16>,
    }
    %c8_i32_2 = arith.constant 8 : i32
    return
  }
  func.func @transform_0(%arg0: i32) -> (i32, i32, i32, i32) {
    %c0_i32 = arith.constant 0 : i32
    %c0_i32_0 = arith.constant 0 : i32
    %c0_i32_1 = arith.constant 0 : i32
    %c0_i32_2 = arith.constant 0 : i32
    return %arg0, %c0_i32, %c0_i32_0, %c0_i32_1 : i32, i32, i32, i32
  }
  func.func @transform_1(%arg0: i32) -> (i32, i32, i32) {
    %c0_i32 = arith.constant 0 : i32
    %c0_i32_0 = arith.constant 0 : i32
    %c0_i32_1 = arith.constant 0 : i32
    %c0_i32_2 = arith.constant 0 : i32
    return %c0_i32, %c0_i32_0, %c0_i32_1 : i32, i32, i32
  }
  func.func @transform_2(%arg0: i32) -> (i32, i32) {
    %c0_i32 = arith.constant 0 : i32
    %c0_i32_0 = arith.constant 0 : i32
    %c0_i32_1 = arith.constant 0 : i32
    return %c0_i32, %c0_i32_0 : i32, i32
  }
  func.func @transform_3(%arg0: i32) -> (i32, i32, i32, i32) {
    %c0_i32 = arith.constant 0 : i32
    %c0_i32_0 = arith.constant 0 : i32
    %c0_i32_1 = arith.constant 0 : i32
    %c0_i32_2 = arith.constant 0 : i32
    return %arg0, %c0_i32, %c0_i32_0, %c0_i32_1 : i32, i32, i32, i32
  }
  func.func @transform_4(%arg0: i32) -> (i32, i32, i32) {
    %c0_i32 = arith.constant 0 : i32
    %c0_i32_0 = arith.constant 0 : i32
    %c0_i32_1 = arith.constant 0 : i32
    return %arg0, %c0_i32, %c0_i32_0 : i32, i32, i32
  }
}

module attributes {stable_mosaic.version = 11 : i64} {
  func.func @_conv_relu_stats_kernel(%arg0: i32, %arg1: memref<4x5x5x8xbf16, #tpu.memory_space<vmem>>, %arg2: memref<9x8x128xbf16, #tpu.memory_space<vmem>>, %arg3: memref<1x128xf32, #tpu.memory_space<vmem>>, %arg4: memref<1x4x4x128xbf16, #tpu.memory_space<vmem>>, %arg5: memref<1x2x128xf32, #tpu.memory_space<vmem>>) attributes {dimension_semantics = [#tpu.dimension_semantics<parallel>], iteration_bounds = array<i64: 2>, scalar_prefetch = 0 : i64, scratch_operands = 0 : i64, tpu.core_type = #tpu.core_type<tc>, window_params = [{transform_indices = @transform_0, window_bounds = array<i64: 4, 5, 5, 8>}, {pipeline_mode = #tpu.pipeline_mode<synchronous>, transform_indices = @transform_1, window_bounds = array<i64: 9, 8, 128>}, {pipeline_mode = #tpu.pipeline_mode<synchronous>, transform_indices = @transform_2, window_bounds = array<i64: 1, 128>}, {transform_indices = @transform_3, window_bounds = array<i64: 1, 4, 4, 128>}, {transform_indices = @transform_4, window_bounds = array<i64: 1, 2, 128>}]} {
    %cst = arith.constant 0.000000e+00 : f32
    %0 = vector.broadcast %cst : f32 to vector<1x2x128xf32>
    %c0 = arith.constant 0 : index
    %c0_0 = arith.constant 0 : index
    %c0_1 = arith.constant 0 : index
    %1 = vector.load %arg5[%c0, %c0_0, %c0_1] : memref<1x2x128xf32, #tpu.memory_space<vmem>>, vector<1x2x128xf32>
    tpu.vector_store %arg5[%c0, %c0_0, %c0_1], %0 {strides = array<i32>} : memref<1x2x128xf32, #tpu.memory_space<vmem>>, vector<1x2x128xf32>,
    %c0_i32 = arith.constant 0 : i32
    %c4_i32 = arith.constant 4 : i32
    %2 = arith.addi %c0_i32, %c4_i32 : i32
    %c1_i32 = arith.constant 1 : i32
    scf.for %arg6 = %c0_i32 to %2 step %c1_i32  : i32 {
      %cst_3 = arith.constant 0.000000e+00 : f32
      %3 = vector.broadcast %cst_3 : f32 to vector<4x128xf32>
      %c0_i32_4 = arith.constant 0 : i32
      %4 = arith.addi %arg6, %c0_i32_4 : i32
      %c0_5 = arith.constant 0 : index
      %5 = arith.index_cast %4 : i32 to index
      %c0_6 = arith.constant 0 : index
      %c0_7 = arith.constant 0 : index
      %6 = vector.load %arg1[%c0_5, %5, %c0_6, %c0_7] : memref<4x5x5x8xbf16, #tpu.memory_space<vmem>>, vector<1x1x5x8xbf16>
      %7 = vector.shape_cast %6 : vector<1x1x5x8xbf16> to vector<5x8xbf16>
      %8 = vector.extract_strided_slice %7 {offsets = [0, 0], sizes = [4, 8], strides = [1, 1]} : vector<5x8xbf16> to vector<4x8xbf16>
      %c0_8 = arith.constant 0 : index
      %c0_9 = arith.constant 0 : index
      %c0_10 = arith.constant 0 : index
      %9 = vector.load %arg2[%c0_8, %c0_9, %c0_10] : memref<9x8x128xbf16, #tpu.memory_space<vmem>>, vector<1x8x128xbf16>
      %10 = vector.shape_cast %9 : vector<1x8x128xbf16> to vector<8x128xbf16>
      %cst_11 = arith.constant dense<0.000000e+00> : vector<4x128xf32>
      %11 = tpu.matmul %8, %10, %cst_11 {dimension_numbers = #tpu.dot_dimension_numbers<[1], [0], [0], [1], [0, 0, 1, 1], [], []>} : vector<4x8xbf16>, vector<8x128xbf16>, vector<4x128xf32> -> vector<4x128xf32>
      %12 = arith.addf %3, %11 : vector<4x128xf32>
      %c0_i32_12 = arith.constant 0 : i32
      %13 = arith.addi %arg6, %c0_i32_12 : i32
      %c1 = arith.constant 1 : index
      %14 = arith.index_cast %13 : i32 to index
      %c0_13 = arith.constant 0 : index
      %c0_14 = arith.constant 0 : index
      %15 = vector.load %arg1[%c1, %14, %c0_13, %c0_14] : memref<4x5x5x8xbf16, #tpu.memory_space<vmem>>, vector<1x1x5x8xbf16>
      %16 = vector.shape_cast %15 : vector<1x1x5x8xbf16> to vector<5x8xbf16>
      %17 = vector.extract_strided_slice %16 {offsets = [0, 0], sizes = [4, 8], strides = [1, 1]} : vector<5x8xbf16> to vector<4x8xbf16>
      %c1_15 = arith.constant 1 : index
      %c0_16 = arith.constant 0 : index
      %c0_17 = arith.constant 0 : index
      %18 = vector.load %arg2[%c1_15, %c0_16, %c0_17] : memref<9x8x128xbf16, #tpu.memory_space<vmem>>, vector<1x8x128xbf16>
      %19 = vector.shape_cast %18 : vector<1x8x128xbf16> to vector<8x128xbf16>
      %cst_18 = arith.constant dense<0.000000e+00> : vector<4x128xf32>
      %20 = tpu.matmul %17, %19, %cst_18 {dimension_numbers = #tpu.dot_dimension_numbers<[1], [0], [0], [1], [0, 0, 1, 1], [], []>} : vector<4x8xbf16>, vector<8x128xbf16>, vector<4x128xf32> -> vector<4x128xf32>
      %21 = arith.addf %12, %20 : vector<4x128xf32>
      %c0_i32_19 = arith.constant 0 : i32
      %22 = arith.addi %arg6, %c0_i32_19 : i32
      %c0_20 = arith.constant 0 : index
      %23 = arith.index_cast %22 : i32 to index
      %c0_21 = arith.constant 0 : index
      %c0_22 = arith.constant 0 : index
      %24 = vector.load %arg1[%c0_20, %23, %c0_21, %c0_22] : memref<4x5x5x8xbf16, #tpu.memory_space<vmem>>, vector<1x1x5x8xbf16>
      %25 = vector.shape_cast %24 : vector<1x1x5x8xbf16> to vector<5x8xbf16>
      %26 = vector.extract_strided_slice %25 {offsets = [1, 0], sizes = [4, 8], strides = [1, 1]} : vector<5x8xbf16> to vector<4x8xbf16>
      %c2 = arith.constant 2 : index
      %c0_23 = arith.constant 0 : index
      %c0_24 = arith.constant 0 : index
      %27 = vector.load %arg2[%c2, %c0_23, %c0_24] : memref<9x8x128xbf16, #tpu.memory_space<vmem>>, vector<1x8x128xbf16>
      %28 = vector.shape_cast %27 : vector<1x8x128xbf16> to vector<8x128xbf16>
      %cst_25 = arith.constant dense<0.000000e+00> : vector<4x128xf32>
      %29 = tpu.matmul %26, %28, %cst_25 {dimension_numbers = #tpu.dot_dimension_numbers<[1], [0], [0], [1], [0, 0, 1, 1], [], []>} : vector<4x8xbf16>, vector<8x128xbf16>, vector<4x128xf32> -> vector<4x128xf32>
      %30 = arith.addf %21, %29 : vector<4x128xf32>
      %c0_i32_26 = arith.constant 0 : i32
      %31 = arith.addi %arg6, %c0_i32_26 : i32
      %c2_27 = arith.constant 2 : index
      %32 = arith.index_cast %31 : i32 to index
      %c0_28 = arith.constant 0 : index
      %c0_29 = arith.constant 0 : index
      %33 = vector.load %arg1[%c2_27, %32, %c0_28, %c0_29] : memref<4x5x5x8xbf16, #tpu.memory_space<vmem>>, vector<1x1x5x8xbf16>
      %34 = vector.shape_cast %33 : vector<1x1x5x8xbf16> to vector<5x8xbf16>
      %35 = vector.extract_strided_slice %34 {offsets = [0, 0], sizes = [4, 8], strides = [1, 1]} : vector<5x8xbf16> to vector<4x8xbf16>
      %c3 = arith.constant 3 : index
      %c0_30 = arith.constant 0 : index
      %c0_31 = arith.constant 0 : index
      %36 = vector.load %arg2[%c3, %c0_30, %c0_31] : memref<9x8x128xbf16, #tpu.memory_space<vmem>>, vector<1x8x128xbf16>
      %37 = vector.shape_cast %36 : vector<1x8x128xbf16> to vector<8x128xbf16>
      %cst_32 = arith.constant dense<0.000000e+00> : vector<4x128xf32>
      %38 = tpu.matmul %35, %37, %cst_32 {dimension_numbers = #tpu.dot_dimension_numbers<[1], [0], [0], [1], [0, 0, 1, 1], [], []>} : vector<4x8xbf16>, vector<8x128xbf16>, vector<4x128xf32> -> vector<4x128xf32>
      %39 = arith.addf %30, %38 : vector<4x128xf32>
      %c0_i32_33 = arith.constant 0 : i32
      %40 = arith.addi %arg6, %c0_i32_33 : i32
      %c3_34 = arith.constant 3 : index
      %41 = arith.index_cast %40 : i32 to index
      %c0_35 = arith.constant 0 : index
      %c0_36 = arith.constant 0 : index
      %42 = vector.load %arg1[%c3_34, %41, %c0_35, %c0_36] : memref<4x5x5x8xbf16, #tpu.memory_space<vmem>>, vector<1x1x5x8xbf16>
      %43 = vector.shape_cast %42 : vector<1x1x5x8xbf16> to vector<5x8xbf16>
      %44 = vector.extract_strided_slice %43 {offsets = [0, 0], sizes = [4, 8], strides = [1, 1]} : vector<5x8xbf16> to vector<4x8xbf16>
      %c4 = arith.constant 4 : index
      %c0_37 = arith.constant 0 : index
      %c0_38 = arith.constant 0 : index
      %45 = vector.load %arg2[%c4, %c0_37, %c0_38] : memref<9x8x128xbf16, #tpu.memory_space<vmem>>, vector<1x8x128xbf16>
      %46 = vector.shape_cast %45 : vector<1x8x128xbf16> to vector<8x128xbf16>
      %cst_39 = arith.constant dense<0.000000e+00> : vector<4x128xf32>
      %47 = tpu.matmul %44, %46, %cst_39 {dimension_numbers = #tpu.dot_dimension_numbers<[1], [0], [0], [1], [0, 0, 1, 1], [], []>} : vector<4x8xbf16>, vector<8x128xbf16>, vector<4x128xf32> -> vector<4x128xf32>
      %48 = arith.addf %39, %47 : vector<4x128xf32>
      %c0_i32_40 = arith.constant 0 : i32
      %49 = arith.addi %arg6, %c0_i32_40 : i32
      %c2_41 = arith.constant 2 : index
      %50 = arith.index_cast %49 : i32 to index
      %c0_42 = arith.constant 0 : index
      %c0_43 = arith.constant 0 : index
      %51 = vector.load %arg1[%c2_41, %50, %c0_42, %c0_43] : memref<4x5x5x8xbf16, #tpu.memory_space<vmem>>, vector<1x1x5x8xbf16>
      %52 = vector.shape_cast %51 : vector<1x1x5x8xbf16> to vector<5x8xbf16>
      %53 = vector.extract_strided_slice %52 {offsets = [1, 0], sizes = [4, 8], strides = [1, 1]} : vector<5x8xbf16> to vector<4x8xbf16>
      %c5 = arith.constant 5 : index
      %c0_44 = arith.constant 0 : index
      %c0_45 = arith.constant 0 : index
      %54 = vector.load %arg2[%c5, %c0_44, %c0_45] : memref<9x8x128xbf16, #tpu.memory_space<vmem>>, vector<1x8x128xbf16>
      %55 = vector.shape_cast %54 : vector<1x8x128xbf16> to vector<8x128xbf16>
      %cst_46 = arith.constant dense<0.000000e+00> : vector<4x128xf32>
      %56 = tpu.matmul %53, %55, %cst_46 {dimension_numbers = #tpu.dot_dimension_numbers<[1], [0], [0], [1], [0, 0, 1, 1], [], []>} : vector<4x8xbf16>, vector<8x128xbf16>, vector<4x128xf32> -> vector<4x128xf32>
      %57 = arith.addf %48, %56 : vector<4x128xf32>
      %c1_i32_47 = arith.constant 1 : i32
      %58 = arith.addi %arg6, %c1_i32_47 : i32
      %c0_48 = arith.constant 0 : index
      %59 = arith.index_cast %58 : i32 to index
      %c0_49 = arith.constant 0 : index
      %c0_50 = arith.constant 0 : index
      %60 = vector.load %arg1[%c0_48, %59, %c0_49, %c0_50] : memref<4x5x5x8xbf16, #tpu.memory_space<vmem>>, vector<1x1x5x8xbf16>
      %61 = vector.shape_cast %60 : vector<1x1x5x8xbf16> to vector<5x8xbf16>
      %62 = vector.extract_strided_slice %61 {offsets = [0, 0], sizes = [4, 8], strides = [1, 1]} : vector<5x8xbf16> to vector<4x8xbf16>
      %c6 = arith.constant 6 : index
      %c0_51 = arith.constant 0 : index
      %c0_52 = arith.constant 0 : index
      %63 = vector.load %arg2[%c6, %c0_51, %c0_52] : memref<9x8x128xbf16, #tpu.memory_space<vmem>>, vector<1x8x128xbf16>
      %64 = vector.shape_cast %63 : vector<1x8x128xbf16> to vector<8x128xbf16>
      %cst_53 = arith.constant dense<0.000000e+00> : vector<4x128xf32>
      %65 = tpu.matmul %62, %64, %cst_53 {dimension_numbers = #tpu.dot_dimension_numbers<[1], [0], [0], [1], [0, 0, 1, 1], [], []>} : vector<4x8xbf16>, vector<8x128xbf16>, vector<4x128xf32> -> vector<4x128xf32>
      %66 = arith.addf %57, %65 : vector<4x128xf32>
      %c1_i32_54 = arith.constant 1 : i32
      %67 = arith.addi %arg6, %c1_i32_54 : i32
      %c1_55 = arith.constant 1 : index
      %68 = arith.index_cast %67 : i32 to index
      %c0_56 = arith.constant 0 : index
      %c0_57 = arith.constant 0 : index
      %69 = vector.load %arg1[%c1_55, %68, %c0_56, %c0_57] : memref<4x5x5x8xbf16, #tpu.memory_space<vmem>>, vector<1x1x5x8xbf16>
      %70 = vector.shape_cast %69 : vector<1x1x5x8xbf16> to vector<5x8xbf16>
      %71 = vector.extract_strided_slice %70 {offsets = [0, 0], sizes = [4, 8], strides = [1, 1]} : vector<5x8xbf16> to vector<4x8xbf16>
      %c7 = arith.constant 7 : index
      %c0_58 = arith.constant 0 : index
      %c0_59 = arith.constant 0 : index
      %72 = vector.load %arg2[%c7, %c0_58, %c0_59] : memref<9x8x128xbf16, #tpu.memory_space<vmem>>, vector<1x8x128xbf16>
      %73 = vector.shape_cast %72 : vector<1x8x128xbf16> to vector<8x128xbf16>
      %cst_60 = arith.constant dense<0.000000e+00> : vector<4x128xf32>
      %74 = tpu.matmul %71, %73, %cst_60 {dimension_numbers = #tpu.dot_dimension_numbers<[1], [0], [0], [1], [0, 0, 1, 1], [], []>} : vector<4x8xbf16>, vector<8x128xbf16>, vector<4x128xf32> -> vector<4x128xf32>
      %75 = arith.addf %66, %74 : vector<4x128xf32>
      %c1_i32_61 = arith.constant 1 : i32
      %76 = arith.addi %arg6, %c1_i32_61 : i32
      %c0_62 = arith.constant 0 : index
      %77 = arith.index_cast %76 : i32 to index
      %c0_63 = arith.constant 0 : index
      %c0_64 = arith.constant 0 : index
      %78 = vector.load %arg1[%c0_62, %77, %c0_63, %c0_64] : memref<4x5x5x8xbf16, #tpu.memory_space<vmem>>, vector<1x1x5x8xbf16>
      %79 = vector.shape_cast %78 : vector<1x1x5x8xbf16> to vector<5x8xbf16>
      %80 = vector.extract_strided_slice %79 {offsets = [1, 0], sizes = [4, 8], strides = [1, 1]} : vector<5x8xbf16> to vector<4x8xbf16>
      %c8 = arith.constant 8 : index
      %c0_65 = arith.constant 0 : index
      %c0_66 = arith.constant 0 : index
      %81 = vector.load %arg2[%c8, %c0_65, %c0_66] : memref<9x8x128xbf16, #tpu.memory_space<vmem>>, vector<1x8x128xbf16>
      %82 = vector.shape_cast %81 : vector<1x8x128xbf16> to vector<8x128xbf16>
      %cst_67 = arith.constant dense<0.000000e+00> : vector<4x128xf32>
      %83 = tpu.matmul %80, %82, %cst_67 {dimension_numbers = #tpu.dot_dimension_numbers<[1], [0], [0], [1], [0, 0, 1, 1], [], []>} : vector<4x8xbf16>, vector<8x128xbf16>, vector<4x128xf32> -> vector<4x128xf32>
      %84 = arith.addf %75, %83 : vector<4x128xf32>
      %c0_68 = arith.constant 0 : index
      %c0_69 = arith.constant 0 : index
      %85 = vector.load %arg3[%c0_68, %c0_69] : memref<1x128xf32, #tpu.memory_space<vmem>>, vector<1x128xf32>
      %86 = vector.broadcast %85 : vector<1x128xf32> to vector<4x128xf32>
      %87 = arith.addf %84, %86 : vector<4x128xf32>
      %cst_70 = arith.constant 0.000000e+00 : f32
      %88 = vector.broadcast %cst_70 : f32 to vector<4x128xf32>
      %89 = arith.maximumf %87, %88 : vector<4x128xf32>
      %c0_71 = arith.constant 0 : index
      %c0_72 = arith.constant 0 : index
      %c0_73 = arith.constant 0 : index
      %90 = vector.load %arg5[%c0_71, %c0_72, %c0_73] : memref<1x2x128xf32, #tpu.memory_space<vmem>>, vector<1x1x128xf32>
      %91 = vector.shape_cast %90 : vector<1x1x128xf32> to vector<1x128xf32>
      %cst_74 = arith.constant dense<0.000000e+00> : vector<128xf32>
      %92 = vector.multi_reduction <add>, %89, %cst_74 [0] : vector<4x128xf32> to vector<128xf32>
      %93 = vector.shape_cast %92 : vector<128xf32> to vector<1x128xf32>
      %94 = arith.addf %91, %93 : vector<1x128xf32>
      %c0_75 = arith.constant 0 : index
      %c0_76 = arith.constant 0 : index
      %c0_77 = arith.constant 0 : index
      %95 = vector.load %arg5[%c0_75, %c0_76, %c0_77] : memref<1x2x128xf32, #tpu.memory_space<vmem>>, vector<1x1x128xf32>
      %96 = vector.shape_cast %95 : vector<1x1x128xf32> to vector<1x128xf32>
      %97 = vector.shape_cast %94 : vector<1x128xf32> to vector<1x1x128xf32>
      tpu.vector_store %arg5[%c0_75, %c0_76, %c0_77], %97 {strides = array<i32>} : memref<1x2x128xf32, #tpu.memory_space<vmem>>, vector<1x1x128xf32>,
      %c0_78 = arith.constant 0 : index
      %c1_79 = arith.constant 1 : index
      %c0_80 = arith.constant 0 : index
      %98 = vector.load %arg5[%c0_78, %c1_79, %c0_80] : memref<1x2x128xf32, #tpu.memory_space<vmem>>, vector<1x1x128xf32>
      %99 = vector.shape_cast %98 : vector<1x1x128xf32> to vector<1x128xf32>
      %100 = arith.mulf %89, %89 : vector<4x128xf32>
      %cst_81 = arith.constant dense<0.000000e+00> : vector<128xf32>
      %101 = vector.multi_reduction <add>, %100, %cst_81 [0] : vector<4x128xf32> to vector<128xf32>
      %102 = vector.shape_cast %101 : vector<128xf32> to vector<1x128xf32>
      %103 = arith.addf %99, %102 : vector<1x128xf32>
      %c0_82 = arith.constant 0 : index
      %c1_83 = arith.constant 1 : index
      %c0_84 = arith.constant 0 : index
      %104 = vector.load %arg5[%c0_82, %c1_83, %c0_84] : memref<1x2x128xf32, #tpu.memory_space<vmem>>, vector<1x1x128xf32>
      %105 = vector.shape_cast %104 : vector<1x1x128xf32> to vector<1x128xf32>
      %106 = vector.shape_cast %103 : vector<1x128xf32> to vector<1x1x128xf32>
      tpu.vector_store %arg5[%c0_82, %c1_83, %c0_84], %106 {strides = array<i32>} : memref<1x2x128xf32, #tpu.memory_space<vmem>>, vector<1x1x128xf32>,
      %107 = arith.truncf %89 : vector<4x128xf32> to vector<4x128xbf16>
      %c0_85 = arith.constant 0 : index
      %108 = arith.index_cast %arg6 : i32 to index
      %c0_86 = arith.constant 0 : index
      %c0_87 = arith.constant 0 : index
      %109 = vector.load %arg4[%c0_85, %108, %c0_86, %c0_87] : memref<1x4x4x128xbf16, #tpu.memory_space<vmem>>, vector<1x1x4x128xbf16>
      %110 = vector.shape_cast %109 : vector<1x1x4x128xbf16> to vector<4x128xbf16>
      %111 = vector.shape_cast %107 : vector<4x128xbf16> to vector<1x1x4x128xbf16>
      tpu.vector_store %arg4[%c0_85, %108, %c0_86, %c0_87], %111 {strides = array<i32>} : memref<1x4x4x128xbf16, #tpu.memory_space<vmem>>, vector<1x1x4x128xbf16>,
    }
    %c4_i32_2 = arith.constant 4 : i32
    return
  }
  func.func @transform_0(%arg0: i32) -> (i32, i32, i32, i32) {
    %c0_i32 = arith.constant 0 : i32
    %c0_i32_0 = arith.constant 0 : i32
    %c0_i32_1 = arith.constant 0 : i32
    %c0_i32_2 = arith.constant 0 : i32
    return %arg0, %c0_i32, %c0_i32_0, %c0_i32_1 : i32, i32, i32, i32
  }
  func.func @transform_1(%arg0: i32) -> (i32, i32, i32) {
    %c0_i32 = arith.constant 0 : i32
    %c0_i32_0 = arith.constant 0 : i32
    %c0_i32_1 = arith.constant 0 : i32
    %c0_i32_2 = arith.constant 0 : i32
    return %c0_i32, %c0_i32_0, %c0_i32_1 : i32, i32, i32
  }
  func.func @transform_2(%arg0: i32) -> (i32, i32) {
    %c0_i32 = arith.constant 0 : i32
    %c0_i32_0 = arith.constant 0 : i32
    %c0_i32_1 = arith.constant 0 : i32
    return %c0_i32, %c0_i32_0 : i32, i32
  }
  func.func @transform_3(%arg0: i32) -> (i32, i32, i32, i32) {
    %c0_i32 = arith.constant 0 : i32
    %c0_i32_0 = arith.constant 0 : i32
    %c0_i32_1 = arith.constant 0 : i32
    %c0_i32_2 = arith.constant 0 : i32
    return %arg0, %c0_i32, %c0_i32_0, %c0_i32_1 : i32, i32, i32, i32
  }
  func.func @transform_4(%arg0: i32) -> (i32, i32, i32) {
    %c0_i32 = arith.constant 0 : i32
    %c0_i32_0 = arith.constant 0 : i32
    %c0_i32_1 = arith.constant 0 : i32
    return %arg0, %c0_i32, %c0_i32_0 : i32, i32, i32
  }
}

module attributes {stable_mosaic.version = 11 : i64} {
  func.func @_bottleneck_kernel(%arg0: memref<2x128xf32, #tpu.memory_space<vmem>>, %arg1: memref<128x256xf32, #tpu.memory_space<vmem>>, %arg2: memref<1x256xf32, #tpu.memory_space<vmem>>, %arg3: memref<1x256xf32, #tpu.memory_space<vmem>>, %arg4: memref<1x256xf32, #tpu.memory_space<vmem>>, %arg5: memref<8x128xf32, #tpu.memory_space<vmem>>, %arg6: memref<1x128xf32, #tpu.memory_space<vmem>>, %arg7: memref<1x128xf32, #tpu.memory_space<vmem>>, %arg8: memref<1x128xf32, #tpu.memory_space<vmem>>, %arg9: memref<2x8xf32, #tpu.memory_space<vmem>>, %arg10: memref<2x128xf32, #tpu.memory_space<vmem>>, %arg11: memref<2x8xf32, #tpu.memory_space<vmem>>, %arg12: memref<2x8xf32, #tpu.memory_space<vmem>>) attributes {dimension_semantics = [], scalar_prefetch = 0 : i64, scratch_operands = 0 : i64, tpu.core_type = #tpu.core_type<tc>} {
    %c0 = arith.constant 0 : index
    %c0_0 = arith.constant 0 : index
    %0 = vector.load %arg0[%c0, %c0_0] : memref<2x128xf32, #tpu.memory_space<vmem>>, vector<2x128xf32>
    %c0_1 = arith.constant 0 : index
    %c0_2 = arith.constant 0 : index
    %1 = vector.load %arg1[%c0_1, %c0_2] : memref<128x256xf32, #tpu.memory_space<vmem>>, vector<128x256xf32>
    %cst = arith.constant dense<0.000000e+00> : vector<2x256xf32>
    %2 = tpu.matmul %0, %1, %cst {dimension_numbers = #tpu.dot_dimension_numbers<[1], [0], [0], [1], [0, 0, 1, 1], [], []>} : vector<2x128xf32>, vector<128x256xf32>, vector<2x256xf32> -> vector<2x256xf32>
    %c0_3 = arith.constant 0 : index
    %c0_4 = arith.constant 0 : index
    %3 = vector.load %arg2[%c0_3, %c0_4] : memref<1x256xf32, #tpu.memory_space<vmem>>, vector<1x256xf32>
    %4 = vector.broadcast %3 : vector<1x256xf32> to vector<2x256xf32>
    %5 = arith.addf %2, %4 : vector<2x256xf32>
    %cst_5 = arith.constant dense<0.000000e+00> : vector<256xf32>
    %6 = vector.multi_reduction <add>, %5, %cst_5 [0] : vector<2x256xf32> to vector<256xf32>
    %7 = vector.shape_cast %6 : vector<256xf32> to vector<1x256xf32>
    %cst_6 = arith.constant 2.000000e+00 : f32
    %8 = vector.broadcast %cst_6 : f32 to vector<1x256xf32>
    %9 = arith.divf %7, %8 : vector<1x256xf32>
    %10 = vector.broadcast %9 : vector<1x256xf32> to vector<2x256xf32>
    %11 = arith.subf %5, %10 : vector<2x256xf32>
    %12 = arith.mulf %11, %11 : vector<2x256xf32>
    %cst_7 = arith.constant dense<0.000000e+00> : vector<256xf32>
    %13 = vector.multi_reduction <add>, %12, %cst_7 [0] : vector<2x256xf32> to vector<256xf32>
    %14 = vector.shape_cast %13 : vector<256xf32> to vector<1x256xf32>
    %cst_8 = arith.constant 2.000000e+00 : f32
    %15 = vector.broadcast %cst_8 : f32 to vector<1x256xf32>
    %16 = arith.divf %14, %15 : vector<1x256xf32>
    %c0_9 = arith.constant 0 : index
    %c0_10 = arith.constant 0 : index
    %17 = vector.load %arg3[%c0_9, %c0_10] : memref<1x256xf32, #tpu.memory_space<vmem>>, vector<1x256xf32>
    %18 = vector.broadcast %9 : vector<1x256xf32> to vector<2x256xf32>
    %19 = arith.subf %5, %18 : vector<2x256xf32>
    %20 = vector.broadcast %17 : vector<1x256xf32> to vector<2x256xf32>
    %21 = arith.mulf %20, %19 : vector<2x256xf32>
    %cst_11 = arith.constant 9.99999974E-6 : f32
    %22 = vector.broadcast %cst_11 : f32 to vector<1x256xf32>
    %23 = arith.addf %16, %22 : vector<1x256xf32>
    %24 = math.rsqrt %23 : vector<1x256xf32>
    %25 = vector.broadcast %24 : vector<1x256xf32> to vector<2x256xf32>
    %26 = arith.mulf %21, %25 : vector<2x256xf32>
    %c0_12 = arith.constant 0 : index
    %c0_13 = arith.constant 0 : index
    %27 = vector.load %arg4[%c0_12, %c0_13] : memref<1x256xf32, #tpu.memory_space<vmem>>, vector<1x256xf32>
    %28 = vector.broadcast %27 : vector<1x256xf32> to vector<2x256xf32>
    %29 = arith.addf %26, %28 : vector<2x256xf32>
    %30 = vector.extract_strided_slice %29 {offsets = [0, 0], sizes = [2, 8], strides = [1, 1]} : vector<2x256xf32> to vector<2x8xf32>
    %31 = vector.extract_strided_slice %29 {offsets = [0, 128], sizes = [2, 8], strides = [1, 1]} : vector<2x256xf32> to vector<2x8xf32>
    %c0_14 = arith.constant 0 : index
    %c0_15 = arith.constant 0 : index
    %32 = vector.load %arg9[%c0_14, %c0_15] : memref<2x8xf32, #tpu.memory_space<vmem>>, vector<2x8xf32>
    %cst_16 = arith.constant 5.000000e-01 : f32
    %33 = vector.broadcast %cst_16 : f32 to vector<2x8xf32>
    %34 = arith.mulf %33, %31 : vector<2x8xf32>
    %35 = math.exp %34 : vector<2x8xf32>
    %36 = arith.mulf %32, %35 : vector<2x8xf32>
    %37 = arith.addf %36, %30 : vector<2x8xf32>
    %c0_17 = arith.constant 0 : index
    %c0_18 = arith.constant 0 : index
    %38 = vector.load %arg5[%c0_17, %c0_18] : memref<8x128xf32, #tpu.memory_space<vmem>>, vector<8x128xf32>
    %cst_19 = arith.constant dense<0.000000e+00> : vector<2x128xf32>
    %39 = tpu.matmul %37, %38, %cst_19 {dimension_numbers = #tpu.dot_dimension_numbers<[1], [0], [0], [1], [0, 0, 1, 1], [], []>} : vector<2x8xf32>, vector<8x128xf32>, vector<2x128xf32> -> vector<2x128xf32>
    %c0_20 = arith.constant 0 : index
    %c0_21 = arith.constant 0 : index
    %40 = vector.load %arg6[%c0_20, %c0_21] : memref<1x128xf32, #tpu.memory_space<vmem>>, vector<1x128xf32>
    %41 = vector.broadcast %40 : vector<1x128xf32> to vector<2x128xf32>
    %42 = arith.addf %39, %41 : vector<2x128xf32>
    %cst_22 = arith.constant dense<0.000000e+00> : vector<128xf32>
    %43 = vector.multi_reduction <add>, %42, %cst_22 [0] : vector<2x128xf32> to vector<128xf32>
    %44 = vector.shape_cast %43 : vector<128xf32> to vector<1x128xf32>
    %cst_23 = arith.constant 2.000000e+00 : f32
    %45 = vector.broadcast %cst_23 : f32 to vector<1x128xf32>
    %46 = arith.divf %44, %45 : vector<1x128xf32>
    %47 = vector.broadcast %46 : vector<1x128xf32> to vector<2x128xf32>
    %48 = arith.subf %42, %47 : vector<2x128xf32>
    %49 = arith.mulf %48, %48 : vector<2x128xf32>
    %cst_24 = arith.constant dense<0.000000e+00> : vector<128xf32>
    %50 = vector.multi_reduction <add>, %49, %cst_24 [0] : vector<2x128xf32> to vector<128xf32>
    %51 = vector.shape_cast %50 : vector<128xf32> to vector<1x128xf32>
    %cst_25 = arith.constant 2.000000e+00 : f32
    %52 = vector.broadcast %cst_25 : f32 to vector<1x128xf32>
    %53 = arith.divf %51, %52 : vector<1x128xf32>
    %c0_26 = arith.constant 0 : index
    %c0_27 = arith.constant 0 : index
    %54 = vector.load %arg7[%c0_26, %c0_27] : memref<1x128xf32, #tpu.memory_space<vmem>>, vector<1x128xf32>
    %55 = vector.broadcast %46 : vector<1x128xf32> to vector<2x128xf32>
    %56 = arith.subf %42, %55 : vector<2x128xf32>
    %57 = vector.broadcast %54 : vector<1x128xf32> to vector<2x128xf32>
    %58 = arith.mulf %57, %56 : vector<2x128xf32>
    %cst_28 = arith.constant 9.99999974E-6 : f32
    %59 = vector.broadcast %cst_28 : f32 to vector<1x128xf32>
    %60 = arith.addf %53, %59 : vector<1x128xf32>
    %61 = math.rsqrt %60 : vector<1x128xf32>
    %62 = vector.broadcast %61 : vector<1x128xf32> to vector<2x128xf32>
    %63 = arith.mulf %58, %62 : vector<2x128xf32>
    %c0_29 = arith.constant 0 : index
    %c0_30 = arith.constant 0 : index
    %64 = vector.load %arg8[%c0_29, %c0_30] : memref<1x128xf32, #tpu.memory_space<vmem>>, vector<1x128xf32>
    %65 = vector.broadcast %64 : vector<1x128xf32> to vector<2x128xf32>
    %66 = arith.addf %63, %65 : vector<2x128xf32>
    %c0_31 = arith.constant 0 : index
    %c0_32 = arith.constant 0 : index
    %67 = vector.load %arg10[%c0_31, %c0_32] : memref<2x128xf32, #tpu.memory_space<vmem>>, vector<2x128xf32>
    tpu.vector_store %arg10[%c0_31, %c0_32], %66 {strides = array<i32>} : memref<2x128xf32, #tpu.memory_space<vmem>>, vector<2x128xf32>,
    %c0_33 = arith.constant 0 : index
    %c0_34 = arith.constant 0 : index
    %68 = vector.load %arg11[%c0_33, %c0_34] : memref<2x8xf32, #tpu.memory_space<vmem>>, vector<2x8xf32>
    tpu.vector_store %arg11[%c0_33, %c0_34], %30 {strides = array<i32>} : memref<2x8xf32, #tpu.memory_space<vmem>>, vector<2x8xf32>,
    %c0_35 = arith.constant 0 : index
    %c0_36 = arith.constant 0 : index
    %69 = vector.load %arg12[%c0_35, %c0_36] : memref<2x8xf32, #tpu.memory_space<vmem>>, vector<2x8xf32>
    tpu.vector_store %arg12[%c0_35, %c0_36], %31 {strides = array<i32>} : memref<2x8xf32, #tpu.memory_space<vmem>>, vector<2x8xf32>,
    return
  }
}

module attributes {stable_mosaic.version = 11 : i64} {
  func.func @_conv_relu_stats_kernel(%arg0: i32, %arg1: memref<1x9x9x8xbf16, #tpu.memory_space<vmem>>, %arg2: memref<9x8x128xbf16, #tpu.memory_space<vmem>>, %arg3: memref<1x128xf32, #tpu.memory_space<vmem>>, %arg4: memref<1x7x7x128xbf16, #tpu.memory_space<vmem>>, %arg5: memref<1x2x128xf32, #tpu.memory_space<vmem>>) attributes {dimension_semantics = [#tpu.dimension_semantics<parallel>], iteration_bounds = array<i64: 2>, scalar_prefetch = 0 : i64, scratch_operands = 0 : i64, tpu.core_type = #tpu.core_type<tc>, window_params = [{transform_indices = @transform_0, window_bounds = array<i64: 1, 9, 9, 8>}, {pipeline_mode = #tpu.pipeline_mode<synchronous>, transform_indices = @transform_1, window_bounds = array<i64: 9, 8, 128>}, {pipeline_mode = #tpu.pipeline_mode<synchronous>, transform_indices = @transform_2, window_bounds = array<i64: 1, 128>}, {transform_indices = @transform_3, window_bounds = array<i64: 1, 7, 7, 128>}, {transform_indices = @transform_4, window_bounds = array<i64: 1, 2, 128>}]} {
    %cst = arith.constant 0.000000e+00 : f32
    %0 = vector.broadcast %cst : f32 to vector<1x2x128xf32>
    %c0 = arith.constant 0 : index
    %c0_0 = arith.constant 0 : index
    %c0_1 = arith.constant 0 : index
    %1 = vector.load %arg5[%c0, %c0_0, %c0_1] : memref<1x2x128xf32, #tpu.memory_space<vmem>>, vector<1x2x128xf32>
    tpu.vector_store %arg5[%c0, %c0_0, %c0_1], %0 {strides = array<i32>} : memref<1x2x128xf32, #tpu.memory_space<vmem>>, vector<1x2x128xf32>,
    %c0_i32 = arith.constant 0 : i32
    %c7_i32 = arith.constant 7 : i32
    %2 = arith.addi %c0_i32, %c7_i32 : i32
    %c1_i32 = arith.constant 1 : i32
    scf.for %arg6 = %c0_i32 to %2 step %c1_i32  : i32 {
      %cst_3 = arith.constant 0.000000e+00 : f32
      %3 = vector.broadcast %cst_3 : f32 to vector<7x128xf32>
      %c0_i32_4 = arith.constant 0 : i32
      %4 = arith.addi %arg6, %c0_i32_4 : i32
      %c0_5 = arith.constant 0 : index
      %5 = arith.index_cast %4 : i32 to index
      %c0_6 = arith.constant 0 : index
      %c0_7 = arith.constant 0 : index
      %6 = vector.load %arg1[%c0_5, %5, %c0_6, %c0_7] : memref<1x9x9x8xbf16, #tpu.memory_space<vmem>>, vector<1x1x9x8xbf16>
      %7 = vector.shape_cast %6 : vector<1x1x9x8xbf16> to vector<9x8xbf16>
      %8 = vector.extract_strided_slice %7 {offsets = [0, 0], sizes = [7, 8], strides = [1, 1]} : vector<9x8xbf16> to vector<7x8xbf16>
      %c0_8 = arith.constant 0 : index
      %c0_9 = arith.constant 0 : index
      %c0_10 = arith.constant 0 : index
      %9 = vector.load %arg2[%c0_8, %c0_9, %c0_10] : memref<9x8x128xbf16, #tpu.memory_space<vmem>>, vector<1x8x128xbf16>
      %10 = vector.shape_cast %9 : vector<1x8x128xbf16> to vector<8x128xbf16>
      %cst_11 = arith.constant dense<0.000000e+00> : vector<7x128xf32>
      %11 = tpu.matmul %8, %10, %cst_11 {dimension_numbers = #tpu.dot_dimension_numbers<[1], [0], [0], [1], [0, 0, 1, 1], [], []>} : vector<7x8xbf16>, vector<8x128xbf16>, vector<7x128xf32> -> vector<7x128xf32>
      %12 = arith.addf %3, %11 : vector<7x128xf32>
      %c0_i32_12 = arith.constant 0 : i32
      %13 = arith.addi %arg6, %c0_i32_12 : i32
      %c0_13 = arith.constant 0 : index
      %14 = arith.index_cast %13 : i32 to index
      %c0_14 = arith.constant 0 : index
      %c0_15 = arith.constant 0 : index
      %15 = vector.load %arg1[%c0_13, %14, %c0_14, %c0_15] : memref<1x9x9x8xbf16, #tpu.memory_space<vmem>>, vector<1x1x9x8xbf16>
      %16 = vector.shape_cast %15 : vector<1x1x9x8xbf16> to vector<9x8xbf16>
      %17 = vector.extract_strided_slice %16 {offsets = [1, 0], sizes = [7, 8], strides = [1, 1]} : vector<9x8xbf16> to vector<7x8xbf16>
      %c1 = arith.constant 1 : index
      %c0_16 = arith.constant 0 : index
      %c0_17 = arith.constant 0 : index
      %18 = vector.load %arg2[%c1, %c0_16, %c0_17] : memref<9x8x128xbf16, #tpu.memory_space<vmem>>, vector<1x8x128xbf16>
      %19 = vector.shape_cast %18 : vector<1x8x128xbf16> to vector<8x128xbf16>
      %cst_18 = arith.constant dense<0.000000e+00> : vector<7x128xf32>
      %20 = tpu.matmul %17, %19, %cst_18 {dimension_numbers = #tpu.dot_dimension_numbers<[1], [0], [0], [1], [0, 0, 1, 1], [], []>} : vector<7x8xbf16>, vector<8x128xbf16>, vector<7x128xf32> -> vector<7x128xf32>
      %21 = arith.addf %12, %20 : vector<7x128xf32>
      %c0_i32_19 = arith.constant 0 : i32
      %22 = arith.addi %arg6, %c0_i32_19 : i32
      %c0_20 = arith.constant 0 : index
      %23 = arith.index_cast %22 : i32 to index
      %c0_21 = arith.constant 0 : index
      %c0_22 = arith.constant 0 : index
      %24 = vector.load %arg1[%c0_20, %23, %c0_21, %c0_22] : memref<1x9x9x8xbf16, #tpu.memory_space<vmem>>, vector<1x1x9x8xbf16>
      %25 = vector.shape_cast %24 : vector<1x1x9x8xbf16> to vector<9x8xbf16>
      %26 = vector.extract_strided_slice %25 {offsets = [2, 0], sizes = [7, 8], strides = [1, 1]} : vector<9x8xbf16> to vector<7x8xbf16>
      %c2 = arith.constant 2 : index
      %c0_23 = arith.constant 0 : index
      %c0_24 = arith.constant 0 : index
      %27 = vector.load %arg2[%c2, %c0_23, %c0_24] : memref<9x8x128xbf16, #tpu.memory_space<vmem>>, vector<1x8x128xbf16>
      %28 = vector.shape_cast %27 : vector<1x8x128xbf16> to vector<8x128xbf16>
      %cst_25 = arith.constant dense<0.000000e+00> : vector<7x128xf32>
      %29 = tpu.matmul %26, %28, %cst_25 {dimension_numbers = #tpu.dot_dimension_numbers<[1], [0], [0], [1], [0, 0, 1, 1], [], []>} : vector<7x8xbf16>, vector<8x128xbf16>, vector<7x128xf32> -> vector<7x128xf32>
      %30 = arith.addf %21, %29 : vector<7x128xf32>
      %c1_i32_26 = arith.constant 1 : i32
      %31 = arith.addi %arg6, %c1_i32_26 : i32
      %c0_27 = arith.constant 0 : index
      %32 = arith.index_cast %31 : i32 to index
      %c0_28 = arith.constant 0 : index
      %c0_29 = arith.constant 0 : index
      %33 = vector.load %arg1[%c0_27, %32, %c0_28, %c0_29] : memref<1x9x9x8xbf16, #tpu.memory_space<vmem>>, vector<1x1x9x8xbf16>
      %34 = vector.shape_cast %33 : vector<1x1x9x8xbf16> to vector<9x8xbf16>
      %35 = vector.extract_strided_slice %34 {offsets = [0, 0], sizes = [7, 8], strides = [1, 1]} : vector<9x8xbf16> to vector<7x8xbf16>
      %c3 = arith.constant 3 : index
      %c0_30 = arith.constant 0 : index
      %c0_31 = arith.constant 0 : index
      %36 = vector.load %arg2[%c3, %c0_30, %c0_31] : memref<9x8x128xbf16, #tpu.memory_space<vmem>>, vector<1x8x128xbf16>
      %37 = vector.shape_cast %36 : vector<1x8x128xbf16> to vector<8x128xbf16>
      %cst_32 = arith.constant dense<0.000000e+00> : vector<7x128xf32>
      %38 = tpu.matmul %35, %37, %cst_32 {dimension_numbers = #tpu.dot_dimension_numbers<[1], [0], [0], [1], [0, 0, 1, 1], [], []>} : vector<7x8xbf16>, vector<8x128xbf16>, vector<7x128xf32> -> vector<7x128xf32>
      %39 = arith.addf %30, %38 : vector<7x128xf32>
      %c1_i32_33 = arith.constant 1 : i32
      %40 = arith.addi %arg6, %c1_i32_33 : i32
      %c0_34 = arith.constant 0 : index
      %41 = arith.index_cast %40 : i32 to index
      %c0_35 = arith.constant 0 : index
      %c0_36 = arith.constant 0 : index
      %42 = vector.load %arg1[%c0_34, %41, %c0_35, %c0_36] : memref<1x9x9x8xbf16, #tpu.memory_space<vmem>>, vector<1x1x9x8xbf16>
      %43 = vector.shape_cast %42 : vector<1x1x9x8xbf16> to vector<9x8xbf16>
      %44 = vector.extract_strided_slice %43 {offsets = [1, 0], sizes = [7, 8], strides = [1, 1]} : vector<9x8xbf16> to vector<7x8xbf16>
      %c4 = arith.constant 4 : index
      %c0_37 = arith.constant 0 : index
      %c0_38 = arith.constant 0 : index
      %45 = vector.load %arg2[%c4, %c0_37, %c0_38] : memref<9x8x128xbf16, #tpu.memory_space<vmem>>, vector<1x8x128xbf16>
      %46 = vector.shape_cast %45 : vector<1x8x128xbf16> to vector<8x128xbf16>
      %cst_39 = arith.constant dense<0.000000e+00> : vector<7x128xf32>
      %47 = tpu.matmul %44, %46, %cst_39 {dimension_numbers = #tpu.dot_dimension_numbers<[1], [0], [0], [1], [0, 0, 1, 1], [], []>} : vector<7x8xbf16>, vector<8x128xbf16>, vector<7x128xf32> -> vector<7x128xf32>
      %48 = arith.addf %39, %47 : vector<7x128xf32>
      %c1_i32_40 = arith.constant 1 : i32
      %49 = arith.addi %arg6, %c1_i32_40 : i32
      %c0_41 = arith.constant 0 : index
      %50 = arith.index_cast %49 : i32 to index
      %c0_42 = arith.constant 0 : index
      %c0_43 = arith.constant 0 : index
      %51 = vector.load %arg1[%c0_41, %50, %c0_42, %c0_43] : memref<1x9x9x8xbf16, #tpu.memory_space<vmem>>, vector<1x1x9x8xbf16>
      %52 = vector.shape_cast %51 : vector<1x1x9x8xbf16> to vector<9x8xbf16>
      %53 = vector.extract_strided_slice %52 {offsets = [2, 0], sizes = [7, 8], strides = [1, 1]} : vector<9x8xbf16> to vector<7x8xbf16>
      %c5 = arith.constant 5 : index
      %c0_44 = arith.constant 0 : index
      %c0_45 = arith.constant 0 : index
      %54 = vector.load %arg2[%c5, %c0_44, %c0_45] : memref<9x8x128xbf16, #tpu.memory_space<vmem>>, vector<1x8x128xbf16>
      %55 = vector.shape_cast %54 : vector<1x8x128xbf16> to vector<8x128xbf16>
      %cst_46 = arith.constant dense<0.000000e+00> : vector<7x128xf32>
      %56 = tpu.matmul %53, %55, %cst_46 {dimension_numbers = #tpu.dot_dimension_numbers<[1], [0], [0], [1], [0, 0, 1, 1], [], []>} : vector<7x8xbf16>, vector<8x128xbf16>, vector<7x128xf32> -> vector<7x128xf32>
      %57 = arith.addf %48, %56 : vector<7x128xf32>
      %c2_i32 = arith.constant 2 : i32
      %58 = arith.addi %arg6, %c2_i32 : i32
      %c0_47 = arith.constant 0 : index
      %59 = arith.index_cast %58 : i32 to index
      %c0_48 = arith.constant 0 : index
      %c0_49 = arith.constant 0 : index
      %60 = vector.load %arg1[%c0_47, %59, %c0_48, %c0_49] : memref<1x9x9x8xbf16, #tpu.memory_space<vmem>>, vector<1x1x9x8xbf16>
      %61 = vector.shape_cast %60 : vector<1x1x9x8xbf16> to vector<9x8xbf16>
      %62 = vector.extract_strided_slice %61 {offsets = [0, 0], sizes = [7, 8], strides = [1, 1]} : vector<9x8xbf16> to vector<7x8xbf16>
      %c6 = arith.constant 6 : index
      %c0_50 = arith.constant 0 : index
      %c0_51 = arith.constant 0 : index
      %63 = vector.load %arg2[%c6, %c0_50, %c0_51] : memref<9x8x128xbf16, #tpu.memory_space<vmem>>, vector<1x8x128xbf16>
      %64 = vector.shape_cast %63 : vector<1x8x128xbf16> to vector<8x128xbf16>
      %cst_52 = arith.constant dense<0.000000e+00> : vector<7x128xf32>
      %65 = tpu.matmul %62, %64, %cst_52 {dimension_numbers = #tpu.dot_dimension_numbers<[1], [0], [0], [1], [0, 0, 1, 1], [], []>} : vector<7x8xbf16>, vector<8x128xbf16>, vector<7x128xf32> -> vector<7x128xf32>
      %66 = arith.addf %57, %65 : vector<7x128xf32>
      %c2_i32_53 = arith.constant 2 : i32
      %67 = arith.addi %arg6, %c2_i32_53 : i32
      %c0_54 = arith.constant 0 : index
      %68 = arith.index_cast %67 : i32 to index
      %c0_55 = arith.constant 0 : index
      %c0_56 = arith.constant 0 : index
      %69 = vector.load %arg1[%c0_54, %68, %c0_55, %c0_56] : memref<1x9x9x8xbf16, #tpu.memory_space<vmem>>, vector<1x1x9x8xbf16>
      %70 = vector.shape_cast %69 : vector<1x1x9x8xbf16> to vector<9x8xbf16>
      %71 = vector.extract_strided_slice %70 {offsets = [1, 0], sizes = [7, 8], strides = [1, 1]} : vector<9x8xbf16> to vector<7x8xbf16>
      %c7 = arith.constant 7 : index
      %c0_57 = arith.constant 0 : index
      %c0_58 = arith.constant 0 : index
      %72 = vector.load %arg2[%c7, %c0_57, %c0_58] : memref<9x8x128xbf16, #tpu.memory_space<vmem>>, vector<1x8x128xbf16>
      %73 = vector.shape_cast %72 : vector<1x8x128xbf16> to vector<8x128xbf16>
      %cst_59 = arith.constant dense<0.000000e+00> : vector<7x128xf32>
      %74 = tpu.matmul %71, %73, %cst_59 {dimension_numbers = #tpu.dot_dimension_numbers<[1], [0], [0], [1], [0, 0, 1, 1], [], []>} : vector<7x8xbf16>, vector<8x128xbf16>, vector<7x128xf32> -> vector<7x128xf32>
      %75 = arith.addf %66, %74 : vector<7x128xf32>
      %c2_i32_60 = arith.constant 2 : i32
      %76 = arith.addi %arg6, %c2_i32_60 : i32
      %c0_61 = arith.constant 0 : index
      %77 = arith.index_cast %76 : i32 to index
      %c0_62 = arith.constant 0 : index
      %c0_63 = arith.constant 0 : index
      %78 = vector.load %arg1[%c0_61, %77, %c0_62, %c0_63] : memref<1x9x9x8xbf16, #tpu.memory_space<vmem>>, vector<1x1x9x8xbf16>
      %79 = vector.shape_cast %78 : vector<1x1x9x8xbf16> to vector<9x8xbf16>
      %80 = vector.extract_strided_slice %79 {offsets = [2, 0], sizes = [7, 8], strides = [1, 1]} : vector<9x8xbf16> to vector<7x8xbf16>
      %c8 = arith.constant 8 : index
      %c0_64 = arith.constant 0 : index
      %c0_65 = arith.constant 0 : index
      %81 = vector.load %arg2[%c8, %c0_64, %c0_65] : memref<9x8x128xbf16, #tpu.memory_space<vmem>>, vector<1x8x128xbf16>
      %82 = vector.shape_cast %81 : vector<1x8x128xbf16> to vector<8x128xbf16>
      %cst_66 = arith.constant dense<0.000000e+00> : vector<7x128xf32>
      %83 = tpu.matmul %80, %82, %cst_66 {dimension_numbers = #tpu.dot_dimension_numbers<[1], [0], [0], [1], [0, 0, 1, 1], [], []>} : vector<7x8xbf16>, vector<8x128xbf16>, vector<7x128xf32> -> vector<7x128xf32>
      %84 = arith.addf %75, %83 : vector<7x128xf32>
      %c0_67 = arith.constant 0 : index
      %c0_68 = arith.constant 0 : index
      %85 = vector.load %arg3[%c0_67, %c0_68] : memref<1x128xf32, #tpu.memory_space<vmem>>, vector<1x128xf32>
      %86 = vector.broadcast %85 : vector<1x128xf32> to vector<7x128xf32>
      %87 = arith.addf %84, %86 : vector<7x128xf32>
      %cst_69 = arith.constant 0.000000e+00 : f32
      %88 = vector.broadcast %cst_69 : f32 to vector<7x128xf32>
      %89 = arith.maximumf %87, %88 : vector<7x128xf32>
      %c0_70 = arith.constant 0 : index
      %c0_71 = arith.constant 0 : index
      %c0_72 = arith.constant 0 : index
      %90 = vector.load %arg5[%c0_70, %c0_71, %c0_72] : memref<1x2x128xf32, #tpu.memory_space<vmem>>, vector<1x1x128xf32>
      %91 = vector.shape_cast %90 : vector<1x1x128xf32> to vector<1x128xf32>
      %cst_73 = arith.constant dense<0.000000e+00> : vector<128xf32>
      %92 = vector.multi_reduction <add>, %89, %cst_73 [0] : vector<7x128xf32> to vector<128xf32>
      %93 = vector.shape_cast %92 : vector<128xf32> to vector<1x128xf32>
      %94 = arith.addf %91, %93 : vector<1x128xf32>
      %c0_74 = arith.constant 0 : index
      %c0_75 = arith.constant 0 : index
      %c0_76 = arith.constant 0 : index
      %95 = vector.load %arg5[%c0_74, %c0_75, %c0_76] : memref<1x2x128xf32, #tpu.memory_space<vmem>>, vector<1x1x128xf32>
      %96 = vector.shape_cast %95 : vector<1x1x128xf32> to vector<1x128xf32>
      %97 = vector.shape_cast %94 : vector<1x128xf32> to vector<1x1x128xf32>
      tpu.vector_store %arg5[%c0_74, %c0_75, %c0_76], %97 {strides = array<i32>} : memref<1x2x128xf32, #tpu.memory_space<vmem>>, vector<1x1x128xf32>,
      %c0_77 = arith.constant 0 : index
      %c1_78 = arith.constant 1 : index
      %c0_79 = arith.constant 0 : index
      %98 = vector.load %arg5[%c0_77, %c1_78, %c0_79] : memref<1x2x128xf32, #tpu.memory_space<vmem>>, vector<1x1x128xf32>
      %99 = vector.shape_cast %98 : vector<1x1x128xf32> to vector<1x128xf32>
      %100 = arith.mulf %89, %89 : vector<7x128xf32>
      %cst_80 = arith.constant dense<0.000000e+00> : vector<128xf32>
      %101 = vector.multi_reduction <add>, %100, %cst_80 [0] : vector<7x128xf32> to vector<128xf32>
      %102 = vector.shape_cast %101 : vector<128xf32> to vector<1x128xf32>
      %103 = arith.addf %99, %102 : vector<1x128xf32>
      %c0_81 = arith.constant 0 : index
      %c1_82 = arith.constant 1 : index
      %c0_83 = arith.constant 0 : index
      %104 = vector.load %arg5[%c0_81, %c1_82, %c0_83] : memref<1x2x128xf32, #tpu.memory_space<vmem>>, vector<1x1x128xf32>
      %105 = vector.shape_cast %104 : vector<1x1x128xf32> to vector<1x128xf32>
      %106 = vector.shape_cast %103 : vector<1x128xf32> to vector<1x1x128xf32>
      tpu.vector_store %arg5[%c0_81, %c1_82, %c0_83], %106 {strides = array<i32>} : memref<1x2x128xf32, #tpu.memory_space<vmem>>, vector<1x1x128xf32>,
      %107 = arith.truncf %89 : vector<7x128xf32> to vector<7x128xbf16>
      %c0_84 = arith.constant 0 : index
      %108 = arith.index_cast %arg6 : i32 to index
      %c0_85 = arith.constant 0 : index
      %c0_86 = arith.constant 0 : index
      %109 = vector.load %arg4[%c0_84, %108, %c0_85, %c0_86] : memref<1x7x7x128xbf16, #tpu.memory_space<vmem>>, vector<1x1x7x128xbf16>
      %110 = vector.shape_cast %109 : vector<1x1x7x128xbf16> to vector<7x128xbf16>
      %111 = vector.shape_cast %107 : vector<7x128xbf16> to vector<1x1x7x128xbf16>
      tpu.vector_store %arg4[%c0_84, %108, %c0_85, %c0_86], %111 {strides = array<i32>} : memref<1x7x7x128xbf16, #tpu.memory_space<vmem>>, vector<1x1x7x128xbf16>,
    }
    %c7_i32_2 = arith.constant 7 : i32
    return
  }
  func.func @transform_0(%arg0: i32) -> (i32, i32, i32, i32) {
    %c0_i32 = arith.constant 0 : i32
    %c0_i32_0 = arith.constant 0 : i32
    %c0_i32_1 = arith.constant 0 : i32
    %c0_i32_2 = arith.constant 0 : i32
    return %arg0, %c0_i32, %c0_i32_0, %c0_i32_1 : i32, i32, i32, i32
  }
  func.func @transform_1(%arg0: i32) -> (i32, i32, i32) {
    %c0_i32 = arith.constant 0 : i32
    %c0_i32_0 = arith.constant 0 : i32
    %c0_i32_1 = arith.constant 0 : i32
    %c0_i32_2 = arith.constant 0 : i32
    return %c0_i32, %c0_i32_0, %c0_i32_1 : i32, i32, i32
  }
  func.func @transform_2(%arg0: i32) -> (i32, i32) {
    %c0_i32 = arith.constant 0 : i32
    %c0_i32_0 = arith.constant 0 : i32
    %c0_i32_1 = arith.constant 0 : i32
    return %c0_i32, %c0_i32_0 : i32, i32
  }
  func.func @transform_3(%arg0: i32) -> (i32, i32, i32, i32) {
    %c0_i32 = arith.constant 0 : i32
    %c0_i32_0 = arith.constant 0 : i32
    %c0_i32_1 = arith.constant 0 : i32
    %c0_i32_2 = arith.constant 0 : i32
    return %arg0, %c0_i32, %c0_i32_0, %c0_i32_1 : i32, i32, i32, i32
  }
  func.func @transform_4(%arg0: i32) -> (i32, i32, i32) {
    %c0_i32 = arith.constant 0 : i32
    %c0_i32_0 = arith.constant 0 : i32
    %c0_i32_1 = arith.constant 0 : i32
    return %arg0, %c0_i32, %c0_i32_0 : i32, i32, i32
  }
}

module attributes {stable_mosaic.version = 11 : i64} {
  func.func @_bn_apply_kernel(%arg0: i32, %arg1: memref<1x16x16x128xbf16, #tpu.memory_space<vmem>>, %arg2: memref<1x128xf32, #tpu.memory_space<vmem>>, %arg3: memref<1x128xf32, #tpu.memory_space<vmem>>, %arg4: memref<1x16x16x128xf32, #tpu.memory_space<vmem>>) attributes {dimension_semantics = [#tpu.dimension_semantics<parallel>], iteration_bounds = array<i64: 2>, scalar_prefetch = 0 : i64, scratch_operands = 0 : i64, tpu.core_type = #tpu.core_type<tc>, window_params = [{transform_indices = @transform_0, window_bounds = array<i64: 1, 16, 16, 128>}, {pipeline_mode = #tpu.pipeline_mode<synchronous>, transform_indices = @transform_1, window_bounds = array<i64: 1, 128>}, {pipeline_mode = #tpu.pipeline_mode<synchronous>, transform_indices = @transform_2, window_bounds = array<i64: 1, 128>}, {transform_indices = @transform_3, window_bounds = array<i64: 1, 16, 16, 128>}]} {
    %c0 = arith.constant 0 : index
    %c0_0 = arith.constant 0 : index
    %c0_1 = arith.constant 0 : index
    %c0_2 = arith.constant 0 : index
    %0 = vector.load %arg1[%c0, %c0_0, %c0_1, %c0_2] : memref<1x16x16x128xbf16, #tpu.memory_space<vmem>>, vector<1x16x16x128xbf16>
    %1 = arith.extf %0 : vector<1x16x16x128xbf16> to vector<1x16x16x128xf32>
    %c0_3 = arith.constant 0 : index
    %c0_4 = arith.constant 0 : index
    %2 = vector.load %arg2[%c0_3, %c0_4] : memref<1x128xf32, #tpu.memory_space<vmem>>, vector<1x128xf32>
    %3 = vector.shape_cast %2 : vector<1x128xf32> to vector<1x1x1x128xf32>
    %4 = vector.broadcast %3 : vector<1x1x1x128xf32> to vector<1x16x16x128xf32>
    %5 = arith.mulf %1, %4 : vector<1x16x16x128xf32>
    %c0_5 = arith.constant 0 : index
    %c0_6 = arith.constant 0 : index
    %6 = vector.load %arg3[%c0_5, %c0_6] : memref<1x128xf32, #tpu.memory_space<vmem>>, vector<1x128xf32>
    %7 = vector.shape_cast %6 : vector<1x128xf32> to vector<1x1x1x128xf32>
    %8 = vector.broadcast %7 : vector<1x1x1x128xf32> to vector<1x16x16x128xf32>
    %9 = arith.addf %5, %8 : vector<1x16x16x128xf32>
    %c0_7 = arith.constant 0 : index
    %c0_8 = arith.constant 0 : index
    %c0_9 = arith.constant 0 : index
    %c0_10 = arith.constant 0 : index
    %10 = vector.load %arg4[%c0_7, %c0_8, %c0_9, %c0_10] : memref<1x16x16x128xf32, #tpu.memory_space<vmem>>, vector<1x16x16x128xf32>
    tpu.vector_store %arg4[%c0_7, %c0_8, %c0_9, %c0_10], %9 {strides = array<i32>} : memref<1x16x16x128xf32, #tpu.memory_space<vmem>>, vector<1x16x16x128xf32>,
    return
  }
  func.func @transform_0(%arg0: i32) -> (i32, i32, i32, i32) {
    %c0_i32 = arith.constant 0 : i32
    %c0_i32_0 = arith.constant 0 : i32
    %c0_i32_1 = arith.constant 0 : i32
    %c0_i32_2 = arith.constant 0 : i32
    return %arg0, %c0_i32, %c0_i32_0, %c0_i32_1 : i32, i32, i32, i32
  }
  func.func @transform_1(%arg0: i32) -> (i32, i32) {
    %c0_i32 = arith.constant 0 : i32
    %c0_i32_0 = arith.constant 0 : i32
    %c0_i32_1 = arith.constant 0 : i32
    return %c0_i32, %c0_i32_0 : i32, i32
  }
  func.func @transform_2(%arg0: i32) -> (i32, i32) {
    %c0_i32 = arith.constant 0 : i32
    %c0_i32_0 = arith.constant 0 : i32
    %c0_i32_1 = arith.constant 0 : i32
    return %c0_i32, %c0_i32_0 : i32, i32
  }
  func.func @transform_3(%arg0: i32) -> (i32, i32, i32, i32) {
    %c0_i32 = arith.constant 0 : i32
    %c0_i32_0 = arith.constant 0 : i32
    %c0_i32_1 = arith.constant 0 : i32
    %c0_i32_2 = arith.constant 0 : i32
    return %arg0, %c0_i32, %c0_i32_0, %c0_i32_1 : i32, i32, i32, i32
  }
}

module attributes {stable_mosaic.version = 11 : i64} {
  func.func @_conv_relu_stats_kernel(%arg0: i32, %arg1: memref<1x18x18x8xbf16, #tpu.memory_space<vmem>>, %arg2: memref<9x8x128xbf16, #tpu.memory_space<vmem>>, %arg3: memref<1x128xf32, #tpu.memory_space<vmem>>, %arg4: memref<1x16x16x128xbf16, #tpu.memory_space<vmem>>, %arg5: memref<1x2x128xf32, #tpu.memory_space<vmem>>) attributes {dimension_semantics = [#tpu.dimension_semantics<parallel>], iteration_bounds = array<i64: 2>, scalar_prefetch = 0 : i64, scratch_operands = 0 : i64, tpu.core_type = #tpu.core_type<tc>, window_params = [{transform_indices = @transform_0, window_bounds = array<i64: 1, 18, 18, 8>}, {pipeline_mode = #tpu.pipeline_mode<synchronous>, transform_indices = @transform_1, window_bounds = array<i64: 9, 8, 128>}, {pipeline_mode = #tpu.pipeline_mode<synchronous>, transform_indices = @transform_2, window_bounds = array<i64: 1, 128>}, {transform_indices = @transform_3, window_bounds = array<i64: 1, 16, 16, 128>}, {transform_indices = @transform_4, window_bounds = array<i64: 1, 2, 128>}]} {
    %cst = arith.constant 0.000000e+00 : f32
    %0 = vector.broadcast %cst : f32 to vector<1x2x128xf32>
    %c0 = arith.constant 0 : index
    %c0_0 = arith.constant 0 : index
    %c0_1 = arith.constant 0 : index
    %1 = vector.load %arg5[%c0, %c0_0, %c0_1] : memref<1x2x128xf32, #tpu.memory_space<vmem>>, vector<1x2x128xf32>
    tpu.vector_store %arg5[%c0, %c0_0, %c0_1], %0 {strides = array<i32>} : memref<1x2x128xf32, #tpu.memory_space<vmem>>, vector<1x2x128xf32>,
    %c0_i32 = arith.constant 0 : i32
    %c16_i32 = arith.constant 16 : i32
    %2 = arith.addi %c0_i32, %c16_i32 : i32
    %c1_i32 = arith.constant 1 : i32
    scf.for %arg6 = %c0_i32 to %2 step %c1_i32  : i32 {
      %cst_3 = arith.constant 0.000000e+00 : f32
      %3 = vector.broadcast %cst_3 : f32 to vector<16x128xf32>
      %c0_i32_4 = arith.constant 0 : i32
      %4 = arith.addi %arg6, %c0_i32_4 : i32
      %c0_5 = arith.constant 0 : index
      %5 = arith.index_cast %4 : i32 to index
      %c0_6 = arith.constant 0 : index
      %c0_7 = arith.constant 0 : index
      %6 = vector.load %arg1[%c0_5, %5, %c0_6, %c0_7] : memref<1x18x18x8xbf16, #tpu.memory_space<vmem>>, vector<1x1x18x8xbf16>
      %7 = vector.shape_cast %6 : vector<1x1x18x8xbf16> to vector<18x8xbf16>
      %8 = vector.extract_strided_slice %7 {offsets = [0, 0], sizes = [16, 8], strides = [1, 1]} : vector<18x8xbf16> to vector<16x8xbf16>
      %c0_8 = arith.constant 0 : index
      %c0_9 = arith.constant 0 : index
      %c0_10 = arith.constant 0 : index
      %9 = vector.load %arg2[%c0_8, %c0_9, %c0_10] : memref<9x8x128xbf16, #tpu.memory_space<vmem>>, vector<1x8x128xbf16>
      %10 = vector.shape_cast %9 : vector<1x8x128xbf16> to vector<8x128xbf16>
      %cst_11 = arith.constant dense<0.000000e+00> : vector<16x128xf32>
      %11 = tpu.matmul %8, %10, %cst_11 {dimension_numbers = #tpu.dot_dimension_numbers<[1], [0], [0], [1], [0, 0, 1, 1], [], []>} : vector<16x8xbf16>, vector<8x128xbf16>, vector<16x128xf32> -> vector<16x128xf32>
      %12 = arith.addf %3, %11 : vector<16x128xf32>
      %c0_i32_12 = arith.constant 0 : i32
      %13 = arith.addi %arg6, %c0_i32_12 : i32
      %c0_13 = arith.constant 0 : index
      %14 = arith.index_cast %13 : i32 to index
      %c0_14 = arith.constant 0 : index
      %c0_15 = arith.constant 0 : index
      %15 = vector.load %arg1[%c0_13, %14, %c0_14, %c0_15] : memref<1x18x18x8xbf16, #tpu.memory_space<vmem>>, vector<1x1x18x8xbf16>
      %16 = vector.shape_cast %15 : vector<1x1x18x8xbf16> to vector<18x8xbf16>
      %17 = vector.extract_strided_slice %16 {offsets = [1, 0], sizes = [16, 8], strides = [1, 1]} : vector<18x8xbf16> to vector<16x8xbf16>
      %c1 = arith.constant 1 : index
      %c0_16 = arith.constant 0 : index
      %c0_17 = arith.constant 0 : index
      %18 = vector.load %arg2[%c1, %c0_16, %c0_17] : memref<9x8x128xbf16, #tpu.memory_space<vmem>>, vector<1x8x128xbf16>
      %19 = vector.shape_cast %18 : vector<1x8x128xbf16> to vector<8x128xbf16>
      %cst_18 = arith.constant dense<0.000000e+00> : vector<16x128xf32>
      %20 = tpu.matmul %17, %19, %cst_18 {dimension_numbers = #tpu.dot_dimension_numbers<[1], [0], [0], [1], [0, 0, 1, 1], [], []>} : vector<16x8xbf16>, vector<8x128xbf16>, vector<16x128xf32> -> vector<16x128xf32>
      %21 = arith.addf %12, %20 : vector<16x128xf32>
      %c0_i32_19 = arith.constant 0 : i32
      %22 = arith.addi %arg6, %c0_i32_19 : i32
      %c0_20 = arith.constant 0 : index
      %23 = arith.index_cast %22 : i32 to index
      %c0_21 = arith.constant 0 : index
      %c0_22 = arith.constant 0 : index
      %24 = vector.load %arg1[%c0_20, %23, %c0_21, %c0_22] : memref<1x18x18x8xbf16, #tpu.memory_space<vmem>>, vector<1x1x18x8xbf16>
      %25 = vector.shape_cast %24 : vector<1x1x18x8xbf16> to vector<18x8xbf16>
      %26 = vector.extract_strided_slice %25 {offsets = [2, 0], sizes = [16, 8], strides = [1, 1]} : vector<18x8xbf16> to vector<16x8xbf16>
      %c2 = arith.constant 2 : index
      %c0_23 = arith.constant 0 : index
      %c0_24 = arith.constant 0 : index
      %27 = vector.load %arg2[%c2, %c0_23, %c0_24] : memref<9x8x128xbf16, #tpu.memory_space<vmem>>, vector<1x8x128xbf16>
      %28 = vector.shape_cast %27 : vector<1x8x128xbf16> to vector<8x128xbf16>
      %cst_25 = arith.constant dense<0.000000e+00> : vector<16x128xf32>
      %29 = tpu.matmul %26, %28, %cst_25 {dimension_numbers = #tpu.dot_dimension_numbers<[1], [0], [0], [1], [0, 0, 1, 1], [], []>} : vector<16x8xbf16>, vector<8x128xbf16>, vector<16x128xf32> -> vector<16x128xf32>
      %30 = arith.addf %21, %29 : vector<16x128xf32>
      %c1_i32_26 = arith.constant 1 : i32
      %31 = arith.addi %arg6, %c1_i32_26 : i32
      %c0_27 = arith.constant 0 : index
      %32 = arith.index_cast %31 : i32 to index
      %c0_28 = arith.constant 0 : index
      %c0_29 = arith.constant 0 : index
      %33 = vector.load %arg1[%c0_27, %32, %c0_28, %c0_29] : memref<1x18x18x8xbf16, #tpu.memory_space<vmem>>, vector<1x1x18x8xbf16>
      %34 = vector.shape_cast %33 : vector<1x1x18x8xbf16> to vector<18x8xbf16>
      %35 = vector.extract_strided_slice %34 {offsets = [0, 0], sizes = [16, 8], strides = [1, 1]} : vector<18x8xbf16> to vector<16x8xbf16>
      %c3 = arith.constant 3 : index
      %c0_30 = arith.constant 0 : index
      %c0_31 = arith.constant 0 : index
      %36 = vector.load %arg2[%c3, %c0_30, %c0_31] : memref<9x8x128xbf16, #tpu.memory_space<vmem>>, vector<1x8x128xbf16>
      %37 = vector.shape_cast %36 : vector<1x8x128xbf16> to vector<8x128xbf16>
      %cst_32 = arith.constant dense<0.000000e+00> : vector<16x128xf32>
      %38 = tpu.matmul %35, %37, %cst_32 {dimension_numbers = #tpu.dot_dimension_numbers<[1], [0], [0], [1], [0, 0, 1, 1], [], []>} : vector<16x8xbf16>, vector<8x128xbf16>, vector<16x128xf32> -> vector<16x128xf32>
      %39 = arith.addf %30, %38 : vector<16x128xf32>
      %c1_i32_33 = arith.constant 1 : i32
      %40 = arith.addi %arg6, %c1_i32_33 : i32
      %c0_34 = arith.constant 0 : index
      %41 = arith.index_cast %40 : i32 to index
      %c0_35 = arith.constant 0 : index
      %c0_36 = arith.constant 0 : index
      %42 = vector.load %arg1[%c0_34, %41, %c0_35, %c0_36] : memref<1x18x18x8xbf16, #tpu.memory_space<vmem>>, vector<1x1x18x8xbf16>
      %43 = vector.shape_cast %42 : vector<1x1x18x8xbf16> to vector<18x8xbf16>
      %44 = vector.extract_strided_slice %43 {offsets = [1, 0], sizes = [16, 8], strides = [1, 1]} : vector<18x8xbf16> to vector<16x8xbf16>
      %c4 = arith.constant 4 : index
      %c0_37 = arith.constant 0 : index
      %c0_38 = arith.constant 0 : index
      %45 = vector.load %arg2[%c4, %c0_37, %c0_38] : memref<9x8x128xbf16, #tpu.memory_space<vmem>>, vector<1x8x128xbf16>
      %46 = vector.shape_cast %45 : vector<1x8x128xbf16> to vector<8x128xbf16>
      %cst_39 = arith.constant dense<0.000000e+00> : vector<16x128xf32>
      %47 = tpu.matmul %44, %46, %cst_39 {dimension_numbers = #tpu.dot_dimension_numbers<[1], [0], [0], [1], [0, 0, 1, 1], [], []>} : vector<16x8xbf16>, vector<8x128xbf16>, vector<16x128xf32> -> vector<16x128xf32>
      %48 = arith.addf %39, %47 : vector<16x128xf32>
      %c1_i32_40 = arith.constant 1 : i32
      %49 = arith.addi %arg6, %c1_i32_40 : i32
      %c0_41 = arith.constant 0 : index
      %50 = arith.index_cast %49 : i32 to index
      %c0_42 = arith.constant 0 : index
      %c0_43 = arith.constant 0 : index
      %51 = vector.load %arg1[%c0_41, %50, %c0_42, %c0_43] : memref<1x18x18x8xbf16, #tpu.memory_space<vmem>>, vector<1x1x18x8xbf16>
      %52 = vector.shape_cast %51 : vector<1x1x18x8xbf16> to vector<18x8xbf16>
      %53 = vector.extract_strided_slice %52 {offsets = [2, 0], sizes = [16, 8], strides = [1, 1]} : vector<18x8xbf16> to vector<16x8xbf16>
      %c5 = arith.constant 5 : index
      %c0_44 = arith.constant 0 : index
      %c0_45 = arith.constant 0 : index
      %54 = vector.load %arg2[%c5, %c0_44, %c0_45] : memref<9x8x128xbf16, #tpu.memory_space<vmem>>, vector<1x8x128xbf16>
      %55 = vector.shape_cast %54 : vector<1x8x128xbf16> to vector<8x128xbf16>
      %cst_46 = arith.constant dense<0.000000e+00> : vector<16x128xf32>
      %56 = tpu.matmul %53, %55, %cst_46 {dimension_numbers = #tpu.dot_dimension_numbers<[1], [0], [0], [1], [0, 0, 1, 1], [], []>} : vector<16x8xbf16>, vector<8x128xbf16>, vector<16x128xf32> -> vector<16x128xf32>
      %57 = arith.addf %48, %56 : vector<16x128xf32>
      %c2_i32 = arith.constant 2 : i32
      %58 = arith.addi %arg6, %c2_i32 : i32
      %c0_47 = arith.constant 0 : index
      %59 = arith.index_cast %58 : i32 to index
      %c0_48 = arith.constant 0 : index
      %c0_49 = arith.constant 0 : index
      %60 = vector.load %arg1[%c0_47, %59, %c0_48, %c0_49] : memref<1x18x18x8xbf16, #tpu.memory_space<vmem>>, vector<1x1x18x8xbf16>
      %61 = vector.shape_cast %60 : vector<1x1x18x8xbf16> to vector<18x8xbf16>
      %62 = vector.extract_strided_slice %61 {offsets = [0, 0], sizes = [16, 8], strides = [1, 1]} : vector<18x8xbf16> to vector<16x8xbf16>
      %c6 = arith.constant 6 : index
      %c0_50 = arith.constant 0 : index
      %c0_51 = arith.constant 0 : index
      %63 = vector.load %arg2[%c6, %c0_50, %c0_51] : memref<9x8x128xbf16, #tpu.memory_space<vmem>>, vector<1x8x128xbf16>
      %64 = vector.shape_cast %63 : vector<1x8x128xbf16> to vector<8x128xbf16>
      %cst_52 = arith.constant dense<0.000000e+00> : vector<16x128xf32>
      %65 = tpu.matmul %62, %64, %cst_52 {dimension_numbers = #tpu.dot_dimension_numbers<[1], [0], [0], [1], [0, 0, 1, 1], [], []>} : vector<16x8xbf16>, vector<8x128xbf16>, vector<16x128xf32> -> vector<16x128xf32>
      %66 = arith.addf %57, %65 : vector<16x128xf32>
      %c2_i32_53 = arith.constant 2 : i32
      %67 = arith.addi %arg6, %c2_i32_53 : i32
      %c0_54 = arith.constant 0 : index
      %68 = arith.index_cast %67 : i32 to index
      %c0_55 = arith.constant 0 : index
      %c0_56 = arith.constant 0 : index
      %69 = vector.load %arg1[%c0_54, %68, %c0_55, %c0_56] : memref<1x18x18x8xbf16, #tpu.memory_space<vmem>>, vector<1x1x18x8xbf16>
      %70 = vector.shape_cast %69 : vector<1x1x18x8xbf16> to vector<18x8xbf16>
      %71 = vector.extract_strided_slice %70 {offsets = [1, 0], sizes = [16, 8], strides = [1, 1]} : vector<18x8xbf16> to vector<16x8xbf16>
      %c7 = arith.constant 7 : index
      %c0_57 = arith.constant 0 : index
      %c0_58 = arith.constant 0 : index
      %72 = vector.load %arg2[%c7, %c0_57, %c0_58] : memref<9x8x128xbf16, #tpu.memory_space<vmem>>, vector<1x8x128xbf16>
      %73 = vector.shape_cast %72 : vector<1x8x128xbf16> to vector<8x128xbf16>
      %cst_59 = arith.constant dense<0.000000e+00> : vector<16x128xf32>
      %74 = tpu.matmul %71, %73, %cst_59 {dimension_numbers = #tpu.dot_dimension_numbers<[1], [0], [0], [1], [0, 0, 1, 1], [], []>} : vector<16x8xbf16>, vector<8x128xbf16>, vector<16x128xf32> -> vector<16x128xf32>
      %75 = arith.addf %66, %74 : vector<16x128xf32>
      %c2_i32_60 = arith.constant 2 : i32
      %76 = arith.addi %arg6, %c2_i32_60 : i32
      %c0_61 = arith.constant 0 : index
      %77 = arith.index_cast %76 : i32 to index
      %c0_62 = arith.constant 0 : index
      %c0_63 = arith.constant 0 : index
      %78 = vector.load %arg1[%c0_61, %77, %c0_62, %c0_63] : memref<1x18x18x8xbf16, #tpu.memory_space<vmem>>, vector<1x1x18x8xbf16>
      %79 = vector.shape_cast %78 : vector<1x1x18x8xbf16> to vector<18x8xbf16>
      %80 = vector.extract_strided_slice %79 {offsets = [2, 0], sizes = [16, 8], strides = [1, 1]} : vector<18x8xbf16> to vector<16x8xbf16>
      %c8 = arith.constant 8 : index
      %c0_64 = arith.constant 0 : index
      %c0_65 = arith.constant 0 : index
      %81 = vector.load %arg2[%c8, %c0_64, %c0_65] : memref<9x8x128xbf16, #tpu.memory_space<vmem>>, vector<1x8x128xbf16>
      %82 = vector.shape_cast %81 : vector<1x8x128xbf16> to vector<8x128xbf16>
      %cst_66 = arith.constant dense<0.000000e+00> : vector<16x128xf32>
      %83 = tpu.matmul %80, %82, %cst_66 {dimension_numbers = #tpu.dot_dimension_numbers<[1], [0], [0], [1], [0, 0, 1, 1], [], []>} : vector<16x8xbf16>, vector<8x128xbf16>, vector<16x128xf32> -> vector<16x128xf32>
      %84 = arith.addf %75, %83 : vector<16x128xf32>
      %c0_67 = arith.constant 0 : index
      %c0_68 = arith.constant 0 : index
      %85 = vector.load %arg3[%c0_67, %c0_68] : memref<1x128xf32, #tpu.memory_space<vmem>>, vector<1x128xf32>
      %86 = vector.broadcast %85 : vector<1x128xf32> to vector<16x128xf32>
      %87 = arith.addf %84, %86 : vector<16x128xf32>
      %cst_69 = arith.constant 0.000000e+00 : f32
      %88 = vector.broadcast %cst_69 : f32 to vector<16x128xf32>
      %89 = arith.maximumf %87, %88 : vector<16x128xf32>
      %c0_70 = arith.constant 0 : index
      %c0_71 = arith.constant 0 : index
      %c0_72 = arith.constant 0 : index
      %90 = vector.load %arg5[%c0_70, %c0_71, %c0_72] : memref<1x2x128xf32, #tpu.memory_space<vmem>>, vector<1x1x128xf32>
      %91 = vector.shape_cast %90 : vector<1x1x128xf32> to vector<1x128xf32>
      %cst_73 = arith.constant dense<0.000000e+00> : vector<128xf32>
      %92 = vector.multi_reduction <add>, %89, %cst_73 [0] : vector<16x128xf32> to vector<128xf32>
      %93 = vector.shape_cast %92 : vector<128xf32> to vector<1x128xf32>
      %94 = arith.addf %91, %93 : vector<1x128xf32>
      %c0_74 = arith.constant 0 : index
      %c0_75 = arith.constant 0 : index
      %c0_76 = arith.constant 0 : index
      %95 = vector.load %arg5[%c0_74, %c0_75, %c0_76] : memref<1x2x128xf32, #tpu.memory_space<vmem>>, vector<1x1x128xf32>
      %96 = vector.shape_cast %95 : vector<1x1x128xf32> to vector<1x128xf32>
      %97 = vector.shape_cast %94 : vector<1x128xf32> to vector<1x1x128xf32>
      tpu.vector_store %arg5[%c0_74, %c0_75, %c0_76], %97 {strides = array<i32>} : memref<1x2x128xf32, #tpu.memory_space<vmem>>, vector<1x1x128xf32>,
      %c0_77 = arith.constant 0 : index
      %c1_78 = arith.constant 1 : index
      %c0_79 = arith.constant 0 : index
      %98 = vector.load %arg5[%c0_77, %c1_78, %c0_79] : memref<1x2x128xf32, #tpu.memory_space<vmem>>, vector<1x1x128xf32>
      %99 = vector.shape_cast %98 : vector<1x1x128xf32> to vector<1x128xf32>
      %100 = arith.mulf %89, %89 : vector<16x128xf32>
      %cst_80 = arith.constant dense<0.000000e+00> : vector<128xf32>
      %101 = vector.multi_reduction <add>, %100, %cst_80 [0] : vector<16x128xf32> to vector<128xf32>
      %102 = vector.shape_cast %101 : vector<128xf32> to vector<1x128xf32>
      %103 = arith.addf %99, %102 : vector<1x128xf32>
      %c0_81 = arith.constant 0 : index
      %c1_82 = arith.constant 1 : index
      %c0_83 = arith.constant 0 : index
      %104 = vector.load %arg5[%c0_81, %c1_82, %c0_83] : memref<1x2x128xf32, #tpu.memory_space<vmem>>, vector<1x1x128xf32>
      %105 = vector.shape_cast %104 : vector<1x1x128xf32> to vector<1x128xf32>
      %106 = vector.shape_cast %103 : vector<1x128xf32> to vector<1x1x128xf32>
      tpu.vector_store %arg5[%c0_81, %c1_82, %c0_83], %106 {strides = array<i32>} : memref<1x2x128xf32, #tpu.memory_space<vmem>>, vector<1x1x128xf32>,
      %107 = arith.truncf %89 : vector<16x128xf32> to vector<16x128xbf16>
      %c0_84 = arith.constant 0 : index
      %108 = arith.index_cast %arg6 : i32 to index
      %c0_85 = arith.constant 0 : index
      %c0_86 = arith.constant 0 : index
      %109 = vector.load %arg4[%c0_84, %108, %c0_85, %c0_86] : memref<1x16x16x128xbf16, #tpu.memory_space<vmem>>, vector<1x1x16x128xbf16>
      %110 = vector.shape_cast %109 : vector<1x1x16x128xbf16> to vector<16x128xbf16>
      %111 = vector.shape_cast %107 : vector<16x128xbf16> to vector<1x1x16x128xbf16>
      tpu.vector_store %arg4[%c0_84, %108, %c0_85, %c0_86], %111 {strides = array<i32>} : memref<1x16x16x128xbf16, #tpu.memory_space<vmem>>, vector<1x1x16x128xbf16>,
    }
    %c16_i32_2 = arith.constant 16 : i32
    return
  }
  func.func @transform_0(%arg0: i32) -> (i32, i32, i32, i32) {
    %c0_i32 = arith.constant 0 : i32
    %c0_i32_0 = arith.constant 0 : i32
    %c0_i32_1 = arith.constant 0 : i32
    %c0_i32_2 = arith.constant 0 : i32
    return %arg0, %c0_i32, %c0_i32_0, %c0_i32_1 : i32, i32, i32, i32
  }
  func.func @transform_1(%arg0: i32) -> (i32, i32, i32) {
    %c0_i32 = arith.constant 0 : i32
    %c0_i32_0 = arith.constant 0 : i32
    %c0_i32_1 = arith.constant 0 : i32
    %c0_i32_2 = arith.constant 0 : i32
    return %c0_i32, %c0_i32_0, %c0_i32_1 : i32, i32, i32
  }
  func.func @transform_2(%arg0: i32) -> (i32, i32) {
    %c0_i32 = arith.constant 0 : i32
    %c0_i32_0 = arith.constant 0 : i32
    %c0_i32_1 = arith.constant 0 : i32
    return %c0_i32, %c0_i32_0 : i32, i32
  }
  func.func @transform_3(%arg0: i32) -> (i32, i32, i32, i32) {
    %c0_i32 = arith.constant 0 : i32
    %c0_i32_0 = arith.constant 0 : i32
    %c0_i32_1 = arith.constant 0 : i32
    %c0_i32_2 = arith.constant 0 : i32
    return %arg0, %c0_i32, %c0_i32_0, %c0_i32_1 : i32, i32, i32, i32
  }
  func.func @transform_4(%arg0: i32) -> (i32, i32, i32) {
    %c0_i32 = arith.constant 0 : i32
    %c0_i32_0 = arith.constant 0 : i32
    %c0_i32_1 = arith.constant 0 : i32
    return %arg0, %c0_i32, %c0_i32_0 : i32, i32, i32
  }
}

</mosaic_0001>

<llo_original>
// kernel: _lambda_.6
$region0: #{_lambda_.6}
  #allocation0 [shape = 'u32[]', space=smem, size = 0x4, offset = 0x4, fixed_abs, tag = 'smem constant byte address 0x4 - core index']
  #allocation1 [shape = 'u32[144,128]{1,0:T(1,128)}', space=vmem, size = 0x12000, scoped, tag = 'internal scratch']
  %s0 = inlined_call_operand.vmem [shape: bf16[8,9,9,8], index: 0, kind: input, shape index: {}]
  %s1 = inlined_call_operand.vmem [shape: bf16[9,8,128], index: 1, kind: input, shape index: {}]
  %s2 = inlined_call_operand.vmem [shape: f32[1,128], index: 2, kind: input, shape index: {}]
  %s3 = inlined_call_operand.vmem [shape: bf16[2,8,8,128], index: 3, kind: output, shape index: {0}]
  %s4 = inlined_call_operand.vmem [shape: f32[2,2,128], index: 4, kind: output, shape index: {1}]
  %5 = xla_tuple %s3, %s4
  %s6 = sld [smem:[#allocation0]]
  $region60: #{_lambda_.6} parent=0
    _
  %s8 = ssub.s32 1, %s6
  %s9 = scalar_select 0, %s8, %s6
  loop: start=0, step=1, limit=4
  $region2: #{_lambda_.6} parent=0 // loop_pre_header
    _
  $region3: #{_lambda_.6} parent=0 // loop_header
    %s11 = sphi 0, %s15
    %p12 = scmp.ge.s32.totalorder %s11, 4
    %s21 = sphi 0, %s23
    %s24 = sphi 0, %s21
    %s25 = sphi 0, %s24
    %s41 = sphi 0, %s25
    %s45 = sphi 0, %s45
    %s47 = sphi 0, %s45
    %s48 = sphi 0, %s47
    %s62 = sphi 0, %s48
    %s66 = sphi 0, %s66
    %s68 = sphi 0, %s66
    %s69 = sphi 0, %s68
    %s83 = sphi 0, %s69
    %s89 = sphi 0, %s91
    %s92 = sphi 0, %s89
    %s93 = sphi 0, %s92
    %s109 = sphi 0, %s93
    %s115 = sphi 0, %s117
    %s118 = sphi 0, %s115
    %s119 = sphi 0, %s118
    %s135 = sphi 0, %s119
  $region4: #{_lambda_.6} parent=0 // loop_header_branch
    %14 = sbr.rel (%p12) target = $region8
  $region5: #{_lambda_.6} parent=0 // loop_body
    %s16 = ssub.s32 %s11, 1
    %s17 = ssub.s32 %s11, 2
    %s18 = sadd.s32 %s11, 1
    %s19 = ssub.s32 %s11, %s18
    %p20 = scmp.eq.s32.totalorder %s19, 0
    %s22 = sadd.s32 %s21, 1
    %s23 = scalar_select %p20, %s21, %s22
    %p26 = pneg %p20
    %p27 = scmp.eq.s32.totalorder %s11, 1
    %p28 = por %p26, %p27
    %p29 = scmp.ne.s32.totalorder %s21, %s24
    %p30 = scmp.eq.s32.totalorder %s11, 0
    %p31 = por %p29, %p30
    %p32 = scmp.ne.s32.totalorder %s21, %s24
    %p33 = scmp.eq.s32.totalorder %s16, 1
    %p34 = por %p32, %p33
    %p35 = scmp.ne.s32.totalorder %s24, %s25
    %p36 = scmp.eq.s32.totalorder %s16, 0
    %p37 = por %p35, %p36
    %p38 = scmp.ne.s32.totalorder %s24, %s25
    %p39 = scmp.eq.s32.totalorder %s17, 1
    %p40 = por %p38, %p39
    %p42 = scmp.ne.s32.totalorder %s25, %s41
    %p43 = scmp.eq.s32.totalorder %s17, 0
    %p44 = por %p42, %p43
    %s46 = sadd.s32 %s45, 1
    %p49 = scmp.eq.s32.totalorder %s11, 1
    %p50 = scmp.ne.s32.totalorder %s45, %s47
    %p51 = scmp.eq.s32.totalorder %s11, 0
    %p52 = por %p50, %p51
    %p53 = scmp.ne.s32.totalorder %s45, %s47
    %p54 = scmp.eq.s32.totalorder %s16, 1
    %p55 = por %p53, %p54
    %p56 = scmp.ne.s32.totalorder %s47, %s48
    %p57 = scmp.eq.s32.totalorder %s16, 0
    %p58 = por %p56, %p57
    %p59 = scmp.ne.s32.totalorder %s47, %s48
    %p60 = scmp.eq.s32.totalorder %s17, 1
    %p61 = por %p59, %p60
    %p63 = scmp.ne.s32.totalorder %s48, %s62
    %p64 = scmp.eq.s32.totalorder %s17, 0
    %p65 = por %p63, %p64
    %s67 = sadd.s32 %s66, 1
    %p70 = scmp.eq.s32.totalorder %s11, 1
    %p71 = scmp.ne.s32.totalorder %s66, %s68
    %p72 = scmp.eq.s32.totalorder %s11, 0
    %p73 = por %p71, %p72
    %p74 = scmp.ne.s32.totalorder %s66, %s68
    %p75 = scmp.eq.s32.totalorder %s16, 1
    %p76 = por %p74, %p75
    %p77 = scmp.ne.s32.totalorder %s68, %s69
    %p78 = scmp.eq.s32.totalorder %s16, 0
    %p79 = por %p77, %p78
    %p80 = scmp.ne.s32.totalorder %s68, %s69
    %p81 = scmp.eq.s32.totalorder %s17, 1
    %p82 = por %p80, %p81
    %p84 = scmp.ne.s32.totalorder %s69, %s83
    %p85 = scmp.eq.s32.totalorder %s17, 0
    %p86 = por %p84, %p85
    %s87 = ssub.s32 %s11, %s18
    %p88 = scmp.eq.s32.totalorder %s87, 0
    %s90 = sadd.s32 %s89, 1
    %s91 = scalar_select %p88, %s89, %s90
    %p94 = pneg %p88
    %p95 = scmp.eq.s32.totalorder %s11, 1
    %p96 = por %p94, %p95
    %p97 = scmp.ne.s32.totalorder %s89, %s92
    %p98 = scmp.eq.s32.totalorder %s11, 0
    %p99 = por %p97, %p98
    %p100 = scmp.ne.s32.totalorder %s89, %s92
    %p101 = scmp.eq.s32.totalorder %s16, 1
    %p102 = por %p100, %p101
    %p103 = scmp.ne.s32.totalorder %s92, %s93
    %p104 = scmp.eq.s32.totalorder %s16, 0
    %p105 = por %p103, %p104
    %p106 = scmp.ne.s32.totalorder %s92, %s93
    %p107 = scmp.eq.s32.totalorder %s17, 1
    %p108 = por %p106, %p107
    %p110 = scmp.ne.s32.totalorder %s93, %s109
    %p111 = scmp.eq.s32.totalorder %s17, 0
    %p112 = por %p110, %p111
    %s113 = ssub.s32 %s11, %s18
    %p114 = scmp.eq.s32.totalorder %s113, 0
    %s116 = sadd.s32 %s115, 1
    %s117 = scalar_select %p114, %s115, %s116
    %p120 = pneg %p114
    %p121 = scmp.eq.s32.totalorder %s11, 1
    %p122 = por %p120, %p121
    %p123 = scmp.ne.s32.totalorder %s115, %s118
    %p124 = scmp.eq.s32.totalorder %s11, 0
    %p125 = por %p123, %p124
    %p126 = scmp.ne.s32.totalorder %s115, %s118
    %p127 = scmp.eq.s32.totalorder %s16, 1
    %p128 = por %p126, %p127
    %p129 = scmp.ne.s32.totalorder %s118, %s119
    %p130 = scmp.eq.s32.totalorder %s16, 0
    %p131 = por %p129, %p130
    %p132 = scmp.ne.s32.totalorder %s118, %s119
    %p133 = scmp.eq.s32.totalorder %s17, 1
    %p134 = por %p132, %p133
    %p136 = scmp.ne.s32.totalorder %s119, %s135
    %p137 = scmp.eq.s32.totalorder %s17, 0
    %p138 = por %p136, %p137
    %p139 = scmp.le.s32.totalorder 1, %s11
    %p140 = scmp.lt.s32.totalorder %s11, 3
    %p141 = pnand %p139, %p140
    %p142 = pneg %p141
    // Predicated region
    $region9: #{_lambda_.6} parent=5 // pred_check
      _
    $region10: #{_lambda_.6} parent=5 // pred_check_branch
      %144 = sbr.rel (%p141) target = $region12
    $region11: #{_lambda_.6} parent=5 // pred_region
      %s145 = ssub.s32 %s11, 1
      // Predicated region
      $region13: #{_lambda_.6} parent=11 // pred_check
        %p146 = pneg %p58
      $region14: #{_lambda_.6} parent=11 // pred_check_branch
        %148 = sbr.rel (%p146) target = $region16
      $region15: #{_lambda_.6} parent=11 // pred_region
        _
      $region16: #{_lambda_.6} parent=11 // pred_fallthru
        _
      // Predicated region
      $region17: #{_lambda_.6} parent=11 // pred_check
        %p149 = pneg %p79
      $region18: #{_lambda_.6} parent=11 // pred_check_branch
        %151 = sbr.rel (%p149) target = $region20
      $region19: #{_lambda_.6} parent=11 // pred_region
        _
      $region20: #{_lambda_.6} parent=11 // pred_fallthru
        _
    $region12: #{_lambda_.6} parent=5 // pred_fallthru
      _
    %p152 = scmp.lt.s32.totalorder %s11, 2
    // Predicated region
    $region21: #{_lambda_.6} parent=5 // pred_check
      %p153 = pneg %p152
    $region22: #{_lambda_.6} parent=5 // pred_check_branch
      %155 = sbr.rel (%p153) target = $region24
    $region23: #{_lambda_.6} parent=5 // pred_region
      // Predicated region
      $region25: #{_lambda_.6} parent=23 // pred_check
        %p156 = pneg %p31
      $region26: #{_lambda_.6} parent=23 // pred_check_branch
        %158 = sbr.rel (%p156) target = $region28
      $region27: #{_lambda_.6} parent=23 // pred_region
        %s159 = smul.u32 4, %s11
        %p160 = scmp.lt.s32.totalorder %s159, 7
        %s161 = scalar_select %p160, %s159, 7
        %s162 = smul.addr %s161, 18
        %s163 = smul.addr %s162, 4
        %s164 = scalar_lea.vmem %s0, %s163
        %s165 = smul.u32 4, %s11
      $region28: #{_lambda_.6} parent=23 // pred_fallthru
        _
    $region24: #{_lambda_.6} parent=5 // pred_fallthru
      _
    %p166 = scmp.le.s32.totalorder 1, %s11
    %p167 = scmp.lt.s32.totalorder %s11, 3
    %p168 = pnand %p166, %p167
    %p169 = pneg %p168
    // Predicated region
    $region29: #{_lambda_.6} parent=5 // pred_check
      _
    $region30: #{_lambda_.6} parent=5 // pred_check_branch
      %171 = sbr.rel (%p168) target = $region32
    $region31: #{_lambda_.6} parent=5 // pred_region
      %s172 = ssub.s32 %s11, 1
      %s173 = smul.u32 4, %s16
      %p174 = scmp.lt.s32.totalorder %s173, 7
      %s175 = scalar_select %p174, %s173, 7
      %s176 = smul.addr %s175, 18
      %s177 = smul.addr %s176, 4
      %s178 = scalar_lea.vmem %s0, %s177
      %p179 = pneg %p37
      %p180 = pneg %p34
      %p181 = pneg %p58
      %p182 = pneg %p55
      %p183 = pneg %p79
      %p184 = pneg %p76
      %p185 = pneg %p105
      %p186 = pneg %p102
      %p187 = scmp.lt.s32.totalorder %s16, 1
      %s188 = scalar_select %p187, %s16, 1
      %s189 = smul.addr %s188, 8
      %s190 = smul.addr %s189, 4
      %s191 = scalar_lea.vmem %s3, %s190
      %p192 = pneg %p131
      %p193 = pneg %p128
      %p194 = scmp.lt.s32.totalorder %s16, 1
      %s195 = scalar_select %p194, %s16, 1
      %s196 = smul.addr %s195, 2
      %s197 = scalar_lea.vmem %s4, %s196
      %s198 = smul.u32 4, %s16
      %p199 = scmp.lt.s32.totalorder %s198, 7
      %s200 = scalar_select %p199, %s198, 7
      %s201 = smul.addr %s200, 18
      %s202 = smul.addr %s201, 4
      %s203 = scalar_lea.vmem %s0, %s202
      %s204 = smul.u32 4, %s16
      %p205 = scmp.lt.s32.totalorder %s16, 1
      %s206 = scalar_select %p205, %s16, 1
      %s207 = smul.addr %s206, 8
      %s208 = smul.addr %s207, 4
      %s209 = scalar_lea.vmem %s3, %s208
      %p210 = scmp.lt.s32.totalorder %s16, 1
      %s211 = scalar_select %p210, %s16, 1
      %s212 = smul.addr %s211, 2
      %s213 = scalar_lea.vmem %s4, %s212
      %215 = vst [vmem:[%s213] sm:$0x3] 0.0
      loop: start=0, step=1, limit=8
      $region33: #{_lambda_.6} parent=31 // loop_pre_header
        _
      $region34: #{_lambda_.6} parent=31 // loop_header
        %s217 = sphi 0, %s221
        %p218 = scmp.ge.s32.totalorder %s217, 8
      $region35: #{_lambda_.6} parent=31 // loop_header_branch
        %220 = sbr.rel (%p218) target = $region39
      $region36: #{_lambda_.6} parent=31 // loop_body
        %s222 = smul.u32 %s217, 2
        %s223 = smul.addr %s222, 4
        %s224 = scalar_lea.vmem %s203, %s223
        %v225 = vld [vmem:[%s224] sm:$0xf]
        %v226 = vld [vmem:[%s224 + $0x4] sm:$0x1]
        %v227 = vld [vmem:[%s1] sm:$0xf]
        %s228 = sadd.s32 %s222, 18
        %s229 = smul.addr %s228, 4
        %s230 = scalar_lea.vmem %s203, %s229
        %v231 = vld [vmem:[%s230] sm:$0xf]
        %s232 = scalar_lea.vmem %s1, 4
        %v233 = vld [vmem:[%s232] sm:$0xf]
        %vm234 = vcmask 64512
        %v236 = vsel %vm234, %v231, 0
        %vm238 = vcmask 1043456
        %v240 = vsel %vm238, %v233, 0
        %242 = vmatprep.subr.bf16.mxu0 0
        %243 = vmatpush1.bf16.msra.mxu0 0
        %244 = vmatprep.subr.bf16.mxu0 0
        %245 = vmatpush1.bf16.msra.mxu0 0
        %246 = vmatprep.subr.bf16.mxu0 0
        %247 = vmatpush1.bf16.msra.mxu0 0
        %248 = vmatprep.subr.bf16.mxu0 0
        %249 = vmatpush1.bf16.msra.mxu0 0
        %250 = vmatprep.subr.bf16.mxu0 0
        %251 = vmatpush1.bf16.msra.mxu0 0
        %252 = vmatprep.subr.bf16.mxu0 0
        %253 = vmatpush1.bf16.msra.mxu0 0
        %254 = vmatprep.subr.bf16.mxu0 0
        %255 = vmatpush1.bf16.msra.mxu0 0
        %256 = vmatprep.subr.bf16.mxu0 0
        %257 = vmatpush1.bf16.msra.mxu0 %v240
        %258 = vmatprep.subr.bf16.mxu0 0
        %259 = vmatpush2.bf16.msra.mxu0 0
        %260 = vmatprep.subr.bf16.mxu0 0
        %261 = vmatpush2.bf16.msra.mxu0 0
        %262 = vmatprep.subr.bf16.mxu0 0
        %263 = vmatpush2.bf16.msra.mxu0 0
        %264 = vmatprep.subr.bf16.mxu0 0
        %265 = vmatpush2.bf16.msra.mxu0 0
        %266 = vmatprep.subr.bf16.mxu0 0
        %267 = vmatpush2.bf16.msra.mxu0 0
        %268 = vmatprep.subr.bf16.mxu0 0
        %269 = vmatpush2.bf16.msra.mxu0 0
        %270 = vmatprep.subr.bf16.mxu0 0
        %271 = vmatpush2.bf16.msra.mxu0 0
        %272 = vmatprep.subr.bf16.mxu0 0
        %273 = vmatpush2.bf16.msra.mxu0 0
        %274 = vmatprep.mubr.bf16.mxu0 0
        %275 = vmatmul.mubr.bf16.gmra.mxu0 %v236
        %v276 = vpop.f32.mrf.mxu0
        %v277 = vadd.f32 0.0, %v276
        %v278 = vpop.f32.mrf.mxu0
        %v279 = vpop.f32.mrf.mxu0
        %v280 = vpop.f32.mrf.mxu0
        %281 = vdwg.mxu0
        %v283 = vsel %vm234, %v225, 0
        %v286 = vsel %vm238, %v227, 0
        %288 = vmatprep.subr.bf16.mxu0 0
        %289 = vmatpush1.bf16.msra.mxu0 0
        %290 = vmatprep.subr.bf16.mxu0 0
        %291 = vmatpush1.bf16.msra.mxu0 0
        %292 = vmatprep.subr.bf16.mxu0 0
        %293 = vmatpush1.bf16.msra.mxu0 0
        %294 = vmatprep.subr.bf16.mxu0 0
        %295 = vmatpush1.bf16.msra.mxu0 0
        %296 = vmatprep.subr.bf16.mxu0 0
        %297 = vmatpush1.bf16.msra.mxu0 0
        %298 = vmatprep.subr.bf16.mxu0 0
        %299 = vmatpush1.bf16.msra.mxu0 0
        %300 = vmatprep.subr.bf16.mxu0 0
        %301 = vmatpush1.bf16.msra.mxu0 0
        %302 = vmatprep.subr.bf16.mxu0 0
        %303 = vmatpush1.bf16.msra.mxu0 %v286
        %304 = vmatprep.subr.bf16.mxu0 0
        %305 = vmatpush2.bf16.msra.mxu0 0
        %306 = vmatprep.subr.bf16.mxu0 0
        %307 = vmatpush2.bf16.msra.mxu0 0
        %308 = vmatprep.subr.bf16.mxu0 0
        %309 = vmatpush2.bf16.msra.mxu0 0
        %310 = vmatprep.subr.bf16.mxu0 0
        %311 = vmatpush2.bf16.msra.mxu0 0
        %312 = vmatprep.subr.bf16.mxu0 0
        %313 = vmatpush2.bf16.msra.mxu0 0
        %314 = vmatprep.subr.bf16.mxu0 0
        %315 = vmatpush2.bf16.msra.mxu0 0
        %316 = vmatprep.subr.bf16.mxu0 0
        %317 = vmatpush2.bf16.msra.mxu0 0
        %318 = vmatprep.subr.bf16.mxu0 0
        %319 = vmatpush2.bf16.msra.mxu0 0
        %320 = vmatprep.mubr.bf16.mxu0 0
        %321 = vmatmul.mubr.bf16.gmra.mxu0 %v283
        %v322 = vpop.f32.mrf.mxu0
        %v323 = vadd.f32 %v277, %v322
        %v324 = vpop.f32.mrf.mxu0
        %v325 = vpop.f32.mrf.mxu0
        %v326 = vpop.f32.mrf.mxu0
        %327 = vdwg.mxu0
        %s328 = scalar_lea.vmem %s1, 8
        %v329 = vld [vmem:[%s328] sm:$0xf]
        %v332 = vunpack.c.l.b16 %v225
        %v333 = vunpack.c.l.b16 %v226
        %v334 = vpack.c.b16 %v333, %v332
        %v336 = vshrl.u32 %v334, 16
        %v338 = vshll.u32 %v334, 16
        %v340 = vrot.slane %v338, 1
        %v341 = vor.u32 %v336, %v340
        %v343 = vsel %vm234, %v341, 0
        %v346 = vsel %vm238, %v329, 0
        %348 = vmatprep.subr.bf16.mxu0 0
        %349 = vmatpush1.bf16.msra.mxu0 0
        %350 = vmatprep.subr.bf16.mxu0 0
        %351 = vmatpush1.bf16.msra.mxu0 0
        %352 = vmatprep.subr.bf16.mxu0 0
        %353 = vmatpush1.bf16.msra.mxu0 0
        %354 = vmatprep.subr.bf16.mxu0 0
        %355 = vmatpush1.bf16.msra.mxu0 0
        %356 = vmatprep.subr.bf16.mxu0 0
        %357 = vmatpush1.bf16.msra.mxu0 0
        %358 = vmatprep.subr.bf16.mxu0 0
        %359 = vmatpush1.bf16.msra.mxu0 0
        %360 = vmatprep.subr.bf16.mxu0 0
        %361 = vmatpush1.bf16.msra.mxu0 0
        %362 = vmatprep.subr.bf16.mxu0 0
        %363 = vmatpush1.bf16.msra.mxu0 %v346
        %364 = vmatprep.subr.bf16.mxu0 0
        %365 = vmatpush2.bf16.msra.mxu0 0
        %366 = vmatprep.subr.bf16.mxu0 0
        %367 = vmatpush2.bf16.msra.mxu0 0
        %368 = vmatprep.subr.bf16.mxu0 0
        %369 = vmatpush2.bf16.msra.mxu0 0
        %370 = vmatprep.subr.bf16.mxu0 0
        %371 = vmatpush2.bf16.msra.mxu0 0
        %372 = vmatprep.subr.bf16.mxu0 0
        %373 = vmatpush2.bf16.msra.mxu0 0
        %374 = vmatprep.subr.bf16.mxu0 0
        %375 = vmatpush2.bf16.msra.mxu0 0
        %376 = vmatprep.subr.bf16.mxu0 0
        %377 = vmatpush2.bf16.msra.mxu0 0
        %378 = vmatprep.subr.bf16.mxu0 0
        %379 = vmatpush2.bf16.msra.mxu0 0
        %380 = vmatprep.mubr.bf16.mxu0 0
        %381 = vmatmul.mubr.bf16.gmra.mxu0 %v343
        %v382 = vpop.f32.mrf.mxu0
        %v383 = vadd.f32 0.0, %v382
        %v384 = vpop.f32.mrf.mxu0
        %v385 = vpop.f32.mrf.mxu0
        %v386 = vpop.f32.mrf.mxu0
        %387 = vdwg.mxu0
        %v388 = vadd.f32 %v323, %v383
        %s389 = sadd.s32 %s222, 36
        %s390 = smul.addr %s389, 4
        %s391 = scalar_lea.vmem %s203, %s390
        %v392 = vld [vmem:[%s391] sm:$0xf]
        %v393 = vld [vmem:[%s391 + $0x4] sm:$0x1]
        %s394 = scalar_lea.vmem %s1, 12
        %v395 = vld [vmem:[%s394] sm:$0xf]
        %v397 = vsel %vm234, %v392, 0
        %v400 = vsel %vm238, %v395, 0
        %402 = vmatprep.subr.bf16.mxu0 0
        %403 = vmatpush1.bf16.msra.mxu0 0
        %404 = vmatprep.subr.bf16.mxu0 0
        %405 = vmatpush1.bf16.msra.mxu0 0
        %406 = vmatprep.subr.bf16.mxu0 0
        %407 = vmatpush1.bf16.msra.mxu0 0
        %408 = vmatprep.subr.bf16.mxu0 0
        %409 = vmatpush1.bf16.msra.mxu0 0
        %410 = vmatprep.subr.bf16.mxu0 0
        %411 = vmatpush1.bf16.msra.mxu0 0
        %412 = vmatprep.subr.bf16.mxu0 0
        %413 = vmatpush1.bf16.msra.mxu0 0
        %414 = vmatprep.subr.bf16.mxu0 0
        %415 = vmatpush1.bf16.msra.mxu0 0
        %416 = vmatprep.subr.bf16.mxu0 0
        %417 = vmatpush1.bf16.msra.mxu0 %v400
        %418 = vmatprep.subr.bf16.mxu0 0
        %419 = vmatpush2.bf16.msra.mxu0 0
        %420 = vmatprep.subr.bf16.mxu0 0
        %421 = vmatpush2.bf16.msra.mxu0 0
        %422 = vmatprep.subr.bf16.mxu0 0
        %423 = vmatpush2.bf16.msra.mxu0 0
        %424 = vmatprep.subr.bf16.mxu0 0
        %425 = vmatpush2.bf16.msra.mxu0 0
        %426 = vmatprep.subr.bf16.mxu0 0
        %427 = vmatpush2.bf16.msra.mxu0 0
        %428 = vmatprep.subr.bf16.mxu0 0
        %429 = vmatpush2.bf16.msra.mxu0 0
        %430 = vmatprep.subr.bf16.mxu0 0
        %431 = vmatpush2.bf16.msra.mxu0 0
        %432 = vmatprep.subr.bf16.mxu0 0
        %433 = vmatpush2.bf16.msra.mxu0 0
        %434 = vmatprep.mubr.bf16.mxu0 0
        %435 = vmatmul.mubr.bf16.gmra.mxu0 %v397
        %v436 = vpop.f32.mrf.mxu0
        %v437 = vadd.f32 0.0, %v436
        %v438 = vpop.f32.mrf.mxu0
        %v439 = vpop.f32.mrf.mxu0
        %v440 = vpop.f32.mrf.mxu0
        %441 = vdwg.mxu0
        %v442 = vadd.f32 %v388, %v437
        %s443 = sadd.s32 %s222, 54
        %s444 = smul.addr %s443, 4
        %s445 = scalar_lea.vmem %s203, %s444
        %v446 = vld [vmem:[%s445] sm:$0xf]
        %s447 = scalar_lea.vmem %s1, 16
        %v448 = vld [vmem:[%s447] sm:$0xf]
        %v450 = vsel %vm234, %v446, 0
        %v453 = vsel %vm238, %v448, 0
        %455 = vmatprep.subr.bf16.mxu0 0
        %456 = vmatpush1.bf16.msra.mxu0 0
        %457 = vmatprep.subr.bf16.mxu0 0
        %458 = vmatpush1.bf16.msra.mxu0 0
        %459 = vmatprep.subr.bf16.mxu0 0
        %460 = vmatpush1.bf16.msra.mxu0 0
        %461 = vmatprep.subr.bf16.mxu0 0
        %462 = vmatpush1.bf16.msra.mxu0 0
        %463 = vmatprep.subr.bf16.mxu0 0
        %464 = vmatpush1.bf16.msra.mxu0 0
        %465 = vmatprep.subr.bf16.mxu0 0
        %466 = vmatpush1.bf16.msra.mxu0 0
        %467 = vmatprep.subr.bf16.mxu0 0
        %468 = vmatpush1.bf16.msra.mxu0 0
        %469 = vmatprep.subr.bf16.mxu0 0
        %470 = vmatpush1.bf16.msra.mxu0 %v453
        %471 = vmatprep.subr.bf16.mxu0 0
        %472 = vmatpush2.bf16.msra.mxu0 0
        %473 = vmatprep.subr.bf16.mxu0 0
        %474 = vmatpush2.bf16.msra.mxu0 0
        %475 = vmatprep.subr.bf16.mxu0 0
        %476 = vmatpush2.bf16.msra.mxu0 0
        %477 = vmatprep.subr.bf16.mxu0 0
        %478 = vmatpush2.bf16.msra.mxu0 0
        %479 = vmatprep.subr.bf16.mxu0 0
        %480 = vmatpush2.bf16.msra.mxu0 0
        %481 = vmatprep.subr.bf16.mxu0 0
        %482 = vmatpush2.bf16.msra.mxu0 0
        %483 = vmatprep.subr.bf16.mxu0 0
        %484 = vmatpush2.bf16.msra.mxu0 0
        %485 = vmatprep.subr.bf16.mxu0 0
        %486 = vmatpush2.bf16.msra.mxu0 0
        %487 = vmatprep.mubr.bf16.mxu0 0
        %488 = vmatmul.mubr.bf16.gmra.mxu0 %v450
        %v489 = vpop.f32.mrf.mxu0
        %v490 = vadd.f32 0.0, %v489
        %v491 = vpop.f32.mrf.mxu0
        %v492 = vpop.f32.mrf.mxu0
        %v493 = vpop.f32.mrf.mxu0
        %494 = vdwg.mxu0
        %v495 = vadd.f32 %v442, %v490
        %s496 = scalar_lea.vmem %s1, 20
        %v497 = vld [vmem:[%s496] sm:$0xf]
        %v500 = vunpack.c.l.b16 %v392
        %v501 = vunpack.c.l.b16 %v393
        %v502 = vpack.c.b16 %v501, %v500
        %v504 = vshrl.u32 %v502, 16
        %v506 = vshll.u32 %v502, 16
        %v508 = vrot.slane %v506, 1
        %v509 = vor.u32 %v504, %v508
        %v511 = vsel %vm234, %v509, 0
        %v514 = vsel %vm238, %v497, 0
        %516 = vmatprep.subr.bf16.mxu0 0
        %517 = vmatpush1.bf16.msra.mxu0 0
        %518 = vmatprep.subr.bf16.mxu0 0
        %519 = vmatpush1.bf16.msra.mxu0 0
        %520 = vmatprep.subr.bf16.mxu0 0
        %521 = vmatpush1.bf16.msra.mxu0 0
        %522 = vmatprep.subr.bf16.mxu0 0
        %523 = vmatpush1.bf16.msra.mxu0 0
        %524 = vmatprep.subr.bf16.mxu0 0
        %525 = vmatpush1.bf16.msra.mxu0 0
        %526 = vmatprep.subr.bf16.mxu0 0
        %527 = vmatpush1.bf16.msra.mxu0 0
        %528 = vmatprep.subr.bf16.mxu0 0
        %529 = vmatpush1.bf16.msra.mxu0 0
        %530 = vmatprep.subr.bf16.mxu0 0
        %531 = vmatpush1.bf16.msra.mxu0 %v514
        %532 = vmatprep.subr.bf16.mxu0 0
        %533 = vmatpush2.bf16.msra.mxu0 0
        %534 = vmatprep.subr.bf16.mxu0 0
        %535 = vmatpush2.bf16.msra.mxu0 0
        %536 = vmatprep.subr.bf16.mxu0 0
        %537 = vmatpush2.bf16.msra.mxu0 0
        %538 = vmatprep.subr.bf16.mxu0 0
        %539 = vmatpush2.bf16.msra.mxu0 0
        %540 = vmatprep.subr.bf16.mxu0 0
        %541 = vmatpush2.bf16.msra.mxu0 0
        %542 = vmatprep.subr.bf16.mxu0 0
        %543 = vmatpush2.bf16.msra.mxu0 0
        %544 = vmatprep.subr.bf16.mxu0 0
        %545 = vmatpush2.bf16.msra.mxu0 0
        %546 = vmatprep.subr.bf16.mxu0 0
        %547 = vmatpush2.bf16.msra.mxu0 0
        %548 = vmatprep.mubr.bf16.mxu0 0
        %549 = vmatmul.mubr.bf16.gmra.mxu0 %v511
        %v550 = vpop.f32.mrf.mxu0
        %v551 = vadd.f32 0.0, %v550
        %v552 = vpop.f32.mrf.mxu0
        %v553 = vpop.f32.mrf.mxu0
        %v554 = vpop.f32.mrf.mxu0
        %555 = vdwg.mxu0
        %v556 = vadd.f32 %v495, %v551
        %s557 = sadd.s32 %s217, 1
        %s558 = smul.u32 %s557, 2
        %s559 = smul.addr %s558, 4
        %s560 = scalar_lea.vmem %s203, %s559
        %v561 = vld [vmem:[%s560] sm:$0xf]
        %v562 = vld [vmem:[%s560 + $0x4] sm:$0x1]
        %s563 = scalar_lea.vmem %s1, 24
        %v564 = vld [vmem:[%s563] sm:$0xf]
        %v566 = vsel %vm234, %v561, 0
        %v569 = vsel %vm238, %v564, 0
        %571 = vmatprep.subr.bf16.mxu0 0
        %572 = vmatpush1.bf16.msra.mxu0 0
        %573 = vmatprep.subr.bf16.mxu0 0
        %574 = vmatpush1.bf16.msra.mxu0 0
        %575 = vmatprep.subr.bf16.mxu0 0
        %576 = vmatpush1.bf16.msra.mxu0 0
        %577 = vmatprep.subr.bf16.mxu0 0
        %578 = vmatpush1.bf16.msra.mxu0 0
        %579 = vmatprep.subr.bf16.mxu0 0
        %580 = vmatpush1.bf16.msra.mxu0 0
        %581 = vmatprep.subr.bf16.mxu0 0
        %582 = vmatpush1.bf16.msra.mxu0 0
        %583 = vmatprep.subr.bf16.mxu0 0
        %584 = vmatpush1.bf16.msra.mxu0 0
        %585 = vmatprep.subr.bf16.mxu0 0
        %586 = vmatpush1.bf16.msra.mxu0 %v569
        %587 = vmatprep.subr.bf16.mxu0 0
        %588 = vmatpush2.bf16.msra.mxu0 0
        %589 = vmatprep.subr.bf16.mxu0 0
        %590 = vmatpush2.bf16.msra.mxu0 0
        %591 = vmatprep.subr.bf16.mxu0 0
        %592 = vmatpush2.bf16.msra.mxu0 0
        %593 = vmatprep.subr.bf16.mxu0 0
        %594 = vmatpush2.bf16.msra.mxu0 0
        %595 = vmatprep.subr.bf16.mxu0 0
        %596 = vmatpush2.bf16.msra.mxu0 0
        %597 = vmatprep.subr.bf16.mxu0 0
        %598 = vmatpush2.bf16.msra.mxu0 0
        %599 = vmatprep.subr.bf16.mxu0 0
        %600 = vmatpush2.bf16.msra.mxu0 0
        %601 = vmatprep.subr.bf16.mxu0 0
        %602 = vmatpush2.bf16.msra.mxu0 0
        %603 = vmatprep.mubr.bf16.mxu0 0
        %604 = vmatmul.mubr.bf16.gmra.mxu0 %v566
        %v605 = vpop.f32.mrf.mxu0
        %v606 = vadd.f32 0.0, %v605
        %v607 = vpop.f32.mrf.mxu0
        %v608 = vpop.f32.mrf.mxu0
        %v609 = vpop.f32.mrf.mxu0
        %610 = vdwg.mxu0
        %v611 = vadd.f32 %v556, %v606
        %s612 = sadd.s32 %s558, 18
        %s613 = smul.addr %s612, 4
        %s614 = scalar_lea.vmem %s203, %s613
        %v615 = vld [vmem:[%s614] sm:$0xf]
        %s616 = scalar_lea.vmem %s1, 28
        %v617 = vld [vmem:[%s616] sm:$0xf]
        %v619 = vsel %vm234, %v615, 0
        %v622 = vsel %vm238, %v617, 0
        %624 = vmatprep.subr.bf16.mxu0 0
        %625 = vmatpush1.bf16.msra.mxu0 0
        %626 = vmatprep.subr.bf16.mxu0 0
        %627 = vmatpush1.bf16.msra.mxu0 0
        %628 = vmatprep.subr.bf16.mxu0 0
        %629 = vmatpush1.bf16.msra.mxu0 0
        %630 = vmatprep.subr.bf16.mxu0 0
        %631 = vmatpush1.bf16.msra.mxu0 0
        %632 = vmatprep.subr.bf16.mxu0 0
        %633 = vmatpush1.bf16.msra.mxu0 0
        %634 = vmatprep.subr.bf16.mxu0 0
        %635 = vmatpush1.bf16.msra.mxu0 0
        %636 = vmatprep.subr.bf16.mxu0 0
        %637 = vmatpush1.bf16.msra.mxu0 0
        %638 = vmatprep.subr.bf16.mxu0 0
        %639 = vmatpush1.bf16.msra.mxu0 %v622
        %640 = vmatprep.subr.bf16.mxu0 0
        %641 = vmatpush2.bf16.msra.mxu0 0
        %642 = vmatprep.subr.bf16.mxu0 0
        %643 = vmatpush2.bf16.msra.mxu0 0
        %644 = vmatprep.subr.bf16.mxu0 0
        %645 = vmatpush2.bf16.msra.mxu0 0
        %646 = vmatprep.subr.bf16.mxu0 0
        %647 = vmatpush2.bf16.msra.mxu0 0
        %648 = vmatprep.subr.bf16.mxu0 0
        %649 = vmatpush2.bf16.msra.mxu0 0
        %650 = vmatprep.subr.bf16.mxu0 0
        %651 = vmatpush2.bf16.msra.mxu0 0
        %652 = vmatprep.subr.bf16.mxu0 0
        %653 = vmatpush2.bf16.msra.mxu0 0
        %654 = vmatprep.subr.bf16.mxu0 0
        %655 = vmatpush2.bf16.msra.mxu0 0
        %656 = vmatprep.mubr.bf16.mxu0 0
        %657 = vmatmul.mubr.bf16.gmra.mxu0 %v619
        %v658 = vpop.f32.mrf.mxu0
        %v659 = vadd.f32 0.0, %v658
        %v660 = vpop.f32.mrf.mxu0
        %v661 = vpop.f32.mrf.mxu0
        %v662 = vpop.f32.mrf.mxu0
        %663 = vdwg.mxu0
        %v664 = vadd.f32 %v611, %v659
        %s665 = scalar_lea.vmem %s1, 32
        %v666 = vld [vmem:[%s665] sm:$0xf]
        %v669 = vunpack.c.l.b16 %v561
        %v670 = vunpack.c.l.b16 %v562
        %v671 = vpack.c.b16 %v670, %v669
        %v673 = vshrl.u32 %v671, 16
        %v675 = vshll.u32 %v671, 16
        %v677 = vrot.slane %v675, 1
        %v678 = vor.u32 %v673, %v677
        %v680 = vsel %vm234, %v678, 0
        %v683 = vsel %vm238, %v666, 0
        %685 = vmatprep.subr.bf16.mxu0 0
        %686 = vmatpush1.bf16.msra.mxu0 0
        %687 = vmatprep.subr.bf16.mxu0 0
        %688 = vmatpush1.bf16.msra.mxu0 0
        %689 = vmatprep.subr.bf16.mxu0 0
        %690 = vmatpush1.bf16.msra.mxu0 0
        %691 = vmatprep.subr.bf16.mxu0 0
        %692 = vmatpush1.bf16.msra.mxu0 0
        %693 = vmatprep.subr.bf16.mxu0 0
        %694 = vmatpush1.bf16.msra.mxu0 0
        %695 = vmatprep.subr.bf16.mxu0 0
        %696 = vmatpush1.bf16.msra.mxu0 0
        %697 = vmatprep.subr.bf16.mxu0 0
        %698 = vmatpush1.bf16.msra.mxu0 0
        %699 = vmatprep.subr.bf16.mxu0 0
        %700 = vmatpush1.bf16.msra.mxu0 %v683
        %701 = vmatprep.subr.bf16.mxu0 0
        %702 = vmatpush2.bf16.msra.mxu0 0
        %703 = vmatprep.subr.bf16.mxu0 0
        %704 = vmatpush2.bf16.msra.mxu0 0
        %705 = vmatprep.subr.bf16.mxu0 0
        %706 = vmatpush2.bf16.msra.mxu0 0
        %707 = vmatprep.subr.bf16.mxu0 0
        %708 = vmatpush2.bf16.msra.mxu0 0
        %709 = vmatprep.subr.bf16.mxu0 0
        %710 = vmatpush2.bf16.msra.mxu0 0
        %711 = vmatprep.subr.bf16.mxu0 0
        %712 = vmatpush2.bf16.msra.mxu0 0
        %713 = vmatprep.subr.bf16.mxu0 0
        %714 = vmatpush2.bf16.msra.mxu0 0
        %715 = vmatprep.subr.bf16.mxu0 0
        %716 = vmatpush2.bf16.msra.mxu0 0
        %717 = vmatprep.mubr.bf16.mxu0 0
        %718 = vmatmul.mubr.bf16.gmra.mxu0 %v680
        %v719 = vpop.f32.mrf.mxu0
        %v720 = vadd.f32 0.0, %v719
        %v721 = vpop.f32.mrf.mxu0
        %v722 = vpop.f32.mrf.mxu0
        %v723 = vpop.f32.mrf.mxu0
        %724 = vdwg.mxu0
        %v725 = vadd.f32 %v664, %v720
        %v726 = vld [vmem:[%s2] sm:$0x1]
        %v728 = vlaneseq
        %v729 = vshrl.u32 %v728, 7
        %v730 = vsub.s32 0, %v729
        %v731 = vrot.slane %v726, %v730
        %v733 = vadd.f32 %v725, %v731
        %v734 = vmax.f32 %v733, 0.0
        %v735 = vld [vmem:[%s213] sm:$0x1]
        %v736 = vrot.slane %v734, 4
        %v737 = vadd.f32 %v734, %v736
        %v738 = vrot.slane %v737, 2
        %v739 = vadd.f32 %v737, %v738
        %v740 = vrot.slane %v739, 1
        %v741 = vadd.f32 %v739, %v740
        %v742 = vadd.f32 %v735, %v741
        %743 = vst [vmem:[%s213] sm:$0x1] %v742
        %v744 = vld [vmem:[%s213 + $0x1] sm:$0x1]
        %v745 = vmul.f32 %v734, %v734
        %v746 = vrot.slane %v745, 4
        %v747 = vadd.f32 %v745, %v746
        %v748 = vrot.slane %v747, 2
        %v749 = vadd.f32 %v747, %v748
        %v750 = vrot.slane %v749, 1
        %v751 = vadd.f32 %v749, %v750
        %v752 = vadd.f32 %v744, %v751
        %753 = vst [vmem:[%s213 + $0x1] sm:$0x1] %v752
        %v754 = vpack.c.bf16 %v734, %v734
        %s755 = smul.addr %s217, 4
        %s756 = scalar_lea.vmem %s209, %s755
        %757 = vst [vmem:[%s756] sm:$0xf] %v754
      $region37: #{_lambda_.6} parent=31 // loop_footer
        %s221 = sadd.s32 1, %s217
      $region38: #{_lambda_.6} parent=31 // loop_footer_branch
        %216 = sbr.rel target = $region34
      $region39: #{_lambda_.6} parent=31 // loop_exit
        _
      %p758 = scmp.lt.s32.totalorder %s16, 1
      %s759 = scalar_select %p758, %s16, 1
      %s760 = smul.addr %s759, 8
      %s761 = smul.addr %s760, 4
      %s762 = scalar_lea.vmem %s3, %s761
      %p763 = scmp.lt.s32.totalorder %s16, 1
      %s764 = scalar_select %p763, %s16, 1
      %s765 = smul.addr %s764, 2
      %s766 = scalar_lea.vmem %s4, %s765
      // Predicated region
      $region40: #{_lambda_.6} parent=31 // pred_check
        %p767 = pneg %p102
      $region41: #{_lambda_.6} parent=31 // pred_check_branch
        %769 = sbr.rel (%p767) target = $region43
      $region42: #{_lambda_.6} parent=31 // pred_region
        _
      $region43: #{_lambda_.6} parent=31 // pred_fallthru
        _
      // Predicated region
      $region44: #{_lambda_.6} parent=31 // pred_check
        %p770 = pneg %p128
      $region45: #{_lambda_.6} parent=31 // pred_check_branch
        %772 = sbr.rel (%p770) target = $region47
      $region46: #{_lambda_.6} parent=31 // pred_region
        _
      $region47: #{_lambda_.6} parent=31 // pred_fallthru
        _
    $region32: #{_lambda_.6} parent=5 // pred_fallthru
      _
    %p773 = scmp.le.s32.totalorder 2, %s11
    // Predicated region
    $region48: #{_lambda_.6} parent=5 // pred_check
      %p774 = pneg %p773
    $region49: #{_lambda_.6} parent=5 // pred_check_branch
      %776 = sbr.rel (%p774) target = $region51
    $region50: #{_lambda_.6} parent=5 // pred_region
      %s777 = ssub.s32 %s11, 2
      // Predicated region
      $region52: #{_lambda_.6} parent=50 // pred_check
        %p778 = pneg %p108
      $region53: #{_lambda_.6} parent=50 // pred_check_branch
        %780 = sbr.rel (%p778) target = $region55
      $region54: #{_lambda_.6} parent=50 // pred_region
        %p781 = scmp.lt.s32.totalorder %s17, 1
        %s782 = scalar_select %p781, %s17, 1
        %s783 = smul.addr %s782, 8
        %s784 = smul.addr %s783, 4
        %s785 = scalar_lea.vmem %s3, %s784
      $region55: #{_lambda_.6} parent=50 // pred_fallthru
        _
      // Predicated region
      $region56: #{_lambda_.6} parent=50 // pred_check
        %p786 = pneg %p134
      $region57: #{_lambda_.6} parent=50 // pred_check_branch
        %788 = sbr.rel (%p786) target = $region59
      $region58: #{_lambda_.6} parent=50 // pred_region
        %p789 = scmp.lt.s32.totalorder %s17, 1
        %s790 = scalar_select %p789, %s17, 1
        %s791 = smul.addr %s790, 2
        %s792 = scalar_lea.vmem %s4, %s791
      $region59: #{_lambda_.6} parent=50 // pred_fallthru
        _
    $region51: #{_lambda_.6} parent=5 // pred_fallthru
      _
  $region6: #{_lambda_.6} parent=0 // loop_footer
    %s15 = sadd.s32 1, %s11
  $region7: #{_lambda_.6} parent=0 // loop_footer_branch
    %10 = sbr.rel target = $region3
  $region8: #{_lambda_.6} parent=0 // loop_exit
    _

// kernel: _lambda_.7
$region0: #{_lambda_.7}
  #allocation0 [shape = 'u32[]', space=smem, size = 0x4, offset = 0x4, fixed_abs, tag = 'smem constant byte address 0x4 - core index']
  #allocation1 [shape = 'u32[144,128]{1,0:T(1,128)}', space=vmem, size = 0x12000, scoped, tag = 'internal scratch']
  %s0 = inlined_call_operand.vmem [shape: bf16[8,5,5,8], index: 0, kind: input, shape index: {}]
  %s1 = inlined_call_operand.vmem [shape: bf16[9,8,128], index: 1, kind: input, shape index: {}]
  %s2 = inlined_call_operand.vmem [shape: f32[1,128], index: 2, kind: input, shape index: {}]
  %s3 = inlined_call_operand.vmem [shape: bf16[2,4,4,128], index: 3, kind: output, shape index: {0}]
  %s4 = inlined_call_operand.vmem [shape: f32[2,2,128], index: 4, kind: output, shape index: {1}]
  %5 = xla_tuple %s3, %s4
  %s6 = sld [smem:[#allocation0]]
  $region60: #{_lambda_.7} parent=0
    _
  %s8 = ssub.s32 1, %s6
  %s9 = scalar_select 0, %s8, %s6
  loop: start=0, step=1, limit=4
  $region2: #{_lambda_.7} parent=0 // loop_pre_header
    _
  $region3: #{_lambda_.7} parent=0 // loop_header
    %s11 = sphi 0, %s15
    %p12 = scmp.ge.s32.totalorder %s11, 4
    %s21 = sphi 0, %s23
    %s24 = sphi 0, %s21
    %s25 = sphi 0, %s24
    %s41 = sphi 0, %s25
    %s45 = sphi 0, %s45
    %s47 = sphi 0, %s45
    %s48 = sphi 0, %s47
    %s62 = sphi 0, %s48
    %s66 = sphi 0, %s66
    %s68 = sphi 0, %s66
    %s69 = sphi 0, %s68
    %s83 = sphi 0, %s69
    %s89 = sphi 0, %s91
    %s92 = sphi 0, %s89
    %s93 = sphi 0, %s92
    %s109 = sphi 0, %s93
    %s115 = sphi 0, %s117
    %s118 = sphi 0, %s115
    %s119 = sphi 0, %s118
    %s135 = sphi 0, %s119
  $region4: #{_lambda_.7} parent=0 // loop_header_branch
    %14 = sbr.rel (%p12) target = $region8
  $region5: #{_lambda_.7} parent=0 // loop_body
    %s16 = ssub.s32 %s11, 1
    %s17 = ssub.s32 %s11, 2
    %s18 = sadd.s32 %s11, 1
    %s19 = ssub.s32 %s11, %s18
    %p20 = scmp.eq.s32.totalorder %s19, 0
    %s22 = sadd.s32 %s21, 1
    %s23 = scalar_select %p20, %s21, %s22
    %p26 = pneg %p20
    %p27 = scmp.eq.s32.totalorder %s11, 1
    %p28 = por %p26, %p27
    %p29 = scmp.ne.s32.totalorder %s21, %s24
    %p30 = scmp.eq.s32.totalorder %s11, 0
    %p31 = por %p29, %p30
    %p32 = scmp.ne.s32.totalorder %s21, %s24
    %p33 = scmp.eq.s32.totalorder %s16, 1
    %p34 = por %p32, %p33
    %p35 = scmp.ne.s32.totalorder %s24, %s25
    %p36 = scmp.eq.s32.totalorder %s16, 0
    %p37 = por %p35, %p36
    %p38 = scmp.ne.s32.totalorder %s24, %s25
    %p39 = scmp.eq.s32.totalorder %s17, 1
    %p40 = por %p38, %p39
    %p42 = scmp.ne.s32.totalorder %s25, %s41
    %p43 = scmp.eq.s32.totalorder %s17, 0
    %p44 = por %p42, %p43
    %s46 = sadd.s32 %s45, 1
    %p49 = scmp.eq.s32.totalorder %s11, 1
    %p50 = scmp.ne.s32.totalorder %s45, %s47
    %p51 = scmp.eq.s32.totalorder %s11, 0
    %p52 = por %p50, %p51
    %p53 = scmp.ne.s32.totalorder %s45, %s47
    %p54 = scmp.eq.s32.totalorder %s16, 1
    %p55 = por %p53, %p54
    %p56 = scmp.ne.s32.totalorder %s47, %s48
    %p57 = scmp.eq.s32.totalorder %s16, 0
    %p58 = por %p56, %p57
    %p59 = scmp.ne.s32.totalorder %s47, %s48
    %p60 = scmp.eq.s32.totalorder %s17, 1
    %p61 = por %p59, %p60
    %p63 = scmp.ne.s32.totalorder %s48, %s62
    %p64 = scmp.eq.s32.totalorder %s17, 0
    %p65 = por %p63, %p64
    %s67 = sadd.s32 %s66, 1
    %p70 = scmp.eq.s32.totalorder %s11, 1
    %p71 = scmp.ne.s32.totalorder %s66, %s68
    %p72 = scmp.eq.s32.totalorder %s11, 0
    %p73 = por %p71, %p72
    %p74 = scmp.ne.s32.totalorder %s66, %s68
    %p75 = scmp.eq.s32.totalorder %s16, 1
    %p76 = por %p74, %p75
    %p77 = scmp.ne.s32.totalorder %s68, %s69
    %p78 = scmp.eq.s32.totalorder %s16, 0
    %p79 = por %p77, %p78
    %p80 = scmp.ne.s32.totalorder %s68, %s69
    %p81 = scmp.eq.s32.totalorder %s17, 1
    %p82 = por %p80, %p81
    %p84 = scmp.ne.s32.totalorder %s69, %s83
    %p85 = scmp.eq.s32.totalorder %s17, 0
    %p86 = por %p84, %p85
    %s87 = ssub.s32 %s11, %s18
    %p88 = scmp.eq.s32.totalorder %s87, 0
    %s90 = sadd.s32 %s89, 1
    %s91 = scalar_select %p88, %s89, %s90
    %p94 = pneg %p88
    %p95 = scmp.eq.s32.totalorder %s11, 1
    %p96 = por %p94, %p95
    %p97 = scmp.ne.s32.totalorder %s89, %s92
    %p98 = scmp.eq.s32.totalorder %s11, 0
    %p99 = por %p97, %p98
    %p100 = scmp.ne.s32.totalorder %s89, %s92
    %p101 = scmp.eq.s32.totalorder %s16, 1
    %p102 = por %p100, %p101
    %p103 = scmp.ne.s32.totalorder %s92, %s93
    %p104 = scmp.eq.s32.totalorder %s16, 0
    %p105 = por %p103, %p104
    %p106 = scmp.ne.s32.totalorder %s92, %s93
    %p107 = scmp.eq.s32.totalorder %s17, 1
    %p108 = por %p106, %p107
    %p110 = scmp.ne.s32.totalorder %s93, %s109
    %p111 = scmp.eq.s32.totalorder %s17, 0
    %p112 = por %p110, %p111
    %s113 = ssub.s32 %s11, %s18
    %p114 = scmp.eq.s32.totalorder %s113, 0
    %s116 = sadd.s32 %s115, 1
    %s117 = scalar_select %p114, %s115, %s116
    %p120 = pneg %p114
    %p121 = scmp.eq.s32.totalorder %s11, 1
    %p122 = por %p120, %p121
    %p123 = scmp.ne.s32.totalorder %s115, %s118
    %p124 = scmp.eq.s32.totalorder %s11, 0
    %p125 = por %p123, %p124
    %p126 = scmp.ne.s32.totalorder %s115, %s118
    %p127 = scmp.eq.s32.totalorder %s16, 1
    %p128 = por %p126, %p127
    %p129 = scmp.ne.s32.totalorder %s118, %s119
    %p130 = scmp.eq.s32.totalorder %s16, 0
    %p131 = por %p129, %p130
    %p132 = scmp.ne.s32.totalorder %s118, %s119
    %p133 = scmp.eq.s32.totalorder %s17, 1
    %p134 = por %p132, %p133
    %p136 = scmp.ne.s32.totalorder %s119, %s135
    %p137 = scmp.eq.s32.totalorder %s17, 0
    %p138 = por %p136, %p137
    %p139 = scmp.le.s32.totalorder 1, %s11
    %p140 = scmp.lt.s32.totalorder %s11, 3
    %p141 = pnand %p139, %p140
    %p142 = pneg %p141
    // Predicated region
    $region9: #{_lambda_.7} parent=5 // pred_check
      _
    $region10: #{_lambda_.7} parent=5 // pred_check_branch
      %144 = sbr.rel (%p141) target = $region12
    $region11: #{_lambda_.7} parent=5 // pred_region
      %s145 = ssub.s32 %s11, 1
      // Predicated region
      $region13: #{_lambda_.7} parent=11 // pred_check
        %p146 = pneg %p58
      $region14: #{_lambda_.7} parent=11 // pred_check_branch
        %148 = sbr.rel (%p146) target = $region16
      $region15: #{_lambda_.7} parent=11 // pred_region
        _
      $region16: #{_lambda_.7} parent=11 // pred_fallthru
        _
      // Predicated region
      $region17: #{_lambda_.7} parent=11 // pred_check
        %p149 = pneg %p79
      $region18: #{_lambda_.7} parent=11 // pred_check_branch
        %151 = sbr.rel (%p149) target = $region20
      $region19: #{_lambda_.7} parent=11 // pred_region
        _
      $region20: #{_lambda_.7} parent=11 // pred_fallthru
        _
    $region12: #{_lambda_.7} parent=5 // pred_fallthru
      _
    %p152 = scmp.lt.s32.totalorder %s11, 2
    // Predicated region
    $region21: #{_lambda_.7} parent=5 // pred_check
      %p153 = pneg %p152
    $region22: #{_lambda_.7} parent=5 // pred_check_branch
      %155 = sbr.rel (%p153) target = $region24
    $region23: #{_lambda_.7} parent=5 // pred_region
      // Predicated region
      $region25: #{_lambda_.7} parent=23 // pred_check
        %p156 = pneg %p31
      $region26: #{_lambda_.7} parent=23 // pred_check_branch
        %158 = sbr.rel (%p156) target = $region28
      $region27: #{_lambda_.7} parent=23 // pred_region
        %s159 = smul.u32 4, %s11
        %p160 = scmp.lt.s32.totalorder %s159, 7
        %s161 = scalar_select %p160, %s159, 7
        %s162 = smul.addr %s161, 5
        %s163 = smul.addr %s162, 4
        %s164 = scalar_lea.vmem %s0, %s163
        %s165 = smul.u32 4, %s11
      $region28: #{_lambda_.7} parent=23 // pred_fallthru
        _
    $region24: #{_lambda_.7} parent=5 // pred_fallthru
      _
    %p166 = scmp.le.s32.totalorder 1, %s11
    %p167 = scmp.lt.s32.totalorder %s11, 3
    %p168 = pnand %p166, %p167
    %p169 = pneg %p168
    // Predicated region
    $region29: #{_lambda_.7} parent=5 // pred_check
      _
    $region30: #{_lambda_.7} parent=5 // pred_check_branch
      %171 = sbr.rel (%p168) target = $region32
    $region31: #{_lambda_.7} parent=5 // pred_region
      %s172 = ssub.s32 %s11, 1
      %s173 = smul.u32 4, %s16
      %p174 = scmp.lt.s32.totalorder %s173, 7
      %s175 = scalar_select %p174, %s173, 7
      %s176 = smul.addr %s175, 5
      %s177 = smul.addr %s176, 4
      %s178 = scalar_lea.vmem %s0, %s177
      %p179 = pneg %p37
      %p180 = pneg %p34
      %p181 = pneg %p58
      %p182 = pneg %p55
      %p183 = pneg %p79
      %p184 = pneg %p76
      %p185 = pneg %p105
      %p186 = pneg %p102
      %p187 = scmp.lt.s32.totalorder %s16, 1
      %s188 = scalar_select %p187, %s16, 1
      %s189 = smul.addr %s188, 4
      %s190 = smul.addr %s189, 2
      %s191 = scalar_lea.vmem %s3, %s190
      %p192 = pneg %p131
      %p193 = pneg %p128
      %p194 = scmp.lt.s32.totalorder %s16, 1
      %s195 = scalar_select %p194, %s16, 1
      %s196 = smul.addr %s195, 2
      %s197 = scalar_lea.vmem %s4, %s196
      %s198 = smul.u32 4, %s16
      %p199 = scmp.lt.s32.totalorder %s198, 7
      %s200 = scalar_select %p199, %s198, 7
      %s201 = smul.addr %s200, 5
      %s202 = smul.addr %s201, 4
      %s203 = scalar_lea.vmem %s0, %s202
      %s204 = smul.u32 4, %s16
      %p205 = scmp.lt.s32.totalorder %s16, 1
      %s206 = scalar_select %p205, %s16, 1
      %s207 = smul.addr %s206, 4
      %s208 = smul.addr %s207, 2
      %s209 = scalar_lea.vmem %s3, %s208
      %p210 = scmp.lt.s32.totalorder %s16, 1
      %s211 = scalar_select %p210, %s16, 1
      %s212 = smul.addr %s211, 2
      %s213 = scalar_lea.vmem %s4, %s212
      %215 = vst [vmem:[%s213] sm:$0x3] 0.0
      loop: start=0, step=1, limit=4
      $region33: #{_lambda_.7} parent=31 // loop_pre_header
        _
      $region34: #{_lambda_.7} parent=31 // loop_header
        %s217 = sphi 0, %s221
        %p218 = scmp.ge.s32.totalorder %s217, 4
      $region35: #{_lambda_.7} parent=31 // loop_header_branch
        %220 = sbr.rel (%p218) target = $region39
      $region36: #{_lambda_.7} parent=31 // loop_body
        %s222 = smul.addr %s217, 4
        %s223 = scalar_lea.vmem %s203, %s222
        %v224 = vld [vmem:[%s223] sm:$0x7]
        %v225 = vld [vmem:[%s1] sm:$0xf]
        %s226 = sadd.s32 %s217, 5
        %s227 = smul.addr %s226, 4
        %s228 = scalar_lea.vmem %s203, %s227
        %v229 = vld [vmem:[%s228] sm:$0x7]
        %s230 = scalar_lea.vmem %s1, 4
        %v231 = vld [vmem:[%s230] sm:$0xf]
        %vm232 = vcmask 64512
        %v234 = vsel %vm232, %v229, 0
        %vm236 = vcmask 1043456
        %v238 = vsel %vm236, %v231, 0
        %240 = vmatprep.subr.bf16.mxu0 0
        %241 = vmatpush1.bf16.msra.mxu0 0
        %242 = vmatprep.subr.bf16.mxu0 0
        %243 = vmatpush1.bf16.msra.mxu0 0
        %244 = vmatprep.subr.bf16.mxu0 0
        %245 = vmatpush1.bf16.msra.mxu0 0
        %246 = vmatprep.subr.bf16.mxu0 0
        %247 = vmatpush1.bf16.msra.mxu0 0
        %248 = vmatprep.subr.bf16.mxu0 0
        %249 = vmatpush1.bf16.msra.mxu0 0
        %250 = vmatprep.subr.bf16.mxu0 0
        %251 = vmatpush1.bf16.msra.mxu0 0
        %252 = vmatprep.subr.bf16.mxu0 0
        %253 = vmatpush1.bf16.msra.mxu0 0
        %254 = vmatprep.subr.bf16.mxu0 0
        %255 = vmatpush1.bf16.msra.mxu0 %v238
        %256 = vmatprep.subr.bf16.mxu0 0
        %257 = vmatpush2.bf16.msra.mxu0 0
        %258 = vmatprep.subr.bf16.mxu0 0
        %259 = vmatpush2.bf16.msra.mxu0 0
        %260 = vmatprep.subr.bf16.mxu0 0
        %261 = vmatpush2.bf16.msra.mxu0 0
        %262 = vmatprep.subr.bf16.mxu0 0
        %263 = vmatpush2.bf16.msra.mxu0 0
        %264 = vmatprep.subr.bf16.mxu0 0
        %265 = vmatpush2.bf16.msra.mxu0 0
        %266 = vmatprep.subr.bf16.mxu0 0
        %267 = vmatpush2.bf16.msra.mxu0 0
        %268 = vmatprep.subr.bf16.mxu0 0
        %269 = vmatpush2.bf16.msra.mxu0 0
        %270 = vmatprep.subr.bf16.mxu0 0
        %271 = vmatpush2.bf16.msra.mxu0 0
        %272 = vmatprep.mubr.bf16.mxu0 0
        %273 = vmatmul.mubr.bf16.gmra.mxu0 %v234
        %v274 = vpop.f32.mrf.mxu0
        %v275 = vadd.f32 0.0, %v274
        %v276 = vpop.f32.mrf.mxu0
        %v277 = vpop.f32.mrf.mxu0
        %v278 = vpop.f32.mrf.mxu0
        %279 = vdwg.mxu0
        %v281 = vsel %vm232, %v224, 0
        %v284 = vsel %vm236, %v225, 0
        %286 = vmatprep.subr.bf16.mxu0 0
        %287 = vmatpush1.bf16.msra.mxu0 0
        %288 = vmatprep.subr.bf16.mxu0 0
        %289 = vmatpush1.bf16.msra.mxu0 0
        %290 = vmatprep.subr.bf16.mxu0 0
        %291 = vmatpush1.bf16.msra.mxu0 0
        %292 = vmatprep.subr.bf16.mxu0 0
        %293 = vmatpush1.bf16.msra.mxu0 0
        %294 = vmatprep.subr.bf16.mxu0 0
        %295 = vmatpush1.bf16.msra.mxu0 0
        %296 = vmatprep.subr.bf16.mxu0 0
        %297 = vmatpush1.bf16.msra.mxu0 0
        %298 = vmatprep.subr.bf16.mxu0 0
        %299 = vmatpush1.bf16.msra.mxu0 0
        %300 = vmatprep.subr.bf16.mxu0 0
        %301 = vmatpush1.bf16.msra.mxu0 %v284
        %302 = vmatprep.subr.bf16.mxu0 0
        %303 = vmatpush2.bf16.msra.mxu0 0
        %304 = vmatprep.subr.bf16.mxu0 0
        %305 = vmatpush2.bf16.msra.mxu0 0
        %306 = vmatprep.subr.bf16.mxu0 0
        %307 = vmatpush2.bf16.msra.mxu0 0
        %308 = vmatprep.subr.bf16.mxu0 0
        %309 = vmatpush2.bf16.msra.mxu0 0
        %310 = vmatprep.subr.bf16.mxu0 0
        %311 = vmatpush2.bf16.msra.mxu0 0
        %312 = vmatprep.subr.bf16.mxu0 0
        %313 = vmatpush2.bf16.msra.mxu0 0
        %314 = vmatprep.subr.bf16.mxu0 0
        %315 = vmatpush2.bf16.msra.mxu0 0
        %316 = vmatprep.subr.bf16.mxu0 0
        %317 = vmatpush2.bf16.msra.mxu0 0
        %318 = vmatprep.mubr.bf16.mxu0 0
        %319 = vmatmul.mubr.bf16.gmra.mxu0 %v281
        %v320 = vpop.f32.mrf.mxu0
        %v321 = vadd.f32 %v275, %v320
        %v322 = vpop.f32.mrf.mxu0
        %v323 = vpop.f32.mrf.mxu0
        %v324 = vpop.f32.mrf.mxu0
        %325 = vdwg.mxu0
        %s326 = scalar_lea.vmem %s1, 8
        %v327 = vld [vmem:[%s326] sm:$0xf]
        %v329 = vunpack.c.l.b16 %v224
        %v330 = vpack.c.b16 %v329, %v329
        %v332 = vshrl.u32 %v330, 16
        %v334 = vshll.u32 %v330, 16
        %v336 = vrot.slane %v334, 1
        %v337 = vor.u32 %v332, %v336
        %v339 = vsel %vm232, %v337, 0
        %v342 = vsel %vm236, %v327, 0
        %344 = vmatprep.subr.bf16.mxu0 0
        %345 = vmatpush1.bf16.msra.mxu0 0
        %346 = vmatprep.subr.bf16.mxu0 0
        %347 = vmatpush1.bf16.msra.mxu0 0
        %348 = vmatprep.subr.bf16.mxu0 0
        %349 = vmatpush1.bf16.msra.mxu0 0
        %350 = vmatprep.subr.bf16.mxu0 0
        %351 = vmatpush1.bf16.msra.mxu0 0
        %352 = vmatprep.subr.bf16.mxu0 0
        %353 = vmatpush1.bf16.msra.mxu0 0
        %354 = vmatprep.subr.bf16.mxu0 0
        %355 = vmatpush1.bf16.msra.mxu0 0
        %356 = vmatprep.subr.bf16.mxu0 0
        %357 = vmatpush1.bf16.msra.mxu0 0
        %358 = vmatprep.subr.bf16.mxu0 0
        %359 = vmatpush1.bf16.msra.mxu0 %v342
        %360 = vmatprep.subr.bf16.mxu0 0
        %361 = vmatpush2.bf16.msra.mxu0 0
        %362 = vmatprep.subr.bf16.mxu0 0
        %363 = vmatpush2.bf16.msra.mxu0 0
        %364 = vmatprep.subr.bf16.mxu0 0
        %365 = vmatpush2.bf16.msra.mxu0 0
        %366 = vmatprep.subr.bf16.mxu0 0
        %367 = vmatpush2.bf16.msra.mxu0 0
        %368 = vmatprep.subr.bf16.mxu0 0
        %369 = vmatpush2.bf16.msra.mxu0 0
        %370 = vmatprep.subr.bf16.mxu0 0
        %371 = vmatpush2.bf16.msra.mxu0 0
        %372 = vmatprep.subr.bf16.mxu0 0
        %373 = vmatpush2.bf16.msra.mxu0 0
        %374 = vmatprep.subr.bf16.mxu0 0
        %375 = vmatpush2.bf16.msra.mxu0 0
        %376 = vmatprep.mubr.bf16.mxu0 0
        %377 = vmatmul.mubr.bf16.gmra.mxu0 %v339
        %v378 = vpop.f32.mrf.mxu0
        %v379 = vadd.f32 0.0, %v378
        %v380 = vpop.f32.mrf.mxu0
        %v381 = vpop.f32.mrf.mxu0
        %v382 = vpop.f32.mrf.mxu0
        %383 = vdwg.mxu0
        %v384 = vadd.f32 %v321, %v379
        %s385 = sadd.s32 %s217, 10
        %s386 = smul.addr %s385, 4
        %s387 = scalar_lea.vmem %s203, %s386
        %v388 = vld [vmem:[%s387] sm:$0x7]
        %s389 = scalar_lea.vmem %s1, 12
        %v390 = vld [vmem:[%s389] sm:$0xf]
        %v392 = vsel %vm232, %v388, 0
        %v395 = vsel %vm236, %v390, 0
        %397 = vmatprep.subr.bf16.mxu0 0
        %398 = vmatpush1.bf16.msra.mxu0 0
        %399 = vmatprep.subr.bf16.mxu0 0
        %400 = vmatpush1.bf16.msra.mxu0 0
        %401 = vmatprep.subr.bf16.mxu0 0
        %402 = vmatpush1.bf16.msra.mxu0 0
        %403 = vmatprep.subr.bf16.mxu0 0
        %404 = vmatpush1.bf16.msra.mxu0 0
        %405 = vmatprep.subr.bf16.mxu0 0
        %406 = vmatpush1.bf16.msra.mxu0 0
        %407 = vmatprep.subr.bf16.mxu0 0
        %408 = vmatpush1.bf16.msra.mxu0 0
        %409 = vmatprep.subr.bf16.mxu0 0
        %410 = vmatpush1.bf16.msra.mxu0 0
        %411 = vmatprep.subr.bf16.mxu0 0
        %412 = vmatpush1.bf16.msra.mxu0 %v395
        %413 = vmatprep.subr.bf16.mxu0 0
        %414 = vmatpush2.bf16.msra.mxu0 0
        %415 = vmatprep.subr.bf16.mxu0 0
        %416 = vmatpush2.bf16.msra.mxu0 0
        %417 = vmatprep.subr.bf16.mxu0 0
        %418 = vmatpush2.bf16.msra.mxu0 0
        %419 = vmatprep.subr.bf16.mxu0 0
        %420 = vmatpush2.bf16.msra.mxu0 0
        %421 = vmatprep.subr.bf16.mxu0 0
        %422 = vmatpush2.bf16.msra.mxu0 0
        %423 = vmatprep.subr.bf16.mxu0 0
        %424 = vmatpush2.bf16.msra.mxu0 0
        %425 = vmatprep.subr.bf16.mxu0 0
        %426 = vmatpush2.bf16.msra.mxu0 0
        %427 = vmatprep.subr.bf16.mxu0 0
        %428 = vmatpush2.bf16.msra.mxu0 0
        %429 = vmatprep.mubr.bf16.mxu0 0
        %430 = vmatmul.mubr.bf16.gmra.mxu0 %v392
        %v431 = vpop.f32.mrf.mxu0
        %v432 = vadd.f32 0.0, %v431
        %v433 = vpop.f32.mrf.mxu0
        %v434 = vpop.f32.mrf.mxu0
        %v435 = vpop.f32.mrf.mxu0
        %436 = vdwg.mxu0
        %v437 = vadd.f32 %v384, %v432
        %s438 = sadd.s32 %s217, 15
        %s439 = smul.addr %s438, 4
        %s440 = scalar_lea.vmem %s203, %s439
        %v441 = vld [vmem:[%s440] sm:$0x7]
        %s442 = scalar_lea.vmem %s1, 16
        %v443 = vld [vmem:[%s442] sm:$0xf]
        %v445 = vsel %vm232, %v441, 0
        %v448 = vsel %vm236, %v443, 0
        %450 = vmatprep.subr.bf16.mxu0 0
        %451 = vmatpush1.bf16.msra.mxu0 0
        %452 = vmatprep.subr.bf16.mxu0 0
        %453 = vmatpush1.bf16.msra.mxu0 0
        %454 = vmatprep.subr.bf16.mxu0 0
        %455 = vmatpush1.bf16.msra.mxu0 0
        %456 = vmatprep.subr.bf16.mxu0 0
        %457 = vmatpush1.bf16.msra.mxu0 0
        %458 = vmatprep.subr.bf16.mxu0 0
        %459 = vmatpush1.bf16.msra.mxu0 0
        %460 = vmatprep.subr.bf16.mxu0 0
        %461 = vmatpush1.bf16.msra.mxu0 0
        %462 = vmatprep.subr.bf16.mxu0 0
        %463 = vmatpush1.bf16.msra.mxu0 0
        %464 = vmatprep.subr.bf16.mxu0 0
        %465 = vmatpush1.bf16.msra.mxu0 %v448
        %466 = vmatprep.subr.bf16.mxu0 0
        %467 = vmatpush2.bf16.msra.mxu0 0
        %468 = vmatprep.subr.bf16.mxu0 0
        %469 = vmatpush2.bf16.msra.mxu0 0
        %470 = vmatprep.subr.bf16.mxu0 0
        %471 = vmatpush2.bf16.msra.mxu0 0
        %472 = vmatprep.subr.bf16.mxu0 0
        %473 = vmatpush2.bf16.msra.mxu0 0
        %474 = vmatprep.subr.bf16.mxu0 0
        %475 = vmatpush2.bf16.msra.mxu0 0
        %476 = vmatprep.subr.bf16.mxu0 0
        %477 = vmatpush2.bf16.msra.mxu0 0
        %478 = vmatprep.subr.bf16.mxu0 0
        %479 = vmatpush2.bf16.msra.mxu0 0
        %480 = vmatprep.subr.bf16.mxu0 0
        %481 = vmatpush2.bf16.msra.mxu0 0
        %482 = vmatprep.mubr.bf16.mxu0 0
        %483 = vmatmul.mubr.bf16.gmra.mxu0 %v445
        %v484 = vpop.f32.mrf.mxu0
        %v485 = vadd.f32 0.0, %v484
        %v486 = vpop.f32.mrf.mxu0
        %v487 = vpop.f32.mrf.mxu0
        %v488 = vpop.f32.mrf.mxu0
        %489 = vdwg.mxu0
        %v490 = vadd.f32 %v437, %v485
        %s491 = scalar_lea.vmem %s1, 20
        %v492 = vld [vmem:[%s491] sm:$0xf]
        %v494 = vunpack.c.l.b16 %v388
        %v495 = vpack.c.b16 %v494, %v494
        %v497 = vshrl.u32 %v495, 16
        %v499 = vshll.u32 %v495, 16
        %v501 = vrot.slane %v499, 1
        %v502 = vor.u32 %v497, %v501
        %v504 = vsel %vm232, %v502, 0
        %v507 = vsel %vm236, %v492, 0
        %509 = vmatprep.subr.bf16.mxu0 0
        %510 = vmatpush1.bf16.msra.mxu0 0
        %511 = vmatprep.subr.bf16.mxu0 0
        %512 = vmatpush1.bf16.msra.mxu0 0
        %513 = vmatprep.subr.bf16.mxu0 0
        %514 = vmatpush1.bf16.msra.mxu0 0
        %515 = vmatprep.subr.bf16.mxu0 0
        %516 = vmatpush1.bf16.msra.mxu0 0
        %517 = vmatprep.subr.bf16.mxu0 0
        %518 = vmatpush1.bf16.msra.mxu0 0
        %519 = vmatprep.subr.bf16.mxu0 0
        %520 = vmatpush1.bf16.msra.mxu0 0
        %521 = vmatprep.subr.bf16.mxu0 0
        %522 = vmatpush1.bf16.msra.mxu0 0
        %523 = vmatprep.subr.bf16.mxu0 0
        %524 = vmatpush1.bf16.msra.mxu0 %v507
        %525 = vmatprep.subr.bf16.mxu0 0
        %526 = vmatpush2.bf16.msra.mxu0 0
        %527 = vmatprep.subr.bf16.mxu0 0
        %528 = vmatpush2.bf16.msra.mxu0 0
        %529 = vmatprep.subr.bf16.mxu0 0
        %530 = vmatpush2.bf16.msra.mxu0 0
        %531 = vmatprep.subr.bf16.mxu0 0
        %532 = vmatpush2.bf16.msra.mxu0 0
        %533 = vmatprep.subr.bf16.mxu0 0
        %534 = vmatpush2.bf16.msra.mxu0 0
        %535 = vmatprep.subr.bf16.mxu0 0
        %536 = vmatpush2.bf16.msra.mxu0 0
        %537 = vmatprep.subr.bf16.mxu0 0
        %538 = vmatpush2.bf16.msra.mxu0 0
        %539 = vmatprep.subr.bf16.mxu0 0
        %540 = vmatpush2.bf16.msra.mxu0 0
        %541 = vmatprep.mubr.bf16.mxu0 0
        %542 = vmatmul.mubr.bf16.gmra.mxu0 %v504
        %v543 = vpop.f32.mrf.mxu0
        %v544 = vadd.f32 0.0, %v543
        %v545 = vpop.f32.mrf.mxu0
        %v546 = vpop.f32.mrf.mxu0
        %v547 = vpop.f32.mrf.mxu0
        %548 = vdwg.mxu0
        %v549 = vadd.f32 %v490, %v544
        %s550 = sadd.s32 %s217, 1
        %s551 = smul.addr %s550, 4
        %s552 = scalar_lea.vmem %s203, %s551
        %v553 = vld [vmem:[%s552] sm:$0x7]
        %s554 = scalar_lea.vmem %s1, 24
        %v555 = vld [vmem:[%s554] sm:$0xf]
        %v557 = vsel %vm232, %v553, 0
        %v560 = vsel %vm236, %v555, 0
        %562 = vmatprep.subr.bf16.mxu0 0
        %563 = vmatpush1.bf16.msra.mxu0 0
        %564 = vmatprep.subr.bf16.mxu0 0
        %565 = vmatpush1.bf16.msra.mxu0 0
        %566 = vmatprep.subr.bf16.mxu0 0
        %567 = vmatpush1.bf16.msra.mxu0 0
        %568 = vmatprep.subr.bf16.mxu0 0
        %569 = vmatpush1.bf16.msra.mxu0 0
        %570 = vmatprep.subr.bf16.mxu0 0
        %571 = vmatpush1.bf16.msra.mxu0 0
        %572 = vmatprep.subr.bf16.mxu0 0
        %573 = vmatpush1.bf16.msra.mxu0 0
        %574 = vmatprep.subr.bf16.mxu0 0
        %575 = vmatpush1.bf16.msra.mxu0 0
        %576 = vmatprep.subr.bf16.mxu0 0
        %577 = vmatpush1.bf16.msra.mxu0 %v560
        %578 = vmatprep.subr.bf16.mxu0 0
        %579 = vmatpush2.bf16.msra.mxu0 0
        %580 = vmatprep.subr.bf16.mxu0 0
        %581 = vmatpush2.bf16.msra.mxu0 0
        %582 = vmatprep.subr.bf16.mxu0 0
        %583 = vmatpush2.bf16.msra.mxu0 0
        %584 = vmatprep.subr.bf16.mxu0 0
        %585 = vmatpush2.bf16.msra.mxu0 0
        %586 = vmatprep.subr.bf16.mxu0 0
        %587 = vmatpush2.bf16.msra.mxu0 0
        %588 = vmatprep.subr.bf16.mxu0 0
        %589 = vmatpush2.bf16.msra.mxu0 0
        %590 = vmatprep.subr.bf16.mxu0 0
        %591 = vmatpush2.bf16.msra.mxu0 0
        %592 = vmatprep.subr.bf16.mxu0 0
        %593 = vmatpush2.bf16.msra.mxu0 0
        %594 = vmatprep.mubr.bf16.mxu0 0
        %595 = vmatmul.mubr.bf16.gmra.mxu0 %v557
        %v596 = vpop.f32.mrf.mxu0
        %v597 = vadd.f32 0.0, %v596
        %v598 = vpop.f32.mrf.mxu0
        %v599 = vpop.f32.mrf.mxu0
        %v600 = vpop.f32.mrf.mxu0
        %601 = vdwg.mxu0
        %v602 = vadd.f32 %v549, %v597
        %s603 = sadd.s32 %s550, 5
        %s604 = smul.addr %s603, 4
        %s605 = scalar_lea.vmem %s203, %s604
        %v606 = vld [vmem:[%s605] sm:$0x7]
        %s607 = scalar_lea.vmem %s1, 28
        %v608 = vld [vmem:[%s607] sm:$0xf]
        %v610 = vsel %vm232, %v606, 0
        %v613 = vsel %vm236, %v608, 0
        %615 = vmatprep.subr.bf16.mxu0 0
        %616 = vmatpush1.bf16.msra.mxu0 0
        %617 = vmatprep.subr.bf16.mxu0 0
        %618 = vmatpush1.bf16.msra.mxu0 0
        %619 = vmatprep.subr.bf16.mxu0 0
        %620 = vmatpush1.bf16.msra.mxu0 0
        %621 = vmatprep.subr.bf16.mxu0 0
        %622 = vmatpush1.bf16.msra.mxu0 0
        %623 = vmatprep.subr.bf16.mxu0 0
        %624 = vmatpush1.bf16.msra.mxu0 0
        %625 = vmatprep.subr.bf16.mxu0 0
        %626 = vmatpush1.bf16.msra.mxu0 0
        %627 = vmatprep.subr.bf16.mxu0 0
        %628 = vmatpush1.bf16.msra.mxu0 0
        %629 = vmatprep.subr.bf16.mxu0 0
        %630 = vmatpush1.bf16.msra.mxu0 %v613
        %631 = vmatprep.subr.bf16.mxu0 0
        %632 = vmatpush2.bf16.msra.mxu0 0
        %633 = vmatprep.subr.bf16.mxu0 0
        %634 = vmatpush2.bf16.msra.mxu0 0
        %635 = vmatprep.subr.bf16.mxu0 0
        %636 = vmatpush2.bf16.msra.mxu0 0
        %637 = vmatprep.subr.bf16.mxu0 0
        %638 = vmatpush2.bf16.msra.mxu0 0
        %639 = vmatprep.subr.bf16.mxu0 0
        %640 = vmatpush2.bf16.msra.mxu0 0
        %641 = vmatprep.subr.bf16.mxu0 0
        %642 = vmatpush2.bf16.msra.mxu0 0
        %643 = vmatprep.subr.bf16.mxu0 0
        %644 = vmatpush2.bf16.msra.mxu0 0
        %645 = vmatprep.subr.bf16.mxu0 0
        %646 = vmatpush2.bf16.msra.mxu0 0
        %647 = vmatprep.mubr.bf16.mxu0 0
        %648 = vmatmul.mubr.bf16.gmra.mxu0 %v610
        %v649 = vpop.f32.mrf.mxu0
        %v650 = vadd.f32 0.0, %v649
        %v651 = vpop.f32.mrf.mxu0
        %v652 = vpop.f32.mrf.mxu0
        %v653 = vpop.f32.mrf.mxu0
        %654 = vdwg.mxu0
        %v655 = vadd.f32 %v602, %v650
        %s656 = scalar_lea.vmem %s1, 32
        %v657 = vld [vmem:[%s656] sm:$0xf]
        %v659 = vunpack.c.l.b16 %v553
        %v660 = vpack.c.b16 %v659, %v659
        %v662 = vshrl.u32 %v660, 16
        %v664 = vshll.u32 %v660, 16
        %v666 = vrot.slane %v664, 1
        %v667 = vor.u32 %v662, %v666
        %v669 = vsel %vm232, %v667, 0
        %v672 = vsel %vm236, %v657, 0
        %674 = vmatprep.subr.bf16.mxu0 0
        %675 = vmatpush1.bf16.msra.mxu0 0
        %676 = vmatprep.subr.bf16.mxu0 0
        %677 = vmatpush1.bf16.msra.mxu0 0
        %678 = vmatprep.subr.bf16.mxu0 0
        %679 = vmatpush1.bf16.msra.mxu0 0
        %680 = vmatprep.subr.bf16.mxu0 0
        %681 = vmatpush1.bf16.msra.mxu0 0
        %682 = vmatprep.subr.bf16.mxu0 0
        %683 = vmatpush1.bf16.msra.mxu0 0
        %684 = vmatprep.subr.bf16.mxu0 0
        %685 = vmatpush1.bf16.msra.mxu0 0
        %686 = vmatprep.subr.bf16.mxu0 0
        %687 = vmatpush1.bf16.msra.mxu0 0
        %688 = vmatprep.subr.bf16.mxu0 0
        %689 = vmatpush1.bf16.msra.mxu0 %v672
        %690 = vmatprep.subr.bf16.mxu0 0
        %691 = vmatpush2.bf16.msra.mxu0 0
        %692 = vmatprep.subr.bf16.mxu0 0
        %693 = vmatpush2.bf16.msra.mxu0 0
        %694 = vmatprep.subr.bf16.mxu0 0
        %695 = vmatpush2.bf16.msra.mxu0 0
        %696 = vmatprep.subr.bf16.mxu0 0
        %697 = vmatpush2.bf16.msra.mxu0 0
        %698 = vmatprep.subr.bf16.mxu0 0
        %699 = vmatpush2.bf16.msra.mxu0 0
        %700 = vmatprep.subr.bf16.mxu0 0
        %701 = vmatpush2.bf16.msra.mxu0 0
        %702 = vmatprep.subr.bf16.mxu0 0
        %703 = vmatpush2.bf16.msra.mxu0 0
        %704 = vmatprep.subr.bf16.mxu0 0
        %705 = vmatpush2.bf16.msra.mxu0 0
        %706 = vmatprep.mubr.bf16.mxu0 0
        %707 = vmatmul.mubr.bf16.gmra.mxu0 %v669
        %v708 = vpop.f32.mrf.mxu0
        %v709 = vadd.f32 0.0, %v708
        %v710 = vpop.f32.mrf.mxu0
        %v711 = vpop.f32.mrf.mxu0
        %v712 = vpop.f32.mrf.mxu0
        %713 = vdwg.mxu0
        %v714 = vadd.f32 %v655, %v709
        %v715 = vld [vmem:[%s2] sm:$0x1]
        %v717 = vlaneseq
        %v718 = vshrl.u32 %v717, 7
        %v719 = vsub.s32 0, %v718
        %v720 = vrot.slane %v715, %v719
        %v722 = vadd.f32 %v714, %v720
        %v723 = vmax.f32 %v722, 0.0
        %v724 = vld [vmem:[%s213] sm:$0x1]
        %v725 = vsel %vm236, %v723, 0.0
        %v726 = vrot.slane %v725, 4
        %v727 = vadd.f32 %v725, %v726
        %v728 = vrot.slane %v727, 2
        %v729 = vadd.f32 %v727, %v728
        %v730 = vrot.slane %v729, 1
        %v731 = vadd.f32 %v729, %v730
        %v732 = vadd.f32 %v724, %v731
        %733 = vst [vmem:[%s213] sm:$0x1] %v732
        %v734 = vld [vmem:[%s213 + $0x1] sm:$0x1]
        %v735 = vmul.f32 %v723, %v723
        %v736 = vsel %vm236, %v735, 0.0
        %v737 = vrot.slane %v736, 4
        %v738 = vadd.f32 %v736, %v737
        %v739 = vrot.slane %v738, 2
        %v740 = vadd.f32 %v738, %v739
        %v741 = vrot.slane %v740, 1
        %v742 = vadd.f32 %v740, %v741
        %v743 = vadd.f32 %v734, %v742
        %744 = vst [vmem:[%s213 + $0x1] sm:$0x1] %v743
        %v745 = vpack.c.bf16 %v723, %v723
        %s746 = smul.addr %s217, 2
        %s747 = scalar_lea.vmem %s209, %s746
        %748 = vst [vmem:[%s747] sm:$0x3] %v745
      $region37: #{_lambda_.7} parent=31 // loop_footer
        %s221 = sadd.s32 1, %s217
      $region38: #{_lambda_.7} parent=31 // loop_footer_branch
        %216 = sbr.rel target = $region34
      $region39: #{_lambda_.7} parent=31 // loop_exit
        _
      %p749 = scmp.lt.s32.totalorder %s16, 1
      %s750 = scalar_select %p749, %s16, 1
      %s751 = smul.addr %s750, 4
      %s752 = smul.addr %s751, 2
      %s753 = scalar_lea.vmem %s3, %s752
      %p754 = scmp.lt.s32.totalorder %s16, 1
      %s755 = scalar_select %p754, %s16, 1
      %s756 = smul.addr %s755, 2
      %s757 = scalar_lea.vmem %s4, %s756
      // Predicated region
      $region40: #{_lambda_.7} parent=31 // pred_check
        %p758 = pneg %p102
      $region41: #{_lambda_.7} parent=31 // pred_check_branch
        %760 = sbr.rel (%p758) target = $region43
      $region42: #{_lambda_.7} parent=31 // pred_region
        _
      $region43: #{_lambda_.7} parent=31 // pred_fallthru
        _
      // Predicated region
      $region44: #{_lambda_.7} parent=31 // pred_check
        %p761 = pneg %p128
      $region45: #{_lambda_.7} parent=31 // pred_check_branch
        %763 = sbr.rel (%p761) target = $region47
      $region46: #{_lambda_.7} parent=31 // pred_region
        _
      $region47: #{_lambda_.7} parent=31 // pred_fallthru
        _
    $region32: #{_lambda_.7} parent=5 // pred_fallthru
      _
    %p764 = scmp.le.s32.totalorder 2, %s11
    // Predicated region
    $region48: #{_lambda_.7} parent=5 // pred_check
      %p765 = pneg %p764
    $region49: #{_lambda_.7} parent=5 // pred_check_branch
      %767 = sbr.rel (%p765) target = $region51
    $region50: #{_lambda_.7} parent=5 // pred_region
      %s768 = ssub.s32 %s11, 2
      // Predicated region
      $region52: #{_lambda_.7} parent=50 // pred_check
        %p769 = pneg %p108
      $region53: #{_lambda_.7} parent=50 // pred_check_branch
        %771 = sbr.rel (%p769) target = $region55
      $region54: #{_lambda_.7} parent=50 // pred_region
        %p772 = scmp.lt.s32.totalorder %s17, 1
        %s773 = scalar_select %p772, %s17, 1
        %s774 = smul.addr %s773, 4
        %s775 = smul.addr %s774, 2
        %s776 = scalar_lea.vmem %s3, %s775
      $region55: #{_lambda_.7} parent=50 // pred_fallthru
        _
      // Predicated region
      $region56: #{_lambda_.7} parent=50 // pred_check
        %p777 = pneg %p134
      $region57: #{_lambda_.7} parent=50 // pred_check_branch
        %779 = sbr.rel (%p777) target = $region59
      $region58: #{_lambda_.7} parent=50 // pred_region
        %p780 = scmp.lt.s32.totalorder %s17, 1
        %s781 = scalar_select %p780, %s17, 1
        %s782 = smul.addr %s781, 2
        %s783 = scalar_lea.vmem %s4, %s782
      $region59: #{_lambda_.7} parent=50 // pred_fallthru
        _
    $region51: #{_lambda_.7} parent=5 // pred_fallthru
      _
  $region6: #{_lambda_.7} parent=0 // loop_footer
    %s15 = sadd.s32 1, %s11
  $region7: #{_lambda_.7} parent=0 // loop_footer_branch
    %10 = sbr.rel target = $region3
  $region8: #{_lambda_.7} parent=0 // loop_exit
    _

// kernel: _lambda_.8
$region0: #{_lambda_.8}
  #allocation0 [shape = 'u32[]', space=smem, size = 0x4, offset = 0x4, fixed_abs, tag = 'smem constant byte address 0x4 - core index']
  #allocation1 [shape = 'u32[144,128]{1,0:T(1,128)}', space=vmem, size = 0x12000, scoped, tag = 'internal scratch']
  %s0 = inlined_call_operand.vmem [shape: f32[2,128], index: 0, kind: input, shape index: {}]
  %s1 = inlined_call_operand.vmem [shape: f32[128,256], index: 1, kind: input, shape index: {}]
  %s2 = inlined_call_operand.vmem [shape: f32[1,256], index: 2, kind: input, shape index: {}]
  %s3 = inlined_call_operand.vmem [shape: f32[1,256], index: 3, kind: input, shape index: {}]
  %s4 = inlined_call_operand.vmem [shape: f32[1,256], index: 4, kind: input, shape index: {}]
  %s5 = inlined_call_operand.vmem [shape: f32[8,128], index: 5, kind: input, shape index: {}]
  %s6 = inlined_call_operand.vmem [shape: f32[1,128], index: 6, kind: input, shape index: {}]
  %s7 = inlined_call_operand.vmem [shape: f32[1,128], index: 7, kind: input, shape index: {}]
  %s8 = inlined_call_operand.vmem [shape: f32[1,128], index: 8, kind: input, shape index: {}]
  %s9 = inlined_call_operand.vmem [shape: f32[2,8], index: 9, kind: input, shape index: {}]
  %s10 = inlined_call_operand.vmem [shape: f32[2,128], index: 10, kind: output, shape index: {0}]
  %s11 = inlined_call_operand.hbm [shape: f32[2,8], index: 11, kind: output, shape index: {1}]
  %s12 = inlined_call_operand.hbm [shape: f32[2,8], index: 12, kind: output, shape index: {2}]
  %13 = xla_tuple %s10, %s11, %s12
  %s14 = sld [smem:[#allocation0]]
  $region66: #{_lambda_.8} parent=0
    _
  %s16 = ssub.s32 1, %s14
  %s17 = scalar_select 0, %s16, %s14
  $region1: #{_lambda_.8} parent=0
    #allocation2 [shape = 'u8[1024]{0}', space=vmem, size = 0x400, scoped, tag = 'output window, operand 1, single buffered']
    #allocation3 [shape = 's32[1]{0}', space=sflag, size = 0x4, scoped, tag = 'scoped memory for _lambda_.8']
    #allocation4 [shape = 'u8[1024]{0}', space=vmem, size = 0x400, scoped, tag = 'output window, operand 2, single buffered']
    #allocation5 [shape = 's32[1]{0}', space=sflag, size = 0x4, scoped, tag = 'scoped memory for _lambda_.8']
    %18 = vsyncpa [#allocation3], 0
    %19 = vsyncpa [#allocation5], 0
    // Predicated region
    $region2: #{_lambda_.8} parent=1 // pred_check
      _
    $region3: #{_lambda_.8} parent=1 // pred_check_branch
      %21 = sbr.rel (0) target = $region5
    $region4: #{_lambda_.8} parent=1 // pred_region
      _
    $region5: #{_lambda_.8} parent=1 // pred_fallthru
      _
    // Predicated region
    $region6: #{_lambda_.8} parent=1 // pred_check
      _
    $region7: #{_lambda_.8} parent=1 // pred_check_branch
      %23 = sbr.rel (0) target = $region9
    $region8: #{_lambda_.8} parent=1 // pred_region
      _
    $region9: #{_lambda_.8} parent=1 // pred_fallthru
      _
    // Predicated region
    $region10: #{_lambda_.8} parent=1 // pred_check
      _
    $region11: #{_lambda_.8} parent=1 // pred_check_branch
      %25 = sbr.rel (0) target = $region13
    $region12: #{_lambda_.8} parent=1 // pred_region
      _
    $region13: #{_lambda_.8} parent=1 // pred_fallthru
      _
    // Predicated region
    $region14: #{_lambda_.8} parent=1 // pred_check
      _
    $region15: #{_lambda_.8} parent=1 // pred_check_branch
      %27 = sbr.rel (0) target = $region17
    $region16: #{_lambda_.8} parent=1 // pred_region
      _
    $region17: #{_lambda_.8} parent=1 // pred_fallthru
      _
    // Predicated region
    $region18: #{_lambda_.8} parent=1 // pred_check
      _
    $region19: #{_lambda_.8} parent=1 // pred_check_branch
      %29 = sbr.rel (0) target = $region21
    $region20: #{_lambda_.8} parent=1 // pred_region
      _
    $region21: #{_lambda_.8} parent=1 // pred_fallthru
      _
    // Predicated region
    $region22: #{_lambda_.8} parent=1 // pred_check
      _
    $region23: #{_lambda_.8} parent=1 // pred_check_branch
      %31 = sbr.rel (0) target = $region25
    $region24: #{_lambda_.8} parent=1 // pred_region
      _
    $region25: #{_lambda_.8} parent=1 // pred_fallthru
      _
    // Predicated region
    $region26: #{_lambda_.8} parent=1 // pred_check
      _
    $region27: #{_lambda_.8} parent=1 // pred_check_branch
      %33 = sbr.rel (0) target = $region29
    $region28: #{_lambda_.8} parent=1 // pred_region
      _
    $region29: #{_lambda_.8} parent=1 // pred_fallthru
      _
    // Predicated region
    $region30: #{_lambda_.8} parent=1 // pred_check
      _
    $region31: #{_lambda_.8} parent=1 // pred_check_branch
      %35 = sbr.rel (0) target = $region33
    $region32: #{_lambda_.8} parent=1 // pred_region
      _
    $region33: #{_lambda_.8} parent=1 // pred_fallthru
      _
    // Predicated region
    $region34: #{_lambda_.8} parent=1 // pred_check
      _
    $region35: #{_lambda_.8} parent=1 // pred_check_branch
      %37 = sbr.rel (0) target = $region37
    $region36: #{_lambda_.8} parent=1 // pred_region
      _
    $region37: #{_lambda_.8} parent=1 // pred_fallthru
      _
    // Predicated region
    $region38: #{_lambda_.8} parent=1 // pred_check
      _
    $region39: #{_lambda_.8} parent=1 // pred_check_branch
      %39 = sbr.rel (0) target = $region41
    $region40: #{_lambda_.8} parent=1 // pred_region
      _
    $region41: #{_lambda_.8} parent=1 // pred_fallthru
      _
    %v40 = vld [vmem:[%s0] sm:$0x3]
    %v41 = vld [vmem:[%s1] sm:$0xff]
    %v42 = vld [vmem:[%s1 + $0x8] sm:$0xff]
    %v43 = vld [vmem:[%s1 + $0x10] sm:$0xff]
    %v44 = vld [vmem:[%s1 + $0x18] sm:$0xff]
    %v45 = vld [vmem:[%s1 + $0x20] sm:$0xff]
    %v46 = vld [vmem:[%s1 + $0x28] sm:$0xff]
    %v47 = vld [vmem:[%s1 + $0x30] sm:$0xff]
    %v48 = vld [vmem:[%s1 + $0x38] sm:$0xff]
    %v49 = vld [vmem:[%s1 + $0x40] sm:$0xff]
    %v50 = vld [vmem:[%s1 + $0x48] sm:$0xff]
    %v51 = vld [vmem:[%s1 + $0x50] sm:$0xff]
    %v52 = vld [vmem:[%s1 + $0x58] sm:$0xff]
    %v53 = vld [vmem:[%s1 + $0x60] sm:$0xff]
    %v54 = vld [vmem:[%s1 + $0x68] sm:$0xff]
    %v55 = vld [vmem:[%s1 + $0x70] sm:$0xff]
    %v56 = vld [vmem:[%s1 + $0x78] sm:$0xff]
    %v57 = vld [vmem:[%s1 + $0x80] sm:$0xff]
    %v58 = vld [vmem:[%s1 + $0x88] sm:$0xff]
    %v59 = vld [vmem:[%s1 + $0x90] sm:$0xff]
    %v60 = vld [vmem:[%s1 + $0x98] sm:$0xff]
    %v61 = vld [vmem:[%s1 + $0xa0] sm:$0xff]
    %v62 = vld [vmem:[%s1 + $0xa8] sm:$0xff]
    %v63 = vld [vmem:[%s1 + $0xb0] sm:$0xff]
    %v64 = vld [vmem:[%s1 + $0xb8] sm:$0xff]
    %v65 = vld [vmem:[%s1 + $0xc0] sm:$0xff]
    %v66 = vld [vmem:[%s1 + $0xc8] sm:$0xff]
    %v67 = vld [vmem:[%s1 + $0xd0] sm:$0xff]
    %v68 = vld [vmem:[%s1 + $0xd8] sm:$0xff]
    %v69 = vld [vmem:[%s1 + $0xe0] sm:$0xff]
    %v70 = vld [vmem:[%s1 + $0xe8] sm:$0xff]
    %v71 = vld [vmem:[%s1 + $0xf0] sm:$0xff]
    %v72 = vld [vmem:[%s1 + $0xf8] sm:$0xff]
    %v73 = vld [vmem:[%s2] sm:$0x3]
    %v75 = vlaneseq
    %v76 = vshrl.u32 %v75, 7
    %v77 = vsub.s32 0, %v76
    %v78 = vrot.slane %v73, %v77
    %v79 = vlaneseq
    %v80 = vshrl.u32 %v79, 7
    %v81 = vsub.s32 1, %v80
    %v82 = vrot.slane %v73, %v81
    %85 = vmatprep.subr.mxu0 %v72
    %86 = vmatpush1.msra.mxu0 %v71
    %87 = vmatprep.subr.mxu0 %v70
    %88 = vmatpush1.msra.mxu0 %v69
    %89 = vmatprep.subr.mxu0 %v68
    %90 = vmatpush1.msra.mxu0 %v67
    %91 = vmatprep.subr.mxu0 %v66
    %92 = vmatpush1.msra.mxu0 %v65
    %93 = vmatprep.subr.mxu0 %v64
    %94 = vmatpush1.msra.mxu0 %v63
    %95 = vmatprep.subr.mxu0 %v62
    %96 = vmatpush1.msra.mxu0 %v61
    %97 = vmatprep.subr.mxu0 %v60
    %98 = vmatpush1.msra.mxu0 %v59
    %99 = vmatprep.subr.mxu0 %v58
    %100 = vmatpush1.msra.mxu0 %v57
    %101 = vmatprep.subr.mxu0 %v56
    %102 = vmatpush1.msra.mxu0 %v55
    %103 = vmatprep.subr.mxu0 %v54
    %104 = vmatpush1.msra.mxu0 %v53
    %105 = vmatprep.subr.mxu0 %v52
    %106 = vmatpush1.msra.mxu0 %v51
    %107 = vmatprep.subr.mxu0 %v50
    %108 = vmatpush1.msra.mxu0 %v49
    %109 = vmatprep.subr.mxu0 %v48
    %110 = vmatpush1.msra.mxu0 %v47
    %111 = vmatprep.subr.mxu0 %v46
    %112 = vmatpush1.msra.mxu0 %v45
    %113 = vmatprep.subr.mxu0 %v44
    %114 = vmatpush1.msra.mxu0 %v43
    %115 = vmatprep.subr.mxu0 %v42
    %116 = vmatpush1.msra.mxu0 %v41
    %117 = vmatprep.subr.mxu0 0.0
    %118 = vmatpush2.msra.mxu0 0.0
    %119 = vmatprep.subr.mxu0 0.0
    %120 = vmatpush2.msra.mxu0 0.0
    %121 = vmatprep.subr.mxu0 0.0
    %122 = vmatpush2.msra.mxu0 0.0
    %123 = vmatprep.subr.mxu0 0.0
    %124 = vmatpush2.msra.mxu0 0.0
    %125 = vmatprep.subr.mxu0 0.0
    %126 = vmatpush2.msra.mxu0 0.0
    %127 = vmatprep.subr.mxu0 0.0
    %128 = vmatpush2.msra.mxu0 0.0
    %129 = vmatprep.subr.mxu0 0.0
    %130 = vmatpush2.msra.mxu0 0.0
    %131 = vmatprep.subr.mxu0 0.0
    %132 = vmatpush2.msra.mxu0 0.0
    %133 = vmatprep.subr.mxu0 0.0
    %134 = vmatpush2.msra.mxu0 0.0
    %135 = vmatprep.subr.mxu0 0.0
    %136 = vmatpush2.msra.mxu0 0.0
    %137 = vmatprep.subr.mxu0 0.0
    %138 = vmatpush2.msra.mxu0 0.0
    %139 = vmatprep.subr.mxu0 0.0
    %140 = vmatpush2.msra.mxu0 0.0
    %141 = vmatprep.subr.mxu0 0.0
    %142 = vmatpush2.msra.mxu0 0.0
    %143 = vmatprep.subr.mxu0 0.0
    %144 = vmatpush2.msra.mxu0 0.0
    %145 = vmatprep.subr.mxu0 0.0
    %146 = vmatpush2.msra.mxu0 0.0
    %147 = vmatprep.subr.mxu0 0.0
    %148 = vmatpush2.msra.mxu0 0.0
    %149 = vmatprep.mubr.f32.mxu0 0.0
    %150 = vmatmul.mubr.f32.gmra.mxu0 %v40
    %v151 = vpop.f32.mrf.mxu0
    %v152 = vadd.f32 %v78, %v151
    %v153 = vpop.f32.mrf.mxu0
    %v154 = vadd.f32 %v82, %v153
    %155 = vdwg.mxu0
    %vm156 = vcmask 1041408
    %v157 = vsel %vm156, %v152, 0.0
    %v158 = vrot.slane %v157, 4
    %v159 = vadd.f32 %v157, %v158
    %v160 = vrot.slane %v159, 2
    %v161 = vadd.f32 %v159, %v160
    %v162 = vrot.slane %v161, 1
    %v163 = vadd.f32 %v161, %v162
    %v164 = vsel %vm156, %v154, 0.0
    %v165 = vrot.slane %v164, 4
    %v166 = vadd.f32 %v164, %v165
    %v167 = vrot.slane %v166, 2
    %v168 = vadd.f32 %v166, %v167
    %v169 = vrot.slane %v168, 1
    %v170 = vadd.f32 %v168, %v169
    %v171 = vrcp.pop 2.0
    %v172 = vmul.f32 %v163, %v171
    %v173 = vmul.f32 %v170, %v171
    %v174 = vsub.f32 %v152, %v172
    %v175 = vsub.f32 %v154, %v173
    %v176 = vmul.f32 %v174, %v174
    %v177 = vmul.f32 %v175, %v175
    %v178 = vsel %vm156, %v176, 0.0
    %v179 = vrot.slane %v178, 4
    %v180 = vadd.f32 %v178, %v179
    %v181 = vrot.slane %v180, 2
    %v182 = vadd.f32 %v180, %v181
    %v183 = vrot.slane %v182, 1
    %v184 = vadd.f32 %v182, %v183
    %v185 = vsel %vm156, %v177, 0.0
    %v186 = vrot.slane %v185, 4
    %v187 = vadd.f32 %v185, %v186
    %v188 = vrot.slane %v187, 2
    %v189 = vadd.f32 %v187, %v188
    %v190 = vrot.slane %v189, 1
    %v191 = vadd.f32 %v189, %v190
    %v192 = vmul.f32 %v184, %v171
    %v193 = vmul.f32 %v191, %v171
    %v194 = vld [vmem:[%s3] sm:$0x3]
    %v196 = vlaneseq
    %v197 = vshrl.u32 %v196, 7
    %v198 = vsub.s32 0, %v197
    %v199 = vrot.slane %v194, %v198
    %v200 = vlaneseq
    %v201 = vshrl.u32 %v200, 7
    %v202 = vsub.s32 1, %v201
    %v203 = vrot.slane %v194, %v202
    %v206 = vmul.f32 %v199, %v174
    %v207 = vmul.f32 %v203, %v175
    %v208 = vadd.f32 %v192, 1e-05
    %v209 = vadd.f32 %v193, 1e-05
    %v210 = vrsqrt.pop %v208
    %v211 = vrsqrt.pop %v209
    %v212 = vmul.f32 %v206, %v210
    %v213 = vmul.f32 %v207, %v211
    %v214 = vld [vmem:[%s4] sm:$0x3]
    %v216 = vlaneseq
    %v217 = vshrl.u32 %v216, 7
    %v218 = vsub.s32 0, %v217
    %v219 = vrot.slane %v214, %v218
    %v220 = vlaneseq
    %v221 = vshrl.u32 %v220, 7
    %v222 = vsub.s32 1, %v221
    %v223 = vrot.slane %v214, %v222
    %v226 = vadd.f32 %v212, %v219
    %v227 = vadd.f32 %v213, %v223
    %v228 = vld [vmem:[%s9] sm:$0x3]
    %v229 = vmul.f32 %v227, 0.5
    %v230 = vmul.f32 %v229, 1.442695
    %v231 = vpow.pop %v230
    %v232 = vmul.f32 %v228, %v231
    %v233 = vadd.f32 %v232, %v226
    %v234 = vld [vmem:[%s5] sm:$0xff]
    %v235 = vld [vmem:[%s6] sm:$0x1]
    %v237 = vlaneseq
    %v238 = vshrl.u32 %v237, 7
    %v239 = vsub.s32 0, %v238
    %v240 = vrot.slane %v235, %v239
    %vm242 = vcmask 64512
    %v244 = vsel %vm242, %v233, 0
    %246 = vmatprep.subr.mxu0 0.0
    %247 = vmatpush1.msra.mxu0 0.0
    %248 = vmatprep.subr.mxu0 0.0
    %249 = vmatpush1.msra.mxu0 0.0
    %250 = vmatprep.subr.mxu0 0.0
    %251 = vmatpush1.msra.mxu0 0.0
    %252 = vmatprep.subr.mxu0 0.0
    %253 = vmatpush1.msra.mxu0 0.0
    %254 = vmatprep.subr.mxu0 0.0
    %255 = vmatpush1.msra.mxu0 0.0
    %256 = vmatprep.subr.mxu0 0.0
    %257 = vmatpush1.msra.mxu0 0.0
    %258 = vmatprep.subr.mxu0 0.0
    %259 = vmatpush1.msra.mxu0 0.0
    %260 = vmatprep.subr.mxu0 0.0
    %261 = vmatpush1.msra.mxu0 0.0
    %262 = vmatprep.subr.mxu0 0.0
    %263 = vmatpush1.msra.mxu0 0.0
    %264 = vmatprep.subr.mxu0 0.0
    %265 = vmatpush1.msra.mxu0 0.0
    %266 = vmatprep.subr.mxu0 0.0
    %267 = vmatpush1.msra.mxu0 0.0
    %268 = vmatprep.subr.mxu0 0.0
    %269 = vmatpush1.msra.mxu0 0.0
    %270 = vmatprep.subr.mxu0 0.0
    %271 = vmatpush1.msra.mxu0 0.0
    %272 = vmatprep.subr.mxu0 0.0
    %273 = vmatpush1.msra.mxu0 0.0
    %274 = vmatprep.subr.mxu0 0.0
    %275 = vmatpush1.msra.mxu0 0.0
    %276 = vmatprep.subr.mxu0 0.0
    %277 = vmatpush1.msra.mxu0 %v234
    %278 = vmatprep.subr.mxu0 0.0
    %279 = vmatpush2.msra.mxu0 0.0
    %280 = vmatprep.subr.mxu0 0.0
    %281 = vmatpush2.msra.mxu0 0.0
    %282 = vmatprep.subr.mxu0 0.0
    %283 = vmatpush2.msra.mxu0 0.0
    %284 = vmatprep.subr.mxu0 0.0
    %285 = vmatpush2.msra.mxu0 0.0
    %286 = vmatprep.subr.mxu0 0.0
    %287 = vmatpush2.msra.mxu0 0.0
    %288 = vmatprep.subr.mxu0 0.0
    %289 = vmatpush2.msra.mxu0 0.0
    %290 = vmatprep.subr.mxu0 0.0
    %291 = vmatpush2.msra.mxu0 0.0
    %292 = vmatprep.subr.mxu0 0.0
    %293 = vmatpush2.msra.mxu0 0.0
    %294 = vmatprep.subr.mxu0 0.0
    %295 = vmatpush2.msra.mxu0 0.0
    %296 = vmatprep.subr.mxu0 0.0
    %297 = vmatpush2.msra.mxu0 0.0
    %298 = vmatprep.subr.mxu0 0.0
    %299 = vmatpush2.msra.mxu0 0.0
    %300 = vmatprep.subr.mxu0 0.0
    %301 = vmatpush2.msra.mxu0 0.0
    %302 = vmatprep.subr.mxu0 0.0
    %303 = vmatpush2.msra.mxu0 0.0
    %304 = vmatprep.subr.mxu0 0.0
    %305 = vmatpush2.msra.mxu0 0.0
    %306 = vmatprep.subr.mxu0 0.0
    %307 = vmatpush2.msra.mxu0 0.0
    %308 = vmatprep.subr.mxu0 0.0
    %309 = vmatpush2.msra.mxu0 0.0
    %310 = vmatprep.mubr.f32.mxu0 0.0
    %311 = vmatmul.mubr.f32.gmra.mxu0 %v244
    %v312 = vpop.f32.mrf.mxu0
    %v313 = vadd.f32 %v240, %v312
    %v314 = vpop.f32.mrf.mxu0
    %315 = vdwg.mxu0
    %v316 = vsel %vm156, %v313, 0.0
    %v317 = vrot.slane %v316, 4
    %v318 = vadd.f32 %v316, %v317
    %v319 = vrot.slane %v318, 2
    %v320 = vadd.f32 %v318, %v319
    %v321 = vrot.slane %v320, 1
    %v322 = vadd.f32 %v320, %v321
    %v323 = vmul.f32 %v322, %v171
    %v324 = vsub.f32 %v313, %v323
    %v325 = vmul.f32 %v324, %v324
    %v326 = vsel %vm156, %v325, 0.0
    %v327 = vrot.slane %v326, 4
    %v328 = vadd.f32 %v326, %v327
    %v329 = vrot.slane %v328, 2
    %v330 = vadd.f32 %v328, %v329
    %v331 = vrot.slane %v330, 1
    %v332 = vadd.f32 %v330, %v331
    %v333 = vmul.f32 %v332, %v171
    %v334 = vld [vmem:[%s7] sm:$0x1]
    %v336 = vlaneseq
    %v337 = vshrl.u32 %v336, 7
    %v338 = vsub.s32 0, %v337
    %v339 = vrot.slane %v334, %v338
    %v341 = vmul.f32 %v339, %v324
    %v342 = vadd.f32 %v333, 1e-05
    %v343 = vrsqrt.pop %v342
    %v344 = vmul.f32 %v341, %v343
    %v345 = vld [vmem:[%s8] sm:$0x1]
    %v347 = vlaneseq
    %v348 = vshrl.u32 %v347, 7
    %v349 = vsub.s32 0, %v348
    %v350 = vrot.slane %v345, %v349
    %v352 = vadd.f32 %v344, %v350
    %353 = vst [vmem:[%s10] sm:$0x3] %v352
    %vm354 = vcmask 58368
    %355 = vst.msk [vmem:[#allocation2] sm:$0x3] %vm354, %v226
    %356 = vst.msk [vmem:[#allocation4] sm:$0x3] %vm354, %v227
    // Predicated region
    $region42: #{_lambda_.8} parent=1 // pred_check
      _
    $region43: #{_lambda_.8} parent=1 // pred_check_branch
      %358 = sbr.rel (0) target = $region45
    $region44: #{_lambda_.8} parent=1 // pred_region
      _
    $region45: #{_lambda_.8} parent=1 // pred_fallthru
      _
    // Predicated region
    $region46: #{_lambda_.8} parent=1 // pred_check
      _
    $region47: #{_lambda_.8} parent=1 // pred_check_branch
      %360 = sbr.rel (0) target = $region49
    $region48: #{_lambda_.8} parent=1 // pred_region
      %s362 = ssub.s32 32, 32
      %363 = vsyncadd [#allocation3], %s362
      %s365 = sshll.u32 [#allocation2], 4
      %s366 = int_to_ptr.vmem [resolvable:$true] %s365
      %368 = dma.vmem_to_hbm [thread:$0]  %s366, 32, %s11, [#allocation3]
    $region49: #{_lambda_.8} parent=1 // pred_fallthru
      _
    // Predicated region
    $region50: #{_lambda_.8} parent=1 // pred_check
      _
    $region51: #{_lambda_.8} parent=1 // pred_check_branch
      %370 = sbr.rel (0) target = $region53
    $region52: #{_lambda_.8} parent=1 // pred_region
      %s372 = ssub.s32 32, 32
      %373 = vsyncadd [#allocation5], %s372
      %s375 = sshll.u32 [#allocation4], 4
      %s376 = int_to_ptr.vmem [resolvable:$true] %s375
      %378 = dma.vmem_to_hbm [thread:$0]  %s376, 32, %s12, [#allocation5]
    $region53: #{_lambda_.8} parent=1 // pred_fallthru
      _
    // Predicated region
    $region54: #{_lambda_.8} parent=1 // pred_check
      _
    $region55: #{_lambda_.8} parent=1 // pred_check_branch
      %380 = sbr.rel (0) target = $region57
    $region56: #{_lambda_.8} parent=1 // pred_region
      _
    $region57: #{_lambda_.8} parent=1 // pred_fallthru
      _
    // Predicated region
    $region58: #{_lambda_.8} parent=1 // pred_check
      _
    $region59: #{_lambda_.8} parent=1 // pred_check_branch
      %382 = sbr.rel (0) target = $region61
    $region60: #{_lambda_.8} parent=1 // pred_region
      %383 = dma.done [#allocation3], 32
    $region61: #{_lambda_.8} parent=1 // pred_fallthru
      _
    // Predicated region
    $region62: #{_lambda_.8} parent=1 // pred_check
      _
    $region63: #{_lambda_.8} parent=1 // pred_check_branch
      %385 = sbr.rel (0) target = $region65
    $region64: #{_lambda_.8} parent=1 // pred_region
      %386 = dma.done [#allocation5], 32
    $region65: #{_lambda_.8} parent=1 // pred_fallthru
      _
    %387 = vsyncpa [#allocation3], 1
    %388 = vsyncpa [#allocation5], 1

// kernel: _lambda_.9
$region0: #{_lambda_.9}
  #allocation0 [shape = 'u32[]', space=smem, size = 0x4, offset = 0x4, fixed_abs, tag = 'smem constant byte address 0x4 - core index']
  #allocation1 [shape = 'u32[144,128]{1,0:T(1,128)}', space=vmem, size = 0x12000, scoped, tag = 'internal scratch']
  %s0 = inlined_call_operand.vmem [shape: bf16[2,9,9,8], index: 0, kind: input, shape index: {}]
  %s1 = inlined_call_operand.vmem [shape: bf16[9,8,128], index: 1, kind: input, shape index: {}]
  %s2 = inlined_call_operand.vmem [shape: f32[1,128], index: 2, kind: input, shape index: {}]
  %s3 = inlined_call_operand.vmem [shape: bf16[2,7,7,128], index: 3, kind: output, shape index: {0}]
  %s4 = inlined_call_operand.vmem [shape: f32[2,2,128], index: 4, kind: output, shape index: {1}]
  %5 = xla_tuple %s3, %s4
  %s6 = sld [smem:[#allocation0]]
  $region60: #{_lambda_.9} parent=0
    _
  %s8 = ssub.s32 1, %s6
  %s9 = scalar_select 0, %s8, %s6
  loop: start=0, step=1, limit=4
  $region2: #{_lambda_.9} parent=0 // loop_pre_header
    _
  $region3: #{_lambda_.9} parent=0 // loop_header
    %s11 = sphi 0, %s15
    %p12 = scmp.ge.s32.totalorder %s11, 4
    %s21 = sphi 0, %s23
    %s24 = sphi 0, %s21
    %s25 = sphi 0, %s24
    %s41 = sphi 0, %s25
    %s45 = sphi 0, %s45
    %s47 = sphi 0, %s45
    %s48 = sphi 0, %s47
    %s62 = sphi 0, %s48
    %s66 = sphi 0, %s66
    %s68 = sphi 0, %s66
    %s69 = sphi 0, %s68
    %s83 = sphi 0, %s69
    %s89 = sphi 0, %s91
    %s92 = sphi 0, %s89
    %s93 = sphi 0, %s92
    %s109 = sphi 0, %s93
    %s115 = sphi 0, %s117
    %s118 = sphi 0, %s115
    %s119 = sphi 0, %s118
    %s135 = sphi 0, %s119
  $region4: #{_lambda_.9} parent=0 // loop_header_branch
    %14 = sbr.rel (%p12) target = $region8
  $region5: #{_lambda_.9} parent=0 // loop_body
    %s16 = ssub.s32 %s11, 1
    %s17 = ssub.s32 %s11, 2
    %s18 = sadd.s32 %s11, 1
    %s19 = ssub.s32 %s11, %s18
    %p20 = scmp.eq.s32.totalorder %s19, 0
    %s22 = sadd.s32 %s21, 1
    %s23 = scalar_select %p20, %s21, %s22
    %p26 = pneg %p20
    %p27 = scmp.eq.s32.totalorder %s11, 1
    %p28 = por %p26, %p27
    %p29 = scmp.ne.s32.totalorder %s21, %s24
    %p30 = scmp.eq.s32.totalorder %s11, 0
    %p31 = por %p29, %p30
    %p32 = scmp.ne.s32.totalorder %s21, %s24
    %p33 = scmp.eq.s32.totalorder %s16, 1
    %p34 = por %p32, %p33
    %p35 = scmp.ne.s32.totalorder %s24, %s25
    %p36 = scmp.eq.s32.totalorder %s16, 0
    %p37 = por %p35, %p36
    %p38 = scmp.ne.s32.totalorder %s24, %s25
    %p39 = scmp.eq.s32.totalorder %s17, 1
    %p40 = por %p38, %p39
    %p42 = scmp.ne.s32.totalorder %s25, %s41
    %p43 = scmp.eq.s32.totalorder %s17, 0
    %p44 = por %p42, %p43
    %s46 = sadd.s32 %s45, 1
    %p49 = scmp.eq.s32.totalorder %s11, 1
    %p50 = scmp.ne.s32.totalorder %s45, %s47
    %p51 = scmp.eq.s32.totalorder %s11, 0
    %p52 = por %p50, %p51
    %p53 = scmp.ne.s32.totalorder %s45, %s47
    %p54 = scmp.eq.s32.totalorder %s16, 1
    %p55 = por %p53, %p54
    %p56 = scmp.ne.s32.totalorder %s47, %s48
    %p57 = scmp.eq.s32.totalorder %s16, 0
    %p58 = por %p56, %p57
    %p59 = scmp.ne.s32.totalorder %s47, %s48
    %p60 = scmp.eq.s32.totalorder %s17, 1
    %p61 = por %p59, %p60
    %p63 = scmp.ne.s32.totalorder %s48, %s62
    %p64 = scmp.eq.s32.totalorder %s17, 0
    %p65 = por %p63, %p64
    %s67 = sadd.s32 %s66, 1
    %p70 = scmp.eq.s32.totalorder %s11, 1
    %p71 = scmp.ne.s32.totalorder %s66, %s68
    %p72 = scmp.eq.s32.totalorder %s11, 0
    %p73 = por %p71, %p72
    %p74 = scmp.ne.s32.totalorder %s66, %s68
    %p75 = scmp.eq.s32.totalorder %s16, 1
    %p76 = por %p74, %p75
    %p77 = scmp.ne.s32.totalorder %s68, %s69
    %p78 = scmp.eq.s32.totalorder %s16, 0
    %p79 = por %p77, %p78
    %p80 = scmp.ne.s32.totalorder %s68, %s69
    %p81 = scmp.eq.s32.totalorder %s17, 1
    %p82 = por %p80, %p81
    %p84 = scmp.ne.s32.totalorder %s69, %s83
    %p85 = scmp.eq.s32.totalorder %s17, 0
    %p86 = por %p84, %p85
    %s87 = ssub.s32 %s11, %s18
    %p88 = scmp.eq.s32.totalorder %s87, 0
    %s90 = sadd.s32 %s89, 1
    %s91 = scalar_select %p88, %s89, %s90
    %p94 = pneg %p88
    %p95 = scmp.eq.s32.totalorder %s11, 1
    %p96 = por %p94, %p95
    %p97 = scmp.ne.s32.totalorder %s89, %s92
    %p98 = scmp.eq.s32.totalorder %s11, 0
    %p99 = por %p97, %p98
    %p100 = scmp.ne.s32.totalorder %s89, %s92
    %p101 = scmp.eq.s32.totalorder %s16, 1
    %p102 = por %p100, %p101
    %p103 = scmp.ne.s32.totalorder %s92, %s93
    %p104 = scmp.eq.s32.totalorder %s16, 0
    %p105 = por %p103, %p104
    %p106 = scmp.ne.s32.totalorder %s92, %s93
    %p107 = scmp.eq.s32.totalorder %s17, 1
    %p108 = por %p106, %p107
    %p110 = scmp.ne.s32.totalorder %s93, %s109
    %p111 = scmp.eq.s32.totalorder %s17, 0
    %p112 = por %p110, %p111
    %s113 = ssub.s32 %s11, %s18
    %p114 = scmp.eq.s32.totalorder %s113, 0
    %s116 = sadd.s32 %s115, 1
    %s117 = scalar_select %p114, %s115, %s116
    %p120 = pneg %p114
    %p121 = scmp.eq.s32.totalorder %s11, 1
    %p122 = por %p120, %p121
    %p123 = scmp.ne.s32.totalorder %s115, %s118
    %p124 = scmp.eq.s32.totalorder %s11, 0
    %p125 = por %p123, %p124
    %p126 = scmp.ne.s32.totalorder %s115, %s118
    %p127 = scmp.eq.s32.totalorder %s16, 1
    %p128 = por %p126, %p127
    %p129 = scmp.ne.s32.totalorder %s118, %s119
    %p130 = scmp.eq.s32.totalorder %s16, 0
    %p131 = por %p129, %p130
    %p132 = scmp.ne.s32.totalorder %s118, %s119
    %p133 = scmp.eq.s32.totalorder %s17, 1
    %p134 = por %p132, %p133
    %p136 = scmp.ne.s32.totalorder %s119, %s135
    %p137 = scmp.eq.s32.totalorder %s17, 0
    %p138 = por %p136, %p137
    %p139 = scmp.le.s32.totalorder 1, %s11
    %p140 = scmp.lt.s32.totalorder %s11, 3
    %p141 = pnand %p139, %p140
    %p142 = pneg %p141
    // Predicated region
    $region9: #{_lambda_.9} parent=5 // pred_check
      _
    $region10: #{_lambda_.9} parent=5 // pred_check_branch
      %144 = sbr.rel (%p141) target = $region12
    $region11: #{_lambda_.9} parent=5 // pred_region
      %s145 = ssub.s32 %s11, 1
      // Predicated region
      $region13: #{_lambda_.9} parent=11 // pred_check
        %p146 = pneg %p58
      $region14: #{_lambda_.9} parent=11 // pred_check_branch
        %148 = sbr.rel (%p146) target = $region16
      $region15: #{_lambda_.9} parent=11 // pred_region
        _
      $region16: #{_lambda_.9} parent=11 // pred_fallthru
        _
      // Predicated region
      $region17: #{_lambda_.9} parent=11 // pred_check
        %p149 = pneg %p79
      $region18: #{_lambda_.9} parent=11 // pred_check_branch
        %151 = sbr.rel (%p149) target = $region20
      $region19: #{_lambda_.9} parent=11 // pred_region
        _
      $region20: #{_lambda_.9} parent=11 // pred_fallthru
        _
    $region12: #{_lambda_.9} parent=5 // pred_fallthru
      _
    %p152 = scmp.lt.s32.totalorder %s11, 2
    // Predicated region
    $region21: #{_lambda_.9} parent=5 // pred_check
      %p153 = pneg %p152
    $region22: #{_lambda_.9} parent=5 // pred_check_branch
      %155 = sbr.rel (%p153) target = $region24
    $region23: #{_lambda_.9} parent=5 // pred_region
      // Predicated region
      $region25: #{_lambda_.9} parent=23 // pred_check
        %p156 = pneg %p31
      $region26: #{_lambda_.9} parent=23 // pred_check_branch
        %158 = sbr.rel (%p156) target = $region28
      $region27: #{_lambda_.9} parent=23 // pred_region
        %p159 = scmp.lt.s32.totalorder %s11, 1
        %s160 = scalar_select %p159, %s11, 1
        %s161 = smul.addr %s160, 18
        %s162 = smul.addr %s161, 4
        %s163 = scalar_lea.vmem %s0, %s162
      $region28: #{_lambda_.9} parent=23 // pred_fallthru
        _
    $region24: #{_lambda_.9} parent=5 // pred_fallthru
      _
    %p164 = scmp.le.s32.totalorder 1, %s11
    %p165 = scmp.lt.s32.totalorder %s11, 3
    %p166 = pnand %p164, %p165
    %p167 = pneg %p166
    // Predicated region
    $region29: #{_lambda_.9} parent=5 // pred_check
      _
    $region30: #{_lambda_.9} parent=5 // pred_check_branch
      %169 = sbr.rel (%p166) target = $region32
    $region31: #{_lambda_.9} parent=5 // pred_region
      %s170 = ssub.s32 %s11, 1
      %p171 = scmp.lt.s32.totalorder %s16, 1
      %s172 = scalar_select %p171, %s16, 1
      %s173 = smul.addr %s172, 18
      %s174 = smul.addr %s173, 4
      %s175 = scalar_lea.vmem %s0, %s174
      %p176 = pneg %p37
      %p177 = pneg %p34
      %p178 = pneg %p58
      %p179 = pneg %p55
      %p180 = pneg %p79
      %p181 = pneg %p76
      %p182 = pneg %p105
      %p183 = pneg %p102
      %p184 = scmp.lt.s32.totalorder %s16, 1
      %s185 = scalar_select %p184, %s16, 1
      %s186 = smul.addr %s185, 7
      %s187 = smul.addr %s186, 4
      %s188 = scalar_lea.vmem %s3, %s187
      %p189 = pneg %p131
      %p190 = pneg %p128
      %p191 = scmp.lt.s32.totalorder %s16, 1
      %s192 = scalar_select %p191, %s16, 1
      %s193 = smul.addr %s192, 2
      %s194 = scalar_lea.vmem %s4, %s193
      %p195 = scmp.lt.s32.totalorder %s16, 1
      %s196 = scalar_select %p195, %s16, 1
      %s197 = smul.addr %s196, 18
      %s198 = smul.addr %s197, 4
      %s199 = scalar_lea.vmem %s0, %s198
      %p200 = scmp.lt.s32.totalorder %s16, 1
      %s201 = scalar_select %p200, %s16, 1
      %s202 = smul.addr %s201, 7
      %s203 = smul.addr %s202, 4
      %s204 = scalar_lea.vmem %s3, %s203
      %p205 = scmp.lt.s32.totalorder %s16, 1
      %s206 = scalar_select %p205, %s16, 1
      %s207 = smul.addr %s206, 2
      %s208 = scalar_lea.vmem %s4, %s207
      %210 = vst [vmem:[%s208] sm:$0x3] 0.0
      loop: start=0, step=1, limit=7
      $region33: #{_lambda_.9} parent=31 // loop_pre_header
        _
      $region34: #{_lambda_.9} parent=31 // loop_header
        %s212 = sphi 0, %s216
        %p213 = scmp.ge.s32.totalorder %s212, 7
      $region35: #{_lambda_.9} parent=31 // loop_header_branch
        %215 = sbr.rel (%p213) target = $region39
      $region36: #{_lambda_.9} parent=31 // loop_body
        %s217 = smul.u32 %s212, 2
        %s218 = smul.addr %s217, 4
        %s219 = scalar_lea.vmem %s199, %s218
        %v220 = vld [vmem:[%s219] sm:$0xf]
        %v221 = vld [vmem:[%s219 + $0x4] sm:$0x1]
        %v222 = vld [vmem:[%s1] sm:$0xf]
        %s223 = scalar_lea.vmem %s1, 4
        %v224 = vld [vmem:[%s223] sm:$0xf]
        %v226 = vunpack.c.l.b16 %v220
        %v227 = vpack.c.b16 %v226, %v226
        %v229 = vshrl.u32 %v227, 16
        %v231 = vshll.u32 %v227, 16
        %v233 = vrot.slane %v231, 1
        %v234 = vor.u32 %v229, %v233
        %vm235 = vcmask 64512
        %v237 = vsel %vm235, %v234, 0
        %vm239 = vcmask 1043456
        %v241 = vsel %vm239, %v224, 0
        %243 = vmatprep.subr.bf16.mxu0 0
        %244 = vmatpush1.bf16.msra.mxu0 0
        %245 = vmatprep.subr.bf16.mxu0 0
        %246 = vmatpush1.bf16.msra.mxu0 0
        %247 = vmatprep.subr.bf16.mxu0 0
        %248 = vmatpush1.bf16.msra.mxu0 0
        %249 = vmatprep.subr.bf16.mxu0 0
        %250 = vmatpush1.bf16.msra.mxu0 0
        %251 = vmatprep.subr.bf16.mxu0 0
        %252 = vmatpush1.bf16.msra.mxu0 0
        %253 = vmatprep.subr.bf16.mxu0 0
        %254 = vmatpush1.bf16.msra.mxu0 0
        %255 = vmatprep.subr.bf16.mxu0 0
        %256 = vmatpush1.bf16.msra.mxu0 0
        %257 = vmatprep.subr.bf16.mxu0 0
        %258 = vmatpush1.bf16.msra.mxu0 %v241
        %259 = vmatprep.subr.bf16.mxu0 0
        %260 = vmatpush2.bf16.msra.mxu0 0
        %261 = vmatprep.subr.bf16.mxu0 0
        %262 = vmatpush2.bf16.msra.mxu0 0
        %263 = vmatprep.subr.bf16.mxu0 0
        %264 = vmatpush2.bf16.msra.mxu0 0
        %265 = vmatprep.subr.bf16.mxu0 0
        %266 = vmatpush2.bf16.msra.mxu0 0
        %267 = vmatprep.subr.bf16.mxu0 0
        %268 = vmatpush2.bf16.msra.mxu0 0
        %269 = vmatprep.subr.bf16.mxu0 0
        %270 = vmatpush2.bf16.msra.mxu0 0
        %271 = vmatprep.subr.bf16.mxu0 0
        %272 = vmatpush2.bf16.msra.mxu0 0
        %273 = vmatprep.subr.bf16.mxu0 0
        %274 = vmatpush2.bf16.msra.mxu0 0
        %275 = vmatprep.mubr.bf16.mxu0 0
        %276 = vmatmul.mubr.bf16.gmra.mxu0 %v237
        %v277 = vpop.f32.mrf.mxu0
        %v278 = vadd.f32 0.0, %v277
        %v279 = vpop.f32.mrf.mxu0
        %v280 = vpop.f32.mrf.mxu0
        %v281 = vpop.f32.mrf.mxu0
        %282 = vdwg.mxu0
        %v284 = vsel %vm235, %v220, 0
        %v287 = vsel %vm239, %v222, 0
        %289 = vmatprep.subr.bf16.mxu0 0
        %290 = vmatpush1.bf16.msra.mxu0 0
        %291 = vmatprep.subr.bf16.mxu0 0
        %292 = vmatpush1.bf16.msra.mxu0 0
        %293 = vmatprep.subr.bf16.mxu0 0
        %294 = vmatpush1.bf16.msra.mxu0 0
        %295 = vmatprep.subr.bf16.mxu0 0
        %296 = vmatpush1.bf16.msra.mxu0 0
        %297 = vmatprep.subr.bf16.mxu0 0
        %298 = vmatpush1.bf16.msra.mxu0 0
        %299 = vmatprep.subr.bf16.mxu0 0
        %300 = vmatpush1.bf16.msra.mxu0 0
        %301 = vmatprep.subr.bf16.mxu0 0
        %302 = vmatpush1.bf16.msra.mxu0 0
        %303 = vmatprep.subr.bf16.mxu0 0
        %304 = vmatpush1.bf16.msra.mxu0 %v287
        %305 = vmatprep.subr.bf16.mxu0 0
        %306 = vmatpush2.bf16.msra.mxu0 0
        %307 = vmatprep.subr.bf16.mxu0 0
        %308 = vmatpush2.bf16.msra.mxu0 0
        %309 = vmatprep.subr.bf16.mxu0 0
        %310 = vmatpush2.bf16.msra.mxu0 0
        %311 = vmatprep.subr.bf16.mxu0 0
        %312 = vmatpush2.bf16.msra.mxu0 0
        %313 = vmatprep.subr.bf16.mxu0 0
        %314 = vmatpush2.bf16.msra.mxu0 0
        %315 = vmatprep.subr.bf16.mxu0 0
        %316 = vmatpush2.bf16.msra.mxu0 0
        %317 = vmatprep.subr.bf16.mxu0 0
        %318 = vmatpush2.bf16.msra.mxu0 0
        %319 = vmatprep.subr.bf16.mxu0 0
        %320 = vmatpush2.bf16.msra.mxu0 0
        %321 = vmatprep.mubr.bf16.mxu0 0
        %322 = vmatmul.mubr.bf16.gmra.mxu0 %v284
        %v323 = vpop.f32.mrf.mxu0
        %v324 = vadd.f32 %v278, %v323
        %v325 = vpop.f32.mrf.mxu0
        %v326 = vpop.f32.mrf.mxu0
        %v327 = vpop.f32.mrf.mxu0
        %328 = vdwg.mxu0
        %s329 = scalar_lea.vmem %s1, 8
        %v330 = vld [vmem:[%s329] sm:$0xf]
        %v332 = vunpack.c.l.b16 %v221
        %v333 = vpack.c.b16 %v332, %v226
        %v334 = vrot.slane %v333, 1
        %v336 = vsel %vm235, %v334, 0
        %v339 = vsel %vm239, %v330, 0
        %341 = vmatprep.subr.bf16.mxu0 0
        %342 = vmatpush1.bf16.msra.mxu0 0
        %343 = vmatprep.subr.bf16.mxu0 0
        %344 = vmatpush1.bf16.msra.mxu0 0
        %345 = vmatprep.subr.bf16.mxu0 0
        %346 = vmatpush1.bf16.msra.mxu0 0
        %347 = vmatprep.subr.bf16.mxu0 0
        %348 = vmatpush1.bf16.msra.mxu0 0
        %349 = vmatprep.subr.bf16.mxu0 0
        %350 = vmatpush1.bf16.msra.mxu0 0
        %351 = vmatprep.subr.bf16.mxu0 0
        %352 = vmatpush1.bf16.msra.mxu0 0
        %353 = vmatprep.subr.bf16.mxu0 0
        %354 = vmatpush1.bf16.msra.mxu0 0
        %355 = vmatprep.subr.bf16.mxu0 0
        %356 = vmatpush1.bf16.msra.mxu0 %v339
        %357 = vmatprep.subr.bf16.mxu0 0
        %358 = vmatpush2.bf16.msra.mxu0 0
        %359 = vmatprep.subr.bf16.mxu0 0
        %360 = vmatpush2.bf16.msra.mxu0 0
        %361 = vmatprep.subr.bf16.mxu0 0
        %362 = vmatpush2.bf16.msra.mxu0 0
        %363 = vmatprep.subr.bf16.mxu0 0
        %364 = vmatpush2.bf16.msra.mxu0 0
        %365 = vmatprep.subr.bf16.mxu0 0
        %366 = vmatpush2.bf16.msra.mxu0 0
        %367 = vmatprep.subr.bf16.mxu0 0
        %368 = vmatpush2.bf16.msra.mxu0 0
        %369 = vmatprep.subr.bf16.mxu0 0
        %370 = vmatpush2.bf16.msra.mxu0 0
        %371 = vmatprep.subr.bf16.mxu0 0
        %372 = vmatpush2.bf16.msra.mxu0 0
        %373 = vmatprep.mubr.bf16.mxu0 0
        %374 = vmatmul.mubr.bf16.gmra.mxu0 %v336
        %v375 = vpop.f32.mrf.mxu0
        %v376 = vadd.f32 0.0, %v375
        %v377 = vpop.f32.mrf.mxu0
        %v378 = vpop.f32.mrf.mxu0
        %v379 = vpop.f32.mrf.mxu0
        %380 = vdwg.mxu0
        %v381 = vadd.f32 %v324, %v376
        %s382 = sadd.s32 %s212, 1
        %s383 = smul.u32 %s382, 2
        %s384 = smul.addr %s383, 4
        %s385 = scalar_lea.vmem %s199, %s384
        %v386 = vld [vmem:[%s385] sm:$0xf]
        %v387 = vld [vmem:[%s385 + $0x4] sm:$0x1]
        %s388 = scalar_lea.vmem %s1, 12
        %v389 = vld [vmem:[%s388] sm:$0xf]
        %v391 = vsel %vm235, %v386, 0
        %v394 = vsel %vm239, %v389, 0
        %396 = vmatprep.subr.bf16.mxu0 0
        %397 = vmatpush1.bf16.msra.mxu0 0
        %398 = vmatprep.subr.bf16.mxu0 0
        %399 = vmatpush1.bf16.msra.mxu0 0
        %400 = vmatprep.subr.bf16.mxu0 0
        %401 = vmatpush1.bf16.msra.mxu0 0
        %402 = vmatprep.subr.bf16.mxu0 0
        %403 = vmatpush1.bf16.msra.mxu0 0
        %404 = vmatprep.subr.bf16.mxu0 0
        %405 = vmatpush1.bf16.msra.mxu0 0
        %406 = vmatprep.subr.bf16.mxu0 0
        %407 = vmatpush1.bf16.msra.mxu0 0
        %408 = vmatprep.subr.bf16.mxu0 0
        %409 = vmatpush1.bf16.msra.mxu0 0
        %410 = vmatprep.subr.bf16.mxu0 0
        %411 = vmatpush1.bf16.msra.mxu0 %v394
        %412 = vmatprep.subr.bf16.mxu0 0
        %413 = vmatpush2.bf16.msra.mxu0 0
        %414 = vmatprep.subr.bf16.mxu0 0
        %415 = vmatpush2.bf16.msra.mxu0 0
        %416 = vmatprep.subr.bf16.mxu0 0
        %417 = vmatpush2.bf16.msra.mxu0 0
        %418 = vmatprep.subr.bf16.mxu0 0
        %419 = vmatpush2.bf16.msra.mxu0 0
        %420 = vmatprep.subr.bf16.mxu0 0
        %421 = vmatpush2.bf16.msra.mxu0 0
        %422 = vmatprep.subr.bf16.mxu0 0
        %423 = vmatpush2.bf16.msra.mxu0 0
        %424 = vmatprep.subr.bf16.mxu0 0
        %425 = vmatpush2.bf16.msra.mxu0 0
        %426 = vmatprep.subr.bf16.mxu0 0
        %427 = vmatpush2.bf16.msra.mxu0 0
        %428 = vmatprep.mubr.bf16.mxu0 0
        %429 = vmatmul.mubr.bf16.gmra.mxu0 %v391
        %v430 = vpop.f32.mrf.mxu0
        %v431 = vadd.f32 0.0, %v430
        %v432 = vpop.f32.mrf.mxu0
        %v433 = vpop.f32.mrf.mxu0
        %v434 = vpop.f32.mrf.mxu0
        %435 = vdwg.mxu0
        %v436 = vadd.f32 %v381, %v431
        %s437 = scalar_lea.vmem %s1, 16
        %v438 = vld [vmem:[%s437] sm:$0xf]
        %v440 = vunpack.c.l.b16 %v386
        %v441 = vpack.c.b16 %v440, %v440
        %v443 = vshrl.u32 %v441, 16
        %v445 = vshll.u32 %v441, 16
        %v447 = vrot.slane %v445, 1
        %v448 = vor.u32 %v443, %v447
        %v450 = vsel %vm235, %v448, 0
        %v453 = vsel %vm239, %v438, 0
        %455 = vmatprep.subr.bf16.mxu0 0
        %456 = vmatpush1.bf16.msra.mxu0 0
        %457 = vmatprep.subr.bf16.mxu0 0
        %458 = vmatpush1.bf16.msra.mxu0 0
        %459 = vmatprep.subr.bf16.mxu0 0
        %460 = vmatpush1.bf16.msra.mxu0 0
        %461 = vmatprep.subr.bf16.mxu0 0
        %462 = vmatpush1.bf16.msra.mxu0 0
        %463 = vmatprep.subr.bf16.mxu0 0
        %464 = vmatpush1.bf16.msra.mxu0 0
        %465 = vmatprep.subr.bf16.mxu0 0
        %466 = vmatpush1.bf16.msra.mxu0 0
        %467 = vmatprep.subr.bf16.mxu0 0
        %468 = vmatpush1.bf16.msra.mxu0 0
        %469 = vmatprep.subr.bf16.mxu0 0
        %470 = vmatpush1.bf16.msra.mxu0 %v453
        %471 = vmatprep.subr.bf16.mxu0 0
        %472 = vmatpush2.bf16.msra.mxu0 0
        %473 = vmatprep.subr.bf16.mxu0 0
        %474 = vmatpush2.bf16.msra.mxu0 0
        %475 = vmatprep.subr.bf16.mxu0 0
        %476 = vmatpush2.bf16.msra.mxu0 0
        %477 = vmatprep.subr.bf16.mxu0 0
        %478 = vmatpush2.bf16.msra.mxu0 0
        %479 = vmatprep.subr.bf16.mxu0 0
        %480 = vmatpush2.bf16.msra.mxu0 0
        %481 = vmatprep.subr.bf16.mxu0 0
        %482 = vmatpush2.bf16.msra.mxu0 0
        %483 = vmatprep.subr.bf16.mxu0 0
        %484 = vmatpush2.bf16.msra.mxu0 0
        %485 = vmatprep.subr.bf16.mxu0 0
        %486 = vmatpush2.bf16.msra.mxu0 0
        %487 = vmatprep.mubr.bf16.mxu0 0
        %488 = vmatmul.mubr.bf16.gmra.mxu0 %v450
        %v489 = vpop.f32.mrf.mxu0
        %v490 = vadd.f32 0.0, %v489
        %v491 = vpop.f32.mrf.mxu0
        %v492 = vpop.f32.mrf.mxu0
        %v493 = vpop.f32.mrf.mxu0
        %494 = vdwg.mxu0
        %v495 = vadd.f32 %v436, %v490
        %s496 = scalar_lea.vmem %s1, 20
        %v497 = vld [vmem:[%s496] sm:$0xf]
        %v499 = vunpack.c.l.b16 %v387
        %v500 = vpack.c.b16 %v499, %v440
        %v501 = vrot.slane %v500, 1
        %v503 = vsel %vm235, %v501, 0
        %v506 = vsel %vm239, %v497, 0
        %508 = vmatprep.subr.bf16.mxu0 0
        %509 = vmatpush1.bf16.msra.mxu0 0
        %510 = vmatprep.subr.bf16.mxu0 0
        %511 = vmatpush1.bf16.msra.mxu0 0
        %512 = vmatprep.subr.bf16.mxu0 0
        %513 = vmatpush1.bf16.msra.mxu0 0
        %514 = vmatprep.subr.bf16.mxu0 0
        %515 = vmatpush1.bf16.msra.mxu0 0
        %516 = vmatprep.subr.bf16.mxu0 0
        %517 = vmatpush1.bf16.msra.mxu0 0
        %518 = vmatprep.subr.bf16.mxu0 0
        %519 = vmatpush1.bf16.msra.mxu0 0
        %520 = vmatprep.subr.bf16.mxu0 0
        %521 = vmatpush1.bf16.msra.mxu0 0
        %522 = vmatprep.subr.bf16.mxu0 0
        %523 = vmatpush1.bf16.msra.mxu0 %v506
        %524 = vmatprep.subr.bf16.mxu0 0
        %525 = vmatpush2.bf16.msra.mxu0 0
        %526 = vmatprep.subr.bf16.mxu0 0
        %527 = vmatpush2.bf16.msra.mxu0 0
        %528 = vmatprep.subr.bf16.mxu0 0
        %529 = vmatpush2.bf16.msra.mxu0 0
        %530 = vmatprep.subr.bf16.mxu0 0
        %531 = vmatpush2.bf16.msra.mxu0 0
        %532 = vmatprep.subr.bf16.mxu0 0
        %533 = vmatpush2.bf16.msra.mxu0 0
        %534 = vmatprep.subr.bf16.mxu0 0
        %535 = vmatpush2.bf16.msra.mxu0 0
        %536 = vmatprep.subr.bf16.mxu0 0
        %537 = vmatpush2.bf16.msra.mxu0 0
        %538 = vmatprep.subr.bf16.mxu0 0
        %539 = vmatpush2.bf16.msra.mxu0 0
        %540 = vmatprep.mubr.bf16.mxu0 0
        %541 = vmatmul.mubr.bf16.gmra.mxu0 %v503
        %v542 = vpop.f32.mrf.mxu0
        %v543 = vadd.f32 0.0, %v542
        %v544 = vpop.f32.mrf.mxu0
        %v545 = vpop.f32.mrf.mxu0
        %v546 = vpop.f32.mrf.mxu0
        %547 = vdwg.mxu0
        %v548 = vadd.f32 %v495, %v543
        %s549 = sadd.s32 %s212, 2
        %s550 = smul.u32 %s549, 2
        %s551 = smul.addr %s550, 4
        %s552 = scalar_lea.vmem %s199, %s551
        %v553 = vld [vmem:[%s552] sm:$0xf]
        %v554 = vld [vmem:[%s552 + $0x4] sm:$0x1]
        %s555 = scalar_lea.vmem %s1, 24
        %v556 = vld [vmem:[%s555] sm:$0xf]
        %v558 = vsel %vm235, %v553, 0
        %v561 = vsel %vm239, %v556, 0
        %563 = vmatprep.subr.bf16.mxu0 0
        %564 = vmatpush1.bf16.msra.mxu0 0
        %565 = vmatprep.subr.bf16.mxu0 0
        %566 = vmatpush1.bf16.msra.mxu0 0
        %567 = vmatprep.subr.bf16.mxu0 0
        %568 = vmatpush1.bf16.msra.mxu0 0
        %569 = vmatprep.subr.bf16.mxu0 0
        %570 = vmatpush1.bf16.msra.mxu0 0
        %571 = vmatprep.subr.bf16.mxu0 0
        %572 = vmatpush1.bf16.msra.mxu0 0
        %573 = vmatprep.subr.bf16.mxu0 0
        %574 = vmatpush1.bf16.msra.mxu0 0
        %575 = vmatprep.subr.bf16.mxu0 0
        %576 = vmatpush1.bf16.msra.mxu0 0
        %577 = vmatprep.subr.bf16.mxu0 0
        %578 = vmatpush1.bf16.msra.mxu0 %v561
        %579 = vmatprep.subr.bf16.mxu0 0
        %580 = vmatpush2.bf16.msra.mxu0 0
        %581 = vmatprep.subr.bf16.mxu0 0
        %582 = vmatpush2.bf16.msra.mxu0 0
        %583 = vmatprep.subr.bf16.mxu0 0
        %584 = vmatpush2.bf16.msra.mxu0 0
        %585 = vmatprep.subr.bf16.mxu0 0
        %586 = vmatpush2.bf16.msra.mxu0 0
        %587 = vmatprep.subr.bf16.mxu0 0
        %588 = vmatpush2.bf16.msra.mxu0 0
        %589 = vmatprep.subr.bf16.mxu0 0
        %590 = vmatpush2.bf16.msra.mxu0 0
        %591 = vmatprep.subr.bf16.mxu0 0
        %592 = vmatpush2.bf16.msra.mxu0 0
        %593 = vmatprep.subr.bf16.mxu0 0
        %594 = vmatpush2.bf16.msra.mxu0 0
        %595 = vmatprep.mubr.bf16.mxu0 0
        %596 = vmatmul.mubr.bf16.gmra.mxu0 %v558
        %v597 = vpop.f32.mrf.mxu0
        %v598 = vadd.f32 0.0, %v597
        %v599 = vpop.f32.mrf.mxu0
        %v600 = vpop.f32.mrf.mxu0
        %v601 = vpop.f32.mrf.mxu0
        %602 = vdwg.mxu0
        %v603 = vadd.f32 %v548, %v598
        %s604 = scalar_lea.vmem %s1, 28
        %v605 = vld [vmem:[%s604] sm:$0xf]
        %v607 = vunpack.c.l.b16 %v553
        %v608 = vpack.c.b16 %v607, %v607
        %v610 = vshrl.u32 %v608, 16
        %v612 = vshll.u32 %v608, 16
        %v614 = vrot.slane %v612, 1
        %v615 = vor.u32 %v610, %v614
        %v617 = vsel %vm235, %v615, 0
        %v620 = vsel %vm239, %v605, 0
        %622 = vmatprep.subr.bf16.mxu0 0
        %623 = vmatpush1.bf16.msra.mxu0 0
        %624 = vmatprep.subr.bf16.mxu0 0
        %625 = vmatpush1.bf16.msra.mxu0 0
        %626 = vmatprep.subr.bf16.mxu0 0
        %627 = vmatpush1.bf16.msra.mxu0 0
        %628 = vmatprep.subr.bf16.mxu0 0
        %629 = vmatpush1.bf16.msra.mxu0 0
        %630 = vmatprep.subr.bf16.mxu0 0
        %631 = vmatpush1.bf16.msra.mxu0 0
        %632 = vmatprep.subr.bf16.mxu0 0
        %633 = vmatpush1.bf16.msra.mxu0 0
        %634 = vmatprep.subr.bf16.mxu0 0
        %635 = vmatpush1.bf16.msra.mxu0 0
        %636 = vmatprep.subr.bf16.mxu0 0
        %637 = vmatpush1.bf16.msra.mxu0 %v620
        %638 = vmatprep.subr.bf16.mxu0 0
        %639 = vmatpush2.bf16.msra.mxu0 0
        %640 = vmatprep.subr.bf16.mxu0 0
        %641 = vmatpush2.bf16.msra.mxu0 0
        %642 = vmatprep.subr.bf16.mxu0 0
        %643 = vmatpush2.bf16.msra.mxu0 0
        %644 = vmatprep.subr.bf16.mxu0 0
        %645 = vmatpush2.bf16.msra.mxu0 0
        %646 = vmatprep.subr.bf16.mxu0 0
        %647 = vmatpush2.bf16.msra.mxu0 0
        %648 = vmatprep.subr.bf16.mxu0 0
        %649 = vmatpush2.bf16.msra.mxu0 0
        %650 = vmatprep.subr.bf16.mxu0 0
        %651 = vmatpush2.bf16.msra.mxu0 0
        %652 = vmatprep.subr.bf16.mxu0 0
        %653 = vmatpush2.bf16.msra.mxu0 0
        %654 = vmatprep.mubr.bf16.mxu0 0
        %655 = vmatmul.mubr.bf16.gmra.mxu0 %v617
        %v656 = vpop.f32.mrf.mxu0
        %v657 = vadd.f32 0.0, %v656
        %v658 = vpop.f32.mrf.mxu0
        %v659 = vpop.f32.mrf.mxu0
        %v660 = vpop.f32.mrf.mxu0
        %661 = vdwg.mxu0
        %v662 = vadd.f32 %v603, %v657
        %s663 = scalar_lea.vmem %s1, 32
        %v664 = vld [vmem:[%s663] sm:$0xf]
        %v666 = vunpack.c.l.b16 %v554
        %v667 = vpack.c.b16 %v666, %v607
        %v668 = vrot.slane %v667, 1
        %v670 = vsel %vm235, %v668, 0
        %v673 = vsel %vm239, %v664, 0
        %675 = vmatprep.subr.bf16.mxu0 0
        %676 = vmatpush1.bf16.msra.mxu0 0
        %677 = vmatprep.subr.bf16.mxu0 0
        %678 = vmatpush1.bf16.msra.mxu0 0
        %679 = vmatprep.subr.bf16.mxu0 0
        %680 = vmatpush1.bf16.msra.mxu0 0
        %681 = vmatprep.subr.bf16.mxu0 0
        %682 = vmatpush1.bf16.msra.mxu0 0
        %683 = vmatprep.subr.bf16.mxu0 0
        %684 = vmatpush1.bf16.msra.mxu0 0
        %685 = vmatprep.subr.bf16.mxu0 0
        %686 = vmatpush1.bf16.msra.mxu0 0
        %687 = vmatprep.subr.bf16.mxu0 0
        %688 = vmatpush1.bf16.msra.mxu0 0
        %689 = vmatprep.subr.bf16.mxu0 0
        %690 = vmatpush1.bf16.msra.mxu0 %v673
        %691 = vmatprep.subr.bf16.mxu0 0
        %692 = vmatpush2.bf16.msra.mxu0 0
        %693 = vmatprep.subr.bf16.mxu0 0
        %694 = vmatpush2.bf16.msra.mxu0 0
        %695 = vmatprep.subr.bf16.mxu0 0
        %696 = vmatpush2.bf16.msra.mxu0 0
        %697 = vmatprep.subr.bf16.mxu0 0
        %698 = vmatpush2.bf16.msra.mxu0 0
        %699 = vmatprep.subr.bf16.mxu0 0
        %700 = vmatpush2.bf16.msra.mxu0 0
        %701 = vmatprep.subr.bf16.mxu0 0
        %702 = vmatpush2.bf16.msra.mxu0 0
        %703 = vmatprep.subr.bf16.mxu0 0
        %704 = vmatpush2.bf16.msra.mxu0 0
        %705 = vmatprep.subr.bf16.mxu0 0
        %706 = vmatpush2.bf16.msra.mxu0 0
        %707 = vmatprep.mubr.bf16.mxu0 0
        %708 = vmatmul.mubr.bf16.gmra.mxu0 %v670
        %v709 = vpop.f32.mrf.mxu0
        %v710 = vadd.f32 0.0, %v709
        %v711 = vpop.f32.mrf.mxu0
        %v712 = vpop.f32.mrf.mxu0
        %v713 = vpop.f32.mrf.mxu0
        %714 = vdwg.mxu0
        %v715 = vadd.f32 %v662, %v710
        %v716 = vld [vmem:[%s2] sm:$0x1]
        %v718 = vlaneseq
        %v719 = vshrl.u32 %v718, 7
        %v720 = vsub.s32 0, %v719
        %v721 = vrot.slane %v716, %v720
        %v723 = vadd.f32 %v715, %v721
        %v724 = vmax.f32 %v723, 0.0
        %v725 = vld [vmem:[%s208] sm:$0x1]
        %vm726 = vcmask 1046528
        %v727 = vsel %vm726, %v724, 0.0
        %v728 = vrot.slane %v727, 4
        %v729 = vadd.f32 %v727, %v728
        %v730 = vrot.slane %v729, 2
        %v731 = vadd.f32 %v729, %v730
        %v732 = vrot.slane %v731, 1
        %v733 = vadd.f32 %v731, %v732
        %v734 = vadd.f32 %v725, %v733
        %735 = vst [vmem:[%s208] sm:$0x1] %v734
        %v736 = vld [vmem:[%s208 + $0x1] sm:$0x1]
        %v737 = vmul.f32 %v724, %v724
        %v738 = vsel %vm726, %v737, 0.0
        %v739 = vrot.slane %v738, 4
        %v740 = vadd.f32 %v738, %v739
        %v741 = vrot.slane %v740, 2
        %v742 = vadd.f32 %v740, %v741
        %v743 = vrot.slane %v742, 1
        %v744 = vadd.f32 %v742, %v743
        %v745 = vadd.f32 %v736, %v744
        %746 = vst [vmem:[%s208 + $0x1] sm:$0x1] %v745
        %v747 = vpack.c.bf16 %v724, %v724
        %s748 = smul.addr %s212, 4
        %s749 = scalar_lea.vmem %s204, %s748
        %vm750 = vcmask 1043456
        %vm751 = vsmask.f32 3328
        %vm752 = vmand %vm750, %vm751
        %v753 = vld [vmem:[%s749] sm:$0xf]
        %v754 = vsel %vm752, %v747, %v753
        %755 = vst [vmem:[%s749] sm:$0xf] %v754
      $region37: #{_lambda_.9} parent=31 // loop_footer
        %s216 = sadd.s32 1, %s212
      $region38: #{_lambda_.9} parent=31 // loop_footer_branch
        %211 = sbr.rel target = $region34
      $region39: #{_lambda_.9} parent=31 // loop_exit
        _
      %p756 = scmp.lt.s32.totalorder %s16, 1
      %s757 = scalar_select %p756, %s16, 1
      %s758 = smul.addr %s757, 7
      %s759 = smul.addr %s758, 4
      %s760 = scalar_lea.vmem %s3, %s759
      %p761 = scmp.lt.s32.totalorder %s16, 1
      %s762 = scalar_select %p761, %s16, 1
      %s763 = smul.addr %s762, 2
      %s764 = scalar_lea.vmem %s4, %s763
      // Predicated region
      $region40: #{_lambda_.9} parent=31 // pred_check
        %p765 = pneg %p102
      $region41: #{_lambda_.9} parent=31 // pred_check_branch
        %767 = sbr.rel (%p765) target = $region43
      $region42: #{_lambda_.9} parent=31 // pred_region
        _
      $region43: #{_lambda_.9} parent=31 // pred_fallthru
        _
      // Predicated region
      $region44: #{_lambda_.9} parent=31 // pred_check
        %p768 = pneg %p128
      $region45: #{_lambda_.9} parent=31 // pred_check_branch
        %770 = sbr.rel (%p768) target = $region47
      $region46: #{_lambda_.9} parent=31 // pred_region
        _
      $region47: #{_lambda_.9} parent=31 // pred_fallthru
        _
    $region32: #{_lambda_.9} parent=5 // pred_fallthru
      _
    %p771 = scmp.le.s32.totalorder 2, %s11
    // Predicated region
    $region48: #{_lambda_.9} parent=5 // pred_check
      %p772 = pneg %p771
    $region49: #{_lambda_.9} parent=5 // pred_check_branch
      %774 = sbr.rel (%p772) target = $region51
    $region50: #{_lambda_.9} parent=5 // pred_region
      %s775 = ssub.s32 %s11, 2
      // Predicated region
      $region52: #{_lambda_.9} parent=50 // pred_check
        %p776 = pneg %p108
      $region53: #{_lambda_.9} parent=50 // pred_check_branch
        %778 = sbr.rel (%p776) target = $region55
      $region54: #{_lambda_.9} parent=50 // pred_region
        %p779 = scmp.lt.s32.totalorder %s17, 1
        %s780 = scalar_select %p779, %s17, 1
        %s781 = smul.addr %s780, 7
        %s782 = smul.addr %s781, 4
        %s783 = scalar_lea.vmem %s3, %s782
      $region55: #{_lambda_.9} parent=50 // pred_fallthru
        _
      // Predicated region
      $region56: #{_lambda_.9} parent=50 // pred_check
        %p784 = pneg %p134
      $region57: #{_lambda_.9} parent=50 // pred_check_branch
        %786 = sbr.rel (%p784) target = $region59
      $region58: #{_lambda_.9} parent=50 // pred_region
        %p787 = scmp.lt.s32.totalorder %s17, 1
        %s788 = scalar_select %p787, %s17, 1
        %s789 = smul.addr %s788, 2
        %s790 = scalar_lea.vmem %s4, %s789
      $region59: #{_lambda_.9} parent=50 // pred_fallthru
        _
    $region51: #{_lambda_.9} parent=5 // pred_fallthru
      _
  $region6: #{_lambda_.9} parent=0 // loop_footer
    %s15 = sadd.s32 1, %s11
  $region7: #{_lambda_.9} parent=0 // loop_footer_branch
    %10 = sbr.rel target = $region3
  $region8: #{_lambda_.9} parent=0 // loop_exit
    _

// kernel: _lambda_.11
$region0: #{_lambda_.11}
  #allocation0 [shape = 'u32[]', space=smem, size = 0x4, offset = 0x4, fixed_abs, tag = 'smem constant byte address 0x4 - core index']
  #allocation1 [shape = 'u32[144,128]{1,0:T(1,128)}', space=vmem, size = 0x12000, scoped, tag = 'internal scratch']
  %s0 = inlined_call_operand.vmem [shape: bf16[2,16,16,128], index: 0, kind: input, shape index: {}]
  %s1 = inlined_call_operand.vmem [shape: f32[1,128], index: 1, kind: input, shape index: {}]
  %s2 = inlined_call_operand.vmem [shape: f32[1,128], index: 2, kind: input, shape index: {}]
  %s3 = inlined_call_operand.vmem [shape: f32[2,16,16,128], index: 3, kind: output, shape index: {}]
  %s4 = sld [smem:[#allocation0]]
  $region45: #{_lambda_.11} parent=0
    _
  %s6 = ssub.s32 1, %s4
  %s7 = scalar_select 0, %s6, %s4
  loop: start=0, step=1, limit=4
  $region2: #{_lambda_.11} parent=0 // loop_pre_header
    _
  $region3: #{_lambda_.11} parent=0 // loop_header
    %s9 = sphi 0, %s13
    %p10 = scmp.ge.s32.totalorder %s9, 4
    %s19 = sphi 0, %s21
    %s22 = sphi 0, %s19
    %s23 = sphi 0, %s22
    %s39 = sphi 0, %s23
    %s43 = sphi 0, %s43
    %s45 = sphi 0, %s43
    %s46 = sphi 0, %s45
    %s60 = sphi 0, %s46
    %s64 = sphi 0, %s64
    %s66 = sphi 0, %s64
    %s67 = sphi 0, %s66
    %s81 = sphi 0, %s67
    %s87 = sphi 0, %s89
    %s90 = sphi 0, %s87
    %s91 = sphi 0, %s90
    %s107 = sphi 0, %s91
  $region4: #{_lambda_.11} parent=0 // loop_header_branch
    %12 = sbr.rel (%p10) target = $region8
  $region5: #{_lambda_.11} parent=0 // loop_body
    %s14 = ssub.s32 %s9, 1
    %s15 = ssub.s32 %s9, 2
    %s16 = sadd.s32 %s9, 1
    %s17 = ssub.s32 %s9, %s16
    %p18 = scmp.eq.s32.totalorder %s17, 0
    %s20 = sadd.s32 %s19, 1
    %s21 = scalar_select %p18, %s19, %s20
    %p24 = pneg %p18
    %p25 = scmp.eq.s32.totalorder %s9, 1
    %p26 = por %p24, %p25
    %p27 = scmp.ne.s32.totalorder %s19, %s22
    %p28 = scmp.eq.s32.totalorder %s9, 0
    %p29 = por %p27, %p28
    %p30 = scmp.ne.s32.totalorder %s19, %s22
    %p31 = scmp.eq.s32.totalorder %s14, 1
    %p32 = por %p30, %p31
    %p33 = scmp.ne.s32.totalorder %s22, %s23
    %p34 = scmp.eq.s32.totalorder %s14, 0
    %p35 = por %p33, %p34
    %p36 = scmp.ne.s32.totalorder %s22, %s23
    %p37 = scmp.eq.s32.totalorder %s15, 1
    %p38 = por %p36, %p37
    %p40 = scmp.ne.s32.totalorder %s23, %s39
    %p41 = scmp.eq.s32.totalorder %s15, 0
    %p42 = por %p40, %p41
    %s44 = sadd.s32 %s43, 1
    %p47 = scmp.eq.s32.totalorder %s9, 1
    %p48 = scmp.ne.s32.totalorder %s43, %s45
    %p49 = scmp.eq.s32.totalorder %s9, 0
    %p50 = por %p48, %p49
    %p51 = scmp.ne.s32.totalorder %s43, %s45
    %p52 = scmp.eq.s32.totalorder %s14, 1
    %p53 = por %p51, %p52
    %p54 = scmp.ne.s32.totalorder %s45, %s46
    %p55 = scmp.eq.s32.totalorder %s14, 0
    %p56 = por %p54, %p55
    %p57 = scmp.ne.s32.totalorder %s45, %s46
    %p58 = scmp.eq.s32.totalorder %s15, 1
    %p59 = por %p57, %p58
    %p61 = scmp.ne.s32.totalorder %s46, %s60
    %p62 = scmp.eq.s32.totalorder %s15, 0
    %p63 = por %p61, %p62
    %s65 = sadd.s32 %s64, 1
    %p68 = scmp.eq.s32.totalorder %s9, 1
    %p69 = scmp.ne.s32.totalorder %s64, %s66
    %p70 = scmp.eq.s32.totalorder %s9, 0
    %p71 = por %p69, %p70
    %p72 = scmp.ne.s32.totalorder %s64, %s66
    %p73 = scmp.eq.s32.totalorder %s14, 1
    %p74 = por %p72, %p73
    %p75 = scmp.ne.s32.totalorder %s66, %s67
    %p76 = scmp.eq.s32.totalorder %s14, 0
    %p77 = por %p75, %p76
    %p78 = scmp.ne.s32.totalorder %s66, %s67
    %p79 = scmp.eq.s32.totalorder %s15, 1
    %p80 = por %p78, %p79
    %p82 = scmp.ne.s32.totalorder %s67, %s81
    %p83 = scmp.eq.s32.totalorder %s15, 0
    %p84 = por %p82, %p83
    %s85 = ssub.s32 %s9, %s16
    %p86 = scmp.eq.s32.totalorder %s85, 0
    %s88 = sadd.s32 %s87, 1
    %s89 = scalar_select %p86, %s87, %s88
    %p92 = pneg %p86
    %p93 = scmp.eq.s32.totalorder %s9, 1
    %p94 = por %p92, %p93
    %p95 = scmp.ne.s32.totalorder %s87, %s90
    %p96 = scmp.eq.s32.totalorder %s9, 0
    %p97 = por %p95, %p96
    %p98 = scmp.ne.s32.totalorder %s87, %s90
    %p99 = scmp.eq.s32.totalorder %s14, 1
    %p100 = por %p98, %p99
    %p101 = scmp.ne.s32.totalorder %s90, %s91
    %p102 = scmp.eq.s32.totalorder %s14, 0
    %p103 = por %p101, %p102
    %p104 = scmp.ne.s32.totalorder %s90, %s91
    %p105 = scmp.eq.s32.totalorder %s15, 1
    %p106 = por %p104, %p105
    %p108 = scmp.ne.s32.totalorder %s91, %s107
    %p109 = scmp.eq.s32.totalorder %s15, 0
    %p110 = por %p108, %p109
    %p111 = scmp.le.s32.totalorder 1, %s9
    %p112 = scmp.lt.s32.totalorder %s9, 3
    %p113 = pnand %p111, %p112
    %p114 = pneg %p113
    // Predicated region
    $region9: #{_lambda_.11} parent=5 // pred_check
      _
    $region10: #{_lambda_.11} parent=5 // pred_check_branch
      %116 = sbr.rel (%p113) target = $region12
    $region11: #{_lambda_.11} parent=5 // pred_region
      %s117 = ssub.s32 %s9, 1
      // Predicated region
      $region13: #{_lambda_.11} parent=11 // pred_check
        %p118 = pneg %p56
      $region14: #{_lambda_.11} parent=11 // pred_check_branch
        %120 = sbr.rel (%p118) target = $region16
      $region15: #{_lambda_.11} parent=11 // pred_region
        _
      $region16: #{_lambda_.11} parent=11 // pred_fallthru
        _
      // Predicated region
      $region17: #{_lambda_.11} parent=11 // pred_check
        %p121 = pneg %p77
      $region18: #{_lambda_.11} parent=11 // pred_check_branch
        %123 = sbr.rel (%p121) target = $region20
      $region19: #{_lambda_.11} parent=11 // pred_region
        _
      $region20: #{_lambda_.11} parent=11 // pred_fallthru
        _
    $region12: #{_lambda_.11} parent=5 // pred_fallthru
      _
    %p124 = scmp.lt.s32.totalorder %s9, 2
    // Predicated region
    $region21: #{_lambda_.11} parent=5 // pred_check
      %p125 = pneg %p124
    $region22: #{_lambda_.11} parent=5 // pred_check_branch
      %127 = sbr.rel (%p125) target = $region24
    $region23: #{_lambda_.11} parent=5 // pred_region
      // Predicated region
      $region25: #{_lambda_.11} parent=23 // pred_check
        %p128 = pneg %p29
      $region26: #{_lambda_.11} parent=23 // pred_check_branch
        %130 = sbr.rel (%p128) target = $region28
      $region27: #{_lambda_.11} parent=23 // pred_region
        %p131 = scmp.lt.s32.totalorder %s9, 1
        %s132 = scalar_select %p131, %s9, 1
        %s133 = smul.addr %s132, 32
        %s134 = smul.addr %s133, 4
        %s135 = scalar_lea.vmem %s0, %s134
      $region28: #{_lambda_.11} parent=23 // pred_fallthru
        _
    $region24: #{_lambda_.11} parent=5 // pred_fallthru
      _
    %p136 = scmp.le.s32.totalorder 1, %s9
    %p137 = scmp.lt.s32.totalorder %s9, 3
    %p138 = pnand %p136, %p137
    %p139 = pneg %p138
    // Predicated region
    $region29: #{_lambda_.11} parent=5 // pred_check
      _
    $region30: #{_lambda_.11} parent=5 // pred_check_branch
      %141 = sbr.rel (%p138) target = $region32
    $region31: #{_lambda_.11} parent=5 // pred_region
      %s142 = ssub.s32 %s9, 1
      %p143 = scmp.lt.s32.totalorder %s14, 1
      %s144 = scalar_select %p143, %s14, 1
      %s145 = smul.addr %s144, 32
      %s146 = smul.addr %s145, 4
      %s147 = scalar_lea.vmem %s0, %s146
      %p148 = pneg %p35
      %p149 = pneg %p32
      %p150 = pneg %p56
      %p151 = pneg %p53
      %p152 = pneg %p77
      %p153 = pneg %p74
      %p154 = pneg %p103
      %p155 = pneg %p100
      %p156 = scmp.lt.s32.totalorder %s14, 1
      %s157 = scalar_select %p156, %s14, 1
      %s158 = smul.addr %s157, 32
      %s159 = smul.addr %s158, 8
      %s160 = scalar_lea.vmem %s3, %s159
      %p161 = scmp.lt.s32.totalorder %s14, 1
      %s162 = scalar_select %p161, %s14, 1
      %s163 = smul.addr %s162, 32
      %s164 = smul.addr %s163, 4
      %s165 = scalar_lea.vmem %s0, %s164
      %p166 = scmp.lt.s32.totalorder %s14, 1
      %s167 = scalar_select %p166, %s14, 1
      %s168 = smul.addr %s167, 32
      %s169 = smul.addr %s168, 8
      %s170 = scalar_lea.vmem %s3, %s169
      %v171 = vld [vmem:[%s165] sm:$0xf]
      %v172 = vld [vmem:[%s165 + $0x4] sm:$0xf]
      %v173 = vld [vmem:[%s165 + $0x8] sm:$0xf]
      %v174 = vld [vmem:[%s165 + $0xc] sm:$0xf]
      %v175 = vld [vmem:[%s165 + $0x10] sm:$0xf]
      %v176 = vld [vmem:[%s165 + $0x14] sm:$0xf]
      %v177 = vld [vmem:[%s165 + $0x18] sm:$0xf]
      %v178 = vld [vmem:[%s165 + $0x1c] sm:$0xf]
      %v179 = vld [vmem:[%s165 + $0x20] sm:$0xf]
      %v180 = vld [vmem:[%s165 + $0x24] sm:$0xf]
      %v181 = vld [vmem:[%s165 + $0x28] sm:$0xf]
      %v182 = vld [vmem:[%s165 + $0x2c] sm:$0xf]
      %v183 = vld [vmem:[%s165 + $0x30] sm:$0xf]
      %v184 = vld [vmem:[%s165 + $0x34] sm:$0xf]
      %v185 = vld [vmem:[%s165 + $0x38] sm:$0xf]
      %v186 = vld [vmem:[%s165 + $0x3c] sm:$0xf]
      %v187 = vld [vmem:[%s165 + $0x40] sm:$0xf]
      %v188 = vld [vmem:[%s165 + $0x44] sm:$0xf]
      %v189 = vld [vmem:[%s165 + $0x48] sm:$0xf]
      %v190 = vld [vmem:[%s165 + $0x4c] sm:$0xf]
      %v191 = vld [vmem:[%s165 + $0x50] sm:$0xf]
      %v192 = vld [vmem:[%s165 + $0x54] sm:$0xf]
      %v193 = vld [vmem:[%s165 + $0x58] sm:$0xf]
      %v194 = vld [vmem:[%s165 + $0x5c] sm:$0xf]
      %v195 = vld [vmem:[%s165 + $0x60] sm:$0xf]
      %v196 = vld [vmem:[%s165 + $0x64] sm:$0xf]
      %v197 = vld [vmem:[%s165 + $0x68] sm:$0xf]
      %v198 = vld [vmem:[%s165 + $0x6c] sm:$0xf]
      %v199 = vld [vmem:[%s165 + $0x70] sm:$0xf]
      %v200 = vld [vmem:[%s165 + $0x74] sm:$0xf]
      %v201 = vld [vmem:[%s165 + $0x78] sm:$0xf]
      %v202 = vld [vmem:[%s165 + $0x7c] sm:$0xf]
      %v203 = vunpack.c.l.bf16 %v171
      %v204 = vunpack.c.l.bf16 %v172
      %v205 = vunpack.c.l.bf16 %v173
      %v206 = vunpack.c.l.bf16 %v174
      %v207 = vunpack.c.l.bf16 %v175
      %v208 = vunpack.c.l.bf16 %v176
      %v209 = vunpack.c.l.bf16 %v177
      %v210 = vunpack.c.l.bf16 %v178
      %v211 = vunpack.c.l.bf16 %v179
      %v212 = vunpack.c.l.bf16 %v180
      %v213 = vunpack.c.l.bf16 %v181
      %v214 = vunpack.c.l.bf16 %v182
      %v215 = vunpack.c.l.bf16 %v183
      %v216 = vunpack.c.l.bf16 %v184
      %v217 = vunpack.c.l.bf16 %v185
      %v218 = vunpack.c.l.bf16 %v186
      %v219 = vunpack.c.l.bf16 %v187
      %v220 = vunpack.c.l.bf16 %v188
      %v221 = vunpack.c.l.bf16 %v189
      %v222 = vunpack.c.l.bf16 %v190
      %v223 = vunpack.c.l.bf16 %v191
      %v224 = vunpack.c.l.bf16 %v192
      %v225 = vunpack.c.l.bf16 %v193
      %v226 = vunpack.c.l.bf16 %v194
      %v227 = vunpack.c.l.bf16 %v195
      %v228 = vunpack.c.l.bf16 %v196
      %v229 = vunpack.c.l.bf16 %v197
      %v230 = vunpack.c.l.bf16 %v198
      %v231 = vunpack.c.l.bf16 %v199
      %v232 = vunpack.c.l.bf16 %v200
      %v233 = vunpack.c.l.bf16 %v201
      %v234 = vunpack.c.l.bf16 %v202
      %v235 = vld [vmem:[%s1] sm:$0x1]
      %v237 = vlaneseq
      %v238 = vshrl.u32 %v237, 7
      %v239 = vsub.s32 0, %v238
      %v240 = vrot.slane %v235, %v239
      %v242 = vmul.f32 %v203, %v240
      %v243 = vmul.f32 %v204, %v240
      %v244 = vmul.f32 %v205, %v240
      %v245 = vmul.f32 %v206, %v240
      %v246 = vmul.f32 %v207, %v240
      %v247 = vmul.f32 %v208, %v240
      %v248 = vmul.f32 %v209, %v240
      %v249 = vmul.f32 %v210, %v240
      %v250 = vmul.f32 %v211, %v240
      %v251 = vmul.f32 %v212, %v240
      %v252 = vmul.f32 %v213, %v240
      %v253 = vmul.f32 %v214, %v240
      %v254 = vmul.f32 %v215, %v240
      %v255 = vmul.f32 %v216, %v240
      %v256 = vmul.f32 %v217, %v240
      %v257 = vmul.f32 %v218, %v240
      %v258 = vmul.f32 %v219, %v240
      %v259 = vmul.f32 %v220, %v240
      %v260 = vmul.f32 %v221, %v240
      %v261 = vmul.f32 %v222, %v240
      %v262 = vmul.f32 %v223, %v240
      %v263 = vmul.f32 %v224, %v240
      %v264 = vmul.f32 %v225, %v240
      %v265 = vmul.f32 %v226, %v240
      %v266 = vmul.f32 %v227, %v240
      %v267 = vmul.f32 %v228, %v240
      %v268 = vmul.f32 %v229, %v240
      %v269 = vmul.f32 %v230, %v240
      %v270 = vmul.f32 %v231, %v240
      %v271 = vmul.f32 %v232, %v240
      %v272 = vmul.f32 %v233, %v240
      %v273 = vmul.f32 %v234, %v240
      %v274 = vld [vmem:[%s2] sm:$0x1]
      %v276 = vlaneseq
      %v277 = vshrl.u32 %v276, 7
      %v278 = vsub.s32 0, %v277
      %v279 = vrot.slane %v274, %v278
      %v281 = vadd.f32 %v242, %v279
      %v282 = vadd.f32 %v243, %v279
      %v283 = vadd.f32 %v244, %v279
      %v284 = vadd.f32 %v245, %v279
      %v285 = vadd.f32 %v246, %v279
      %v286 = vadd.f32 %v247, %v279
      %v287 = vadd.f32 %v248, %v279
      %v288 = vadd.f32 %v249, %v279
      %v289 = vadd.f32 %v250, %v279
      %v290 = vadd.f32 %v251, %v279
      %v291 = vadd.f32 %v252, %v279
      %v292 = vadd.f32 %v253, %v279
      %v293 = vadd.f32 %v254, %v279
      %v294 = vadd.f32 %v255, %v279
      %v295 = vadd.f32 %v256, %v279
      %v296 = vadd.f32 %v257, %v279
      %v297 = vadd.f32 %v258, %v279
      %v298 = vadd.f32 %v259, %v279
      %v299 = vadd.f32 %v260, %v279
      %v300 = vadd.f32 %v261, %v279
      %v301 = vadd.f32 %v262, %v279
      %v302 = vadd.f32 %v263, %v279
      %v303 = vadd.f32 %v264, %v279
      %v304 = vadd.f32 %v265, %v279
      %v305 = vadd.f32 %v266, %v279
      %v306 = vadd.f32 %v267, %v279
      %v307 = vadd.f32 %v268, %v279
      %v308 = vadd.f32 %v269, %v279
      %v309 = vadd.f32 %v270, %v279
      %v310 = vadd.f32 %v271, %v279
      %v311 = vadd.f32 %v272, %v279
      %v312 = vadd.f32 %v273, %v279
      %313 = vst [vmem:[%s170] sm:$0xff] %v281
      %314 = vst [vmem:[%s170 + $0x8] sm:$0xff] %v282
      %315 = vst [vmem:[%s170 + $0x10] sm:$0xff] %v283
      %316 = vst [vmem:[%s170 + $0x18] sm:$0xff] %v284
      %317 = vst [vmem:[%s170 + $0x20] sm:$0xff] %v285
      %318 = vst [vmem:[%s170 + $0x28] sm:$0xff] %v286
      %319 = vst [vmem:[%s170 + $0x30] sm:$0xff] %v287
      %320 = vst [vmem:[%s170 + $0x38] sm:$0xff] %v288
      %321 = vst [vmem:[%s170 + $0x40] sm:$0xff] %v289
      %322 = vst [vmem:[%s170 + $0x48] sm:$0xff] %v290
      %323 = vst [vmem:[%s170 + $0x50] sm:$0xff] %v291
      %324 = vst [vmem:[%s170 + $0x58] sm:$0xff] %v292
      %325 = vst [vmem:[%s170 + $0x60] sm:$0xff] %v293
      %326 = vst [vmem:[%s170 + $0x68] sm:$0xff] %v294
      %327 = vst [vmem:[%s170 + $0x70] sm:$0xff] %v295
      %328 = vst [vmem:[%s170 + $0x78] sm:$0xff] %v296
      %329 = vst [vmem:[%s170 + $0x80] sm:$0xff] %v297
      %330 = vst [vmem:[%s170 + $0x88] sm:$0xff] %v298
      %331 = vst [vmem:[%s170 + $0x90] sm:$0xff] %v299
      %332 = vst [vmem:[%s170 + $0x98] sm:$0xff] %v300
      %333 = vst [vmem:[%s170 + $0xa0] sm:$0xff] %v301
      %334 = vst [vmem:[%s170 + $0xa8] sm:$0xff] %v302
      %335 = vst [vmem:[%s170 + $0xb0] sm:$0xff] %v303
      %336 = vst [vmem:[%s170 + $0xb8] sm:$0xff] %v304
      %337 = vst [vmem:[%s170 + $0xc0] sm:$0xff] %v305
      %338 = vst [vmem:[%s170 + $0xc8] sm:$0xff] %v306
      %339 = vst [vmem:[%s170 + $0xd0] sm:$0xff] %v307
      %340 = vst [vmem:[%s170 + $0xd8] sm:$0xff] %v308
      %341 = vst [vmem:[%s170 + $0xe0] sm:$0xff] %v309
      %342 = vst [vmem:[%s170 + $0xe8] sm:$0xff] %v310
      %343 = vst [vmem:[%s170 + $0xf0] sm:$0xff] %v311
      %344 = vst [vmem:[%s170 + $0xf8] sm:$0xff] %v312
      %p345 = scmp.lt.s32.totalorder %s14, 1
      %s346 = scalar_select %p345, %s14, 1
      %s347 = smul.addr %s346, 32
      %s348 = smul.addr %s347, 8
      %s349 = scalar_lea.vmem %s3, %s348
      // Predicated region
      $region33: #{_lambda_.11} parent=31 // pred_check
        %p350 = pneg %p100
      $region34: #{_lambda_.11} parent=31 // pred_check_branch
        %352 = sbr.rel (%p350) target = $region36
      $region35: #{_lambda_.11} parent=31 // pred_region
        _
      $region36: #{_lambda_.11} parent=31 // pred_fallthru
        _
    $region32: #{_lambda_.11} parent=5 // pred_fallthru
      _
    %p353 = scmp.le.s32.totalorder 2, %s9
    // Predicated region
    $region37: #{_lambda_.11} parent=5 // pred_check
      %p354 = pneg %p353
    $region38: #{_lambda_.11} parent=5 // pred_check_branch
      %356 = sbr.rel (%p354) target = $region40
    $region39: #{_lambda_.11} parent=5 // pred_region
      %s357 = ssub.s32 %s9, 2
      // Predicated region
      $region41: #{_lambda_.11} parent=39 // pred_check
        %p358 = pneg %p106
      $region42: #{_lambda_.11} parent=39 // pred_check_branch
        %360 = sbr.rel (%p358) target = $region44
      $region43: #{_lambda_.11} parent=39 // pred_region
        %p361 = scmp.lt.s32.totalorder %s15, 1
        %s362 = scalar_select %p361, %s15, 1
        %s363 = smul.addr %s362, 32
        %s364 = smul.addr %s363, 8
        %s365 = scalar_lea.vmem %s3, %s364
      $region44: #{_lambda_.11} parent=39 // pred_fallthru
        _
    $region40: #{_lambda_.11} parent=5 // pred_fallthru
      _
  $region6: #{_lambda_.11} parent=0 // loop_footer
    %s13 = sadd.s32 1, %s9
  $region7: #{_lambda_.11} parent=0 // loop_footer_branch
    %8 = sbr.rel target = $region3
  $region8: #{_lambda_.11} parent=0 // loop_exit
    _

// kernel: _lambda_.10
$region0: #{_lambda_.10}
  #allocation0 [shape = 'u32[]', space=smem, size = 0x4, offset = 0x4, fixed_abs, tag = 'smem constant byte address 0x4 - core index']
  #allocation1 [shape = 'u32[144,128]{1,0:T(1,128)}', space=vmem, size = 0x12000, scoped, tag = 'internal scratch']
  %s0 = inlined_call_operand.vmem [shape: bf16[2,18,18,8], index: 0, kind: input, shape index: {}]
  %s1 = inlined_call_operand.vmem [shape: bf16[9,8,128], index: 1, kind: input, shape index: {}]
  %s2 = inlined_call_operand.vmem [shape: f32[1,128], index: 2, kind: input, shape index: {}]
  %s3 = inlined_call_operand.vmem [shape: bf16[2,16,16,128], index: 3, kind: output, shape index: {0}]
  %s4 = inlined_call_operand.vmem [shape: f32[2,2,128], index: 4, kind: output, shape index: {1}]
  %5 = xla_tuple %s3, %s4
  %s6 = sld [smem:[#allocation0]]
  $region60: #{_lambda_.10} parent=0
    _
  %s8 = ssub.s32 1, %s6
  %s9 = scalar_select 0, %s8, %s6
  loop: start=0, step=1, limit=4
  $region2: #{_lambda_.10} parent=0 // loop_pre_header
    _
  $region3: #{_lambda_.10} parent=0 // loop_header
    %s11 = sphi 0, %s15
    %p12 = scmp.ge.s32.totalorder %s11, 4
    %s21 = sphi 0, %s23
    %s24 = sphi 0, %s21
    %s25 = sphi 0, %s24
    %s41 = sphi 0, %s25
    %s45 = sphi 0, %s45
    %s47 = sphi 0, %s45
    %s48 = sphi 0, %s47
    %s62 = sphi 0, %s48
    %s66 = sphi 0, %s66
    %s68 = sphi 0, %s66
    %s69 = sphi 0, %s68
    %s83 = sphi 0, %s69
    %s89 = sphi 0, %s91
    %s92 = sphi 0, %s89
    %s93 = sphi 0, %s92
    %s109 = sphi 0, %s93
    %s115 = sphi 0, %s117
    %s118 = sphi 0, %s115
    %s119 = sphi 0, %s118
    %s135 = sphi 0, %s119
  $region4: #{_lambda_.10} parent=0 // loop_header_branch
    %14 = sbr.rel (%p12) target = $region8
  $region5: #{_lambda_.10} parent=0 // loop_body
    %s16 = ssub.s32 %s11, 1
    %s17 = ssub.s32 %s11, 2
    %s18 = sadd.s32 %s11, 1
    %s19 = ssub.s32 %s11, %s18
    %p20 = scmp.eq.s32.totalorder %s19, 0
    %s22 = sadd.s32 %s21, 1
    %s23 = scalar_select %p20, %s21, %s22
    %p26 = pneg %p20
    %p27 = scmp.eq.s32.totalorder %s11, 1
    %p28 = por %p26, %p27
    %p29 = scmp.ne.s32.totalorder %s21, %s24
    %p30 = scmp.eq.s32.totalorder %s11, 0
    %p31 = por %p29, %p30
    %p32 = scmp.ne.s32.totalorder %s21, %s24
    %p33 = scmp.eq.s32.totalorder %s16, 1
    %p34 = por %p32, %p33
    %p35 = scmp.ne.s32.totalorder %s24, %s25
    %p36 = scmp.eq.s32.totalorder %s16, 0
    %p37 = por %p35, %p36
    %p38 = scmp.ne.s32.totalorder %s24, %s25
    %p39 = scmp.eq.s32.totalorder %s17, 1
    %p40 = por %p38, %p39
    %p42 = scmp.ne.s32.totalorder %s25, %s41
    %p43 = scmp.eq.s32.totalorder %s17, 0
    %p44 = por %p42, %p43
    %s46 = sadd.s32 %s45, 1
    %p49 = scmp.eq.s32.totalorder %s11, 1
    %p50 = scmp.ne.s32.totalorder %s45, %s47
    %p51 = scmp.eq.s32.totalorder %s11, 0
    %p52 = por %p50, %p51
    %p53 = scmp.ne.s32.totalorder %s45, %s47
    %p54 = scmp.eq.s32.totalorder %s16, 1
    %p55 = por %p53, %p54
    %p56 = scmp.ne.s32.totalorder %s47, %s48
    %p57 = scmp.eq.s32.totalorder %s16, 0
    %p58 = por %p56, %p57
    %p59 = scmp.ne.s32.totalorder %s47, %s48
    %p60 = scmp.eq.s32.totalorder %s17, 1
    %p61 = por %p59, %p60
    %p63 = scmp.ne.s32.totalorder %s48, %s62
    %p64 = scmp.eq.s32.totalorder %s17, 0
    %p65 = por %p63, %p64
    %s67 = sadd.s32 %s66, 1
    %p70 = scmp.eq.s32.totalorder %s11, 1
    %p71 = scmp.ne.s32.totalorder %s66, %s68
    %p72 = scmp.eq.s32.totalorder %s11, 0
    %p73 = por %p71, %p72
    %p74 = scmp.ne.s32.totalorder %s66, %s68
    %p75 = scmp.eq.s32.totalorder %s16, 1
    %p76 = por %p74, %p75
    %p77 = scmp.ne.s32.totalorder %s68, %s69
    %p78 = scmp.eq.s32.totalorder %s16, 0
    %p79 = por %p77, %p78
    %p80 = scmp.ne.s32.totalorder %s68, %s69
    %p81 = scmp.eq.s32.totalorder %s17, 1
    %p82 = por %p80, %p81
    %p84 = scmp.ne.s32.totalorder %s69, %s83
    %p85 = scmp.eq.s32.totalorder %s17, 0
    %p86 = por %p84, %p85
    %s87 = ssub.s32 %s11, %s18
    %p88 = scmp.eq.s32.totalorder %s87, 0
    %s90 = sadd.s32 %s89, 1
    %s91 = scalar_select %p88, %s89, %s90
    %p94 = pneg %p88
    %p95 = scmp.eq.s32.totalorder %s11, 1
    %p96 = por %p94, %p95
    %p97 = scmp.ne.s32.totalorder %s89, %s92
    %p98 = scmp.eq.s32.totalorder %s11, 0
    %p99 = por %p97, %p98
    %p100 = scmp.ne.s32.totalorder %s89, %s92
    %p101 = scmp.eq.s32.totalorder %s16, 1
    %p102 = por %p100, %p101
    %p103 = scmp.ne.s32.totalorder %s92, %s93
    %p104 = scmp.eq.s32.totalorder %s16, 0
    %p105 = por %p103, %p104
    %p106 = scmp.ne.s32.totalorder %s92, %s93
    %p107 = scmp.eq.s32.totalorder %s17, 1
    %p108 = por %p106, %p107
    %p110 = scmp.ne.s32.totalorder %s93, %s109
    %p111 = scmp.eq.s32.totalorder %s17, 0
    %p112 = por %p110, %p111
    %s113 = ssub.s32 %s11, %s18
    %p114 = scmp.eq.s32.totalorder %s113, 0
    %s116 = sadd.s32 %s115, 1
    %s117 = scalar_select %p114, %s115, %s116
    %p120 = pneg %p114
    %p121 = scmp.eq.s32.totalorder %s11, 1
    %p122 = por %p120, %p121
    %p123 = scmp.ne.s32.totalorder %s115, %s118
    %p124 = scmp.eq.s32.totalorder %s11, 0
    %p125 = por %p123, %p124
    %p126 = scmp.ne.s32.totalorder %s115, %s118
    %p127 = scmp.eq.s32.totalorder %s16, 1
    %p128 = por %p126, %p127
    %p129 = scmp.ne.s32.totalorder %s118, %s119
    %p130 = scmp.eq.s32.totalorder %s16, 0
    %p131 = por %p129, %p130
    %p132 = scmp.ne.s32.totalorder %s118, %s119
    %p133 = scmp.eq.s32.totalorder %s17, 1
    %p134 = por %p132, %p133
    %p136 = scmp.ne.s32.totalorder %s119, %s135
    %p137 = scmp.eq.s32.totalorder %s17, 0
    %p138 = por %p136, %p137
    %p139 = scmp.le.s32.totalorder 1, %s11
    %p140 = scmp.lt.s32.totalorder %s11, 3
    %p141 = pnand %p139, %p140
    %p142 = pneg %p141
    // Predicated region
    $region9: #{_lambda_.10} parent=5 // pred_check
      _
    $region10: #{_lambda_.10} parent=5 // pred_check_branch
      %144 = sbr.rel (%p141) target = $region12
    $region11: #{_lambda_.10} parent=5 // pred_region
      %s145 = ssub.s32 %s11, 1
      // Predicated region
      $region13: #{_lambda_.10} parent=11 // pred_check
        %p146 = pneg %p58
      $region14: #{_lambda_.10} parent=11 // pred_check_branch
        %148 = sbr.rel (%p146) target = $region16
      $region15: #{_lambda_.10} parent=11 // pred_region
        _
      $region16: #{_lambda_.10} parent=11 // pred_fallthru
        _
      // Predicated region
      $region17: #{_lambda_.10} parent=11 // pred_check
        %p149 = pneg %p79
      $region18: #{_lambda_.10} parent=11 // pred_check_branch
        %151 = sbr.rel (%p149) target = $region20
      $region19: #{_lambda_.10} parent=11 // pred_region
        _
      $region20: #{_lambda_.10} parent=11 // pred_fallthru
        _
    $region12: #{_lambda_.10} parent=5 // pred_fallthru
      _
    %p152 = scmp.lt.s32.totalorder %s11, 2
    // Predicated region
    $region21: #{_lambda_.10} parent=5 // pred_check
      %p153 = pneg %p152
    $region22: #{_lambda_.10} parent=5 // pred_check_branch
      %155 = sbr.rel (%p153) target = $region24
    $region23: #{_lambda_.10} parent=5 // pred_region
      // Predicated region
      $region25: #{_lambda_.10} parent=23 // pred_check
        %p156 = pneg %p31
      $region26: #{_lambda_.10} parent=23 // pred_check_branch
        %158 = sbr.rel (%p156) target = $region28
      $region27: #{_lambda_.10} parent=23 // pred_region
        %p159 = scmp.lt.s32.totalorder %s11, 1
        %s160 = scalar_select %p159, %s11, 1
        %s161 = smul.addr %s160, 54
        %s162 = smul.addr %s161, 4
        %s163 = scalar_lea.vmem %s0, %s162
      $region28: #{_lambda_.10} parent=23 // pred_fallthru
        _
    $region24: #{_lambda_.10} parent=5 // pred_fallthru
      _
    %p164 = scmp.le.s32.totalorder 1, %s11
    %p165 = scmp.lt.s32.totalorder %s11, 3
    %p166 = pnand %p164, %p165
    %p167 = pneg %p166
    // Predicated region
    $region29: #{_lambda_.10} parent=5 // pred_check
      _
    $region30: #{_lambda_.10} parent=5 // pred_check_branch
      %169 = sbr.rel (%p166) target = $region32
    $region31: #{_lambda_.10} parent=5 // pred_region
      %s170 = ssub.s32 %s11, 1
      %p171 = scmp.lt.s32.totalorder %s16, 1
      %s172 = scalar_select %p171, %s16, 1
      %s173 = smul.addr %s172, 54
      %s174 = smul.addr %s173, 4
      %s175 = scalar_lea.vmem %s0, %s174
      %p176 = pneg %p37
      %p177 = pneg %p34
      %p178 = pneg %p58
      %p179 = pneg %p55
      %p180 = pneg %p79
      %p181 = pneg %p76
      %p182 = pneg %p105
      %p183 = pneg %p102
      %p184 = scmp.lt.s32.totalorder %s16, 1
      %s185 = scalar_select %p184, %s16, 1
      %s186 = smul.addr %s185, 32
      %s187 = smul.addr %s186, 4
      %s188 = scalar_lea.vmem %s3, %s187
      %p189 = pneg %p131
      %p190 = pneg %p128
      %p191 = scmp.lt.s32.totalorder %s16, 1
      %s192 = scalar_select %p191, %s16, 1
      %s193 = smul.addr %s192, 2
      %s194 = scalar_lea.vmem %s4, %s193
      %p195 = scmp.lt.s32.totalorder %s16, 1
      %s196 = scalar_select %p195, %s16, 1
      %s197 = smul.addr %s196, 54
      %s198 = smul.addr %s197, 4
      %s199 = scalar_lea.vmem %s0, %s198
      %p200 = scmp.lt.s32.totalorder %s16, 1
      %s201 = scalar_select %p200, %s16, 1
      %s202 = smul.addr %s201, 32
      %s203 = smul.addr %s202, 4
      %s204 = scalar_lea.vmem %s3, %s203
      %p205 = scmp.lt.s32.totalorder %s16, 1
      %s206 = scalar_select %p205, %s16, 1
      %s207 = smul.addr %s206, 2
      %s208 = scalar_lea.vmem %s4, %s207
      %210 = vst [vmem:[%s208] sm:$0x3] 0.0
      loop: start=0, step=1, limit=16
      $region33: #{_lambda_.10} parent=31 // loop_pre_header
        _
      $region34: #{_lambda_.10} parent=31 // loop_header
        %s212 = sphi 0, %s216
        %p213 = scmp.ge.s32.totalorder %s212, 16
      $region35: #{_lambda_.10} parent=31 // loop_header_branch
        %215 = sbr.rel (%p213) target = $region39
      $region36: #{_lambda_.10} parent=31 // loop_body
        %s217 = smul.u32 %s212, 3
        %s218 = smul.addr %s217, 4
        %s219 = scalar_lea.vmem %s199, %s218
        %v220 = vld [vmem:[%s219] sm:$0xf]
        %v221 = vld [vmem:[%s219 + $0x4] sm:$0xf]
        %v222 = vld [vmem:[%s219 + $0x8] sm:$0x1]
        %v223 = vld [vmem:[%s1] sm:$0xf]
        %s224 = scalar_lea.vmem %s1, 4
        %v225 = vld [vmem:[%s224] sm:$0xf]
        %v229 = vunpack.c.l.b16 %v220
        %v230 = vunpack.c.l.b16 %v221
        %v231 = vunpack.c.l.b16 %v222
        %v232 = vpack.c.b16 %v230, %v229
        %v233 = vpack.c.b16 %v231, %v231
        %vm234 = vsmask.f32 7424
        %v236 = vshrl.u32 %v232, 16
        %v238 = vshll.u32 %v232, 16
        %v240 = vrot.slane %v238, 1
        %v241 = vor.u32 %v236, %v240
        %v243 = vshll.u32 %v233, 16
        %v245 = vrot.slane %v243, 1
        %v246 = vsel %vm234, %v241, %v245
        %vm247 = vcmask 64512
        %v249 = vsel %vm247, %v246, 0
        %vm251 = vcmask 1043456
        %v253 = vsel %vm251, %v225, 0
        %255 = vmatprep.subr.bf16.mxu0 0
        %256 = vmatpush1.bf16.msra.mxu0 0
        %257 = vmatprep.subr.bf16.mxu0 0
        %258 = vmatpush1.bf16.msra.mxu0 0
        %259 = vmatprep.subr.bf16.mxu0 0
        %260 = vmatpush1.bf16.msra.mxu0 0
        %261 = vmatprep.subr.bf16.mxu0 0
        %262 = vmatpush1.bf16.msra.mxu0 0
        %263 = vmatprep.subr.bf16.mxu0 0
        %264 = vmatpush1.bf16.msra.mxu0 0
        %265 = vmatprep.subr.bf16.mxu0 0
        %266 = vmatpush1.bf16.msra.mxu0 0
        %267 = vmatprep.subr.bf16.mxu0 0
        %268 = vmatpush1.bf16.msra.mxu0 0
        %269 = vmatprep.subr.bf16.mxu0 0
        %270 = vmatpush1.bf16.msra.mxu0 %v253
        %271 = vmatprep.subr.bf16.mxu0 0
        %272 = vmatpush2.bf16.msra.mxu0 0
        %273 = vmatprep.subr.bf16.mxu0 0
        %274 = vmatpush2.bf16.msra.mxu0 0
        %275 = vmatprep.subr.bf16.mxu0 0
        %276 = vmatpush2.bf16.msra.mxu0 0
        %277 = vmatprep.subr.bf16.mxu0 0
        %278 = vmatpush2.bf16.msra.mxu0 0
        %279 = vmatprep.subr.bf16.mxu0 0
        %280 = vmatpush2.bf16.msra.mxu0 0
        %281 = vmatprep.subr.bf16.mxu0 0
        %282 = vmatpush2.bf16.msra.mxu0 0
        %283 = vmatprep.subr.bf16.mxu0 0
        %284 = vmatpush2.bf16.msra.mxu0 0
        %285 = vmatprep.subr.bf16.mxu0 0
        %286 = vmatpush2.bf16.msra.mxu0 0
        %287 = vmatprep.mubr.bf16.mxu0 0
        %288 = vmatmul.mubr.bf16.gmra.mxu0 %v249
        %v289 = vpop.f32.mrf.mxu0
        %v290 = vadd.f32 0.0, %v289
        %v291 = vpop.f32.mrf.mxu0
        %v292 = vpop.f32.mrf.mxu0
        %v293 = vadd.f32 0.0, %v292
        %v294 = vpop.f32.mrf.mxu0
        %295 = vdwg.mxu0
        %v296 = vsel %vm247, %v232, 0
        %v299 = vsel %vm251, %v223, 0
        %301 = vmatprep.subr.bf16.mxu0 0
        %302 = vmatpush1.bf16.msra.mxu0 0
        %303 = vmatprep.subr.bf16.mxu0 0
        %304 = vmatpush1.bf16.msra.mxu0 0
        %305 = vmatprep.subr.bf16.mxu0 0
        %306 = vmatpush1.bf16.msra.mxu0 0
        %307 = vmatprep.subr.bf16.mxu0 0
        %308 = vmatpush1.bf16.msra.mxu0 0
        %309 = vmatprep.subr.bf16.mxu0 0
        %310 = vmatpush1.bf16.msra.mxu0 0
        %311 = vmatprep.subr.bf16.mxu0 0
        %312 = vmatpush1.bf16.msra.mxu0 0
        %313 = vmatprep.subr.bf16.mxu0 0
        %314 = vmatpush1.bf16.msra.mxu0 0
        %315 = vmatprep.subr.bf16.mxu0 0
        %316 = vmatpush1.bf16.msra.mxu0 %v299
        %317 = vmatprep.subr.bf16.mxu0 0
        %318 = vmatpush2.bf16.msra.mxu0 0
        %319 = vmatprep.subr.bf16.mxu0 0
        %320 = vmatpush2.bf16.msra.mxu0 0
        %321 = vmatprep.subr.bf16.mxu0 0
        %322 = vmatpush2.bf16.msra.mxu0 0
        %323 = vmatprep.subr.bf16.mxu0 0
        %324 = vmatpush2.bf16.msra.mxu0 0
        %325 = vmatprep.subr.bf16.mxu0 0
        %326 = vmatpush2.bf16.msra.mxu0 0
        %327 = vmatprep.subr.bf16.mxu0 0
        %328 = vmatpush2.bf16.msra.mxu0 0
        %329 = vmatprep.subr.bf16.mxu0 0
        %330 = vmatpush2.bf16.msra.mxu0 0
        %331 = vmatprep.subr.bf16.mxu0 0
        %332 = vmatpush2.bf16.msra.mxu0 0
        %333 = vmatprep.mubr.bf16.mxu0 0
        %334 = vmatmul.mubr.bf16.gmra.mxu0 %v296
        %v335 = vpop.f32.mrf.mxu0
        %v336 = vadd.f32 %v290, %v335
        %v337 = vpop.f32.mrf.mxu0
        %v338 = vpop.f32.mrf.mxu0
        %v339 = vadd.f32 %v293, %v338
        %v340 = vpop.f32.mrf.mxu0
        %341 = vdwg.mxu0
        %s342 = scalar_lea.vmem %s1, 8
        %v343 = vld [vmem:[%s342] sm:$0xf]
        %vm344 = vcmask 1046528
        %v345 = vrot.slane %v232, 1
        %v346 = vrot.slane %v233, 1
        %v347 = vsel %vm344, %v345, %v346
        %v349 = vsel %vm247, %v347, 0
        %v352 = vsel %vm251, %v343, 0
        %354 = vmatprep.subr.bf16.mxu0 0
        %355 = vmatpush1.bf16.msra.mxu0 0
        %356 = vmatprep.subr.bf16.mxu0 0
        %357 = vmatpush1.bf16.msra.mxu0 0
        %358 = vmatprep.subr.bf16.mxu0 0
        %359 = vmatpush1.bf16.msra.mxu0 0
        %360 = vmatprep.subr.bf16.mxu0 0
        %361 = vmatpush1.bf16.msra.mxu0 0
        %362 = vmatprep.subr.bf16.mxu0 0
        %363 = vmatpush1.bf16.msra.mxu0 0
        %364 = vmatprep.subr.bf16.mxu0 0
        %365 = vmatpush1.bf16.msra.mxu0 0
        %366 = vmatprep.subr.bf16.mxu0 0
        %367 = vmatpush1.bf16.msra.mxu0 0
        %368 = vmatprep.subr.bf16.mxu0 0
        %369 = vmatpush1.bf16.msra.mxu0 %v352
        %370 = vmatprep.subr.bf16.mxu0 0
        %371 = vmatpush2.bf16.msra.mxu0 0
        %372 = vmatprep.subr.bf16.mxu0 0
        %373 = vmatpush2.bf16.msra.mxu0 0
        %374 = vmatprep.subr.bf16.mxu0 0
        %375 = vmatpush2.bf16.msra.mxu0 0
        %376 = vmatprep.subr.bf16.mxu0 0
        %377 = vmatpush2.bf16.msra.mxu0 0
        %378 = vmatprep.subr.bf16.mxu0 0
        %379 = vmatpush2.bf16.msra.mxu0 0
        %380 = vmatprep.subr.bf16.mxu0 0
        %381 = vmatpush2.bf16.msra.mxu0 0
        %382 = vmatprep.subr.bf16.mxu0 0
        %383 = vmatpush2.bf16.msra.mxu0 0
        %384 = vmatprep.subr.bf16.mxu0 0
        %385 = vmatpush2.bf16.msra.mxu0 0
        %386 = vmatprep.mubr.bf16.mxu0 0
        %387 = vmatmul.mubr.bf16.gmra.mxu0 %v349
        %v388 = vpop.f32.mrf.mxu0
        %v389 = vadd.f32 0.0, %v388
        %v390 = vpop.f32.mrf.mxu0
        %v391 = vpop.f32.mrf.mxu0
        %v392 = vadd.f32 0.0, %v391
        %v393 = vpop.f32.mrf.mxu0
        %394 = vdwg.mxu0
        %v395 = vadd.f32 %v336, %v389
        %v396 = vadd.f32 %v339, %v392
        %s397 = sadd.s32 %s212, 1
        %s398 = smul.u32 %s397, 3
        %s399 = smul.addr %s398, 4
        %s400 = scalar_lea.vmem %s199, %s399
        %v401 = vld [vmem:[%s400] sm:$0xf]
        %v402 = vld [vmem:[%s400 + $0x4] sm:$0xf]
        %v403 = vld [vmem:[%s400 + $0x8] sm:$0x1]
        %s404 = scalar_lea.vmem %s1, 12
        %v405 = vld [vmem:[%s404] sm:$0xf]
        %v408 = vunpack.c.l.b16 %v401
        %v409 = vunpack.c.l.b16 %v402
        %v410 = vpack.c.b16 %v409, %v408
        %v412 = vsel %vm247, %v410, 0
        %v415 = vsel %vm251, %v405, 0
        %417 = vmatprep.subr.bf16.mxu0 0
        %418 = vmatpush1.bf16.msra.mxu0 0
        %419 = vmatprep.subr.bf16.mxu0 0
        %420 = vmatpush1.bf16.msra.mxu0 0
        %421 = vmatprep.subr.bf16.mxu0 0
        %422 = vmatpush1.bf16.msra.mxu0 0
        %423 = vmatprep.subr.bf16.mxu0 0
        %424 = vmatpush1.bf16.msra.mxu0 0
        %425 = vmatprep.subr.bf16.mxu0 0
        %426 = vmatpush1.bf16.msra.mxu0 0
        %427 = vmatprep.subr.bf16.mxu0 0
        %428 = vmatpush1.bf16.msra.mxu0 0
        %429 = vmatprep.subr.bf16.mxu0 0
        %430 = vmatpush1.bf16.msra.mxu0 0
        %431 = vmatprep.subr.bf16.mxu0 0
        %432 = vmatpush1.bf16.msra.mxu0 %v415
        %433 = vmatprep.subr.bf16.mxu0 0
        %434 = vmatpush2.bf16.msra.mxu0 0
        %435 = vmatprep.subr.bf16.mxu0 0
        %436 = vmatpush2.bf16.msra.mxu0 0
        %437 = vmatprep.subr.bf16.mxu0 0
        %438 = vmatpush2.bf16.msra.mxu0 0
        %439 = vmatprep.subr.bf16.mxu0 0
        %440 = vmatpush2.bf16.msra.mxu0 0
        %441 = vmatprep.subr.bf16.mxu0 0
        %442 = vmatpush2.bf16.msra.mxu0 0
        %443 = vmatprep.subr.bf16.mxu0 0
        %444 = vmatpush2.bf16.msra.mxu0 0
        %445 = vmatprep.subr.bf16.mxu0 0
        %446 = vmatpush2.bf16.msra.mxu0 0
        %447 = vmatprep.subr.bf16.mxu0 0
        %448 = vmatpush2.bf16.msra.mxu0 0
        %449 = vmatprep.mubr.bf16.mxu0 0
        %450 = vmatmul.mubr.bf16.gmra.mxu0 %v412
        %v451 = vpop.f32.mrf.mxu0
        %v452 = vadd.f32 0.0, %v451
        %v453 = vpop.f32.mrf.mxu0
        %v454 = vpop.f32.mrf.mxu0
        %v455 = vadd.f32 0.0, %v454
        %v456 = vpop.f32.mrf.mxu0
        %457 = vdwg.mxu0
        %v458 = vadd.f32 %v395, %v452
        %v459 = vadd.f32 %v396, %v455
        %s460 = scalar_lea.vmem %s1, 16
        %v461 = vld [vmem:[%s460] sm:$0xf]
        %v463 = vunpack.c.l.b16 %v403
        %v464 = vpack.c.b16 %v463, %v463
        %v465 = vshrl.u32 %v410, 16
        %v467 = vshll.u32 %v410, 16
        %v469 = vrot.slane %v467, 1
        %v470 = vor.u32 %v465, %v469
        %v472 = vshll.u32 %v464, 16
        %v474 = vrot.slane %v472, 1
        %v475 = vsel %vm234, %v470, %v474
        %v477 = vsel %vm247, %v475, 0
        %v480 = vsel %vm251, %v461, 0
        %482 = vmatprep.subr.bf16.mxu0 0
        %483 = vmatpush1.bf16.msra.mxu0 0
        %484 = vmatprep.subr.bf16.mxu0 0
        %485 = vmatpush1.bf16.msra.mxu0 0
        %486 = vmatprep.subr.bf16.mxu0 0
        %487 = vmatpush1.bf16.msra.mxu0 0
        %488 = vmatprep.subr.bf16.mxu0 0
        %489 = vmatpush1.bf16.msra.mxu0 0
        %490 = vmatprep.subr.bf16.mxu0 0
        %491 = vmatpush1.bf16.msra.mxu0 0
        %492 = vmatprep.subr.bf16.mxu0 0
        %493 = vmatpush1.bf16.msra.mxu0 0
        %494 = vmatprep.subr.bf16.mxu0 0
        %495 = vmatpush1.bf16.msra.mxu0 0
        %496 = vmatprep.subr.bf16.mxu0 0
        %497 = vmatpush1.bf16.msra.mxu0 %v480
        %498 = vmatprep.subr.bf16.mxu0 0
        %499 = vmatpush2.bf16.msra.mxu0 0
        %500 = vmatprep.subr.bf16.mxu0 0
        %501 = vmatpush2.bf16.msra.mxu0 0
        %502 = vmatprep.subr.bf16.mxu0 0
        %503 = vmatpush2.bf16.msra.mxu0 0
        %504 = vmatprep.subr.bf16.mxu0 0
        %505 = vmatpush2.bf16.msra.mxu0 0
        %506 = vmatprep.subr.bf16.mxu0 0
        %507 = vmatpush2.bf16.msra.mxu0 0
        %508 = vmatprep.subr.bf16.mxu0 0
        %509 = vmatpush2.bf16.msra.mxu0 0
        %510 = vmatprep.subr.bf16.mxu0 0
        %511 = vmatpush2.bf16.msra.mxu0 0
        %512 = vmatprep.subr.bf16.mxu0 0
        %513 = vmatpush2.bf16.msra.mxu0 0
        %514 = vmatprep.mubr.bf16.mxu0 0
        %515 = vmatmul.mubr.bf16.gmra.mxu0 %v477
        %v516 = vpop.f32.mrf.mxu0
        %v517 = vadd.f32 0.0, %v516
        %v518 = vpop.f32.mrf.mxu0
        %v519 = vpop.f32.mrf.mxu0
        %v520 = vadd.f32 0.0, %v519
        %v521 = vpop.f32.mrf.mxu0
        %522 = vdwg.mxu0
        %v523 = vadd.f32 %v458, %v517
        %v524 = vadd.f32 %v459, %v520
        %s525 = scalar_lea.vmem %s1, 20
        %v526 = vld [vmem:[%s525] sm:$0xf]
        %v527 = vrot.slane %v410, 1
        %v528 = vrot.slane %v464, 1
        %v529 = vsel %vm344, %v527, %v528
        %v531 = vsel %vm247, %v529, 0
        %v534 = vsel %vm251, %v526, 0
        %536 = vmatprep.subr.bf16.mxu0 0
        %537 = vmatpush1.bf16.msra.mxu0 0
        %538 = vmatprep.subr.bf16.mxu0 0
        %539 = vmatpush1.bf16.msra.mxu0 0
        %540 = vmatprep.subr.bf16.mxu0 0
        %541 = vmatpush1.bf16.msra.mxu0 0
        %542 = vmatprep.subr.bf16.mxu0 0
        %543 = vmatpush1.bf16.msra.mxu0 0
        %544 = vmatprep.subr.bf16.mxu0 0
        %545 = vmatpush1.bf16.msra.mxu0 0
        %546 = vmatprep.subr.bf16.mxu0 0
        %547 = vmatpush1.bf16.msra.mxu0 0
        %548 = vmatprep.subr.bf16.mxu0 0
        %549 = vmatpush1.bf16.msra.mxu0 0
        %550 = vmatprep.subr.bf16.mxu0 0
        %551 = vmatpush1.bf16.msra.mxu0 %v534
        %552 = vmatprep.subr.bf16.mxu0 0
        %553 = vmatpush2.bf16.msra.mxu0 0
        %554 = vmatprep.subr.bf16.mxu0 0
        %555 = vmatpush2.bf16.msra.mxu0 0
        %556 = vmatprep.subr.bf16.mxu0 0
        %557 = vmatpush2.bf16.msra.mxu0 0
        %558 = vmatprep.subr.bf16.mxu0 0
        %559 = vmatpush2.bf16.msra.mxu0 0
        %560 = vmatprep.subr.bf16.mxu0 0
        %561 = vmatpush2.bf16.msra.mxu0 0
        %562 = vmatprep.subr.bf16.mxu0 0
        %563 = vmatpush2.bf16.msra.mxu0 0
        %564 = vmatprep.subr.bf16.mxu0 0
        %565 = vmatpush2.bf16.msra.mxu0 0
        %566 = vmatprep.subr.bf16.mxu0 0
        %567 = vmatpush2.bf16.msra.mxu0 0
        %568 = vmatprep.mubr.bf16.mxu0 0
        %569 = vmatmul.mubr.bf16.gmra.mxu0 %v531
        %v570 = vpop.f32.mrf.mxu0
        %v571 = vadd.f32 0.0, %v570
        %v572 = vpop.f32.mrf.mxu0
        %v573 = vpop.f32.mrf.mxu0
        %v574 = vadd.f32 0.0, %v573
        %v575 = vpop.f32.mrf.mxu0
        %576 = vdwg.mxu0
        %v577 = vadd.f32 %v523, %v571
        %v578 = vadd.f32 %v524, %v574
        %s579 = sadd.s32 %s212, 2
        %s580 = smul.u32 %s579, 3
        %s581 = smul.addr %s580, 4
        %s582 = scalar_lea.vmem %s199, %s581
        %v583 = vld [vmem:[%s582] sm:$0xf]
        %v584 = vld [vmem:[%s582 + $0x4] sm:$0xf]
        %v585 = vld [vmem:[%s582 + $0x8] sm:$0x1]
        %s586 = scalar_lea.vmem %s1, 24
        %v587 = vld [vmem:[%s586] sm:$0xf]
        %v590 = vunpack.c.l.b16 %v583
        %v591 = vunpack.c.l.b16 %v584
        %v592 = vpack.c.b16 %v591, %v590
        %v594 = vsel %vm247, %v592, 0
        %v597 = vsel %vm251, %v587, 0
        %599 = vmatprep.subr.bf16.mxu0 0
        %600 = vmatpush1.bf16.msra.mxu0 0
        %601 = vmatprep.subr.bf16.mxu0 0
        %602 = vmatpush1.bf16.msra.mxu0 0
        %603 = vmatprep.subr.bf16.mxu0 0
        %604 = vmatpush1.bf16.msra.mxu0 0
        %605 = vmatprep.subr.bf16.mxu0 0
        %606 = vmatpush1.bf16.msra.mxu0 0
        %607 = vmatprep.subr.bf16.mxu0 0
        %608 = vmatpush1.bf16.msra.mxu0 0
        %609 = vmatprep.subr.bf16.mxu0 0
        %610 = vmatpush1.bf16.msra.mxu0 0
        %611 = vmatprep.subr.bf16.mxu0 0
        %612 = vmatpush1.bf16.msra.mxu0 0
        %613 = vmatprep.subr.bf16.mxu0 0
        %614 = vmatpush1.bf16.msra.mxu0 %v597
        %615 = vmatprep.subr.bf16.mxu0 0
        %616 = vmatpush2.bf16.msra.mxu0 0
        %617 = vmatprep.subr.bf16.mxu0 0
        %618 = vmatpush2.bf16.msra.mxu0 0
        %619 = vmatprep.subr.bf16.mxu0 0
        %620 = vmatpush2.bf16.msra.mxu0 0
        %621 = vmatprep.subr.bf16.mxu0 0
        %622 = vmatpush2.bf16.msra.mxu0 0
        %623 = vmatprep.subr.bf16.mxu0 0
        %624 = vmatpush2.bf16.msra.mxu0 0
        %625 = vmatprep.subr.bf16.mxu0 0
        %626 = vmatpush2.bf16.msra.mxu0 0
        %627 = vmatprep.subr.bf16.mxu0 0
        %628 = vmatpush2.bf16.msra.mxu0 0
        %629 = vmatprep.subr.bf16.mxu0 0
        %630 = vmatpush2.bf16.msra.mxu0 0
        %631 = vmatprep.mubr.bf16.mxu0 0
        %632 = vmatmul.mubr.bf16.gmra.mxu0 %v594
        %v633 = vpop.f32.mrf.mxu0
        %v634 = vadd.f32 0.0, %v633
        %v635 = vpop.f32.mrf.mxu0
        %v636 = vpop.f32.mrf.mxu0
        %v637 = vadd.f32 0.0, %v636
        %v638 = vpop.f32.mrf.mxu0
        %639 = vdwg.mxu0
        %v640 = vadd.f32 %v577, %v634
        %v641 = vadd.f32 %v578, %v637
        %s642 = scalar_lea.vmem %s1, 28
        %v643 = vld [vmem:[%s642] sm:$0xf]
        %v645 = vunpack.c.l.b16 %v585
        %v646 = vpack.c.b16 %v645, %v645
        %v647 = vshrl.u32 %v592, 16
        %v649 = vshll.u32 %v592, 16
        %v651 = vrot.slane %v649, 1
        %v652 = vor.u32 %v647, %v651
        %v654 = vshll.u32 %v646, 16
        %v656 = vrot.slane %v654, 1
        %v657 = vsel %vm234, %v652, %v656
        %v659 = vsel %vm247, %v657, 0
        %v662 = vsel %vm251, %v643, 0
        %664 = vmatprep.subr.bf16.mxu0 0
        %665 = vmatpush1.bf16.msra.mxu0 0
        %666 = vmatprep.subr.bf16.mxu0 0
        %667 = vmatpush1.bf16.msra.mxu0 0
        %668 = vmatprep.subr.bf16.mxu0 0
        %669 = vmatpush1.bf16.msra.mxu0 0
        %670 = vmatprep.subr.bf16.mxu0 0
        %671 = vmatpush1.bf16.msra.mxu0 0
        %672 = vmatprep.subr.bf16.mxu0 0
        %673 = vmatpush1.bf16.msra.mxu0 0
        %674 = vmatprep.subr.bf16.mxu0 0
        %675 = vmatpush1.bf16.msra.mxu0 0
        %676 = vmatprep.subr.bf16.mxu0 0
        %677 = vmatpush1.bf16.msra.mxu0 0
        %678 = vmatprep.subr.bf16.mxu0 0
        %679 = vmatpush1.bf16.msra.mxu0 %v662
        %680 = vmatprep.subr.bf16.mxu0 0
        %681 = vmatpush2.bf16.msra.mxu0 0
        %682 = vmatprep.subr.bf16.mxu0 0
        %683 = vmatpush2.bf16.msra.mxu0 0
        %684 = vmatprep.subr.bf16.mxu0 0
        %685 = vmatpush2.bf16.msra.mxu0 0
        %686 = vmatprep.subr.bf16.mxu0 0
        %687 = vmatpush2.bf16.msra.mxu0 0
        %688 = vmatprep.subr.bf16.mxu0 0
        %689 = vmatpush2.bf16.msra.mxu0 0
        %690 = vmatprep.subr.bf16.mxu0 0
        %691 = vmatpush2.bf16.msra.mxu0 0
        %692 = vmatprep.subr.bf16.mxu0 0
        %693 = vmatpush2.bf16.msra.mxu0 0
        %694 = vmatprep.subr.bf16.mxu0 0
        %695 = vmatpush2.bf16.msra.mxu0 0
        %696 = vmatprep.mubr.bf16.mxu0 0
        %697 = vmatmul.mubr.bf16.gmra.mxu0 %v659
        %v698 = vpop.f32.mrf.mxu0
        %v699 = vadd.f32 0.0, %v698
        %v700 = vpop.f32.mrf.mxu0
        %v701 = vpop.f32.mrf.mxu0
        %v702 = vadd.f32 0.0, %v701
        %v703 = vpop.f32.mrf.mxu0
        %704 = vdwg.mxu0
        %v705 = vadd.f32 %v640, %v699
        %v706 = vadd.f32 %v641, %v702
        %s707 = scalar_lea.vmem %s1, 32
        %v708 = vld [vmem:[%s707] sm:$0xf]
        %v709 = vrot.slane %v592, 1
        %v710 = vrot.slane %v646, 1
        %v711 = vsel %vm344, %v709, %v710
        %v713 = vsel %vm247, %v711, 0
        %v716 = vsel %vm251, %v708, 0
        %718 = vmatprep.subr.bf16.mxu0 0
        %719 = vmatpush1.bf16.msra.mxu0 0
        %720 = vmatprep.subr.bf16.mxu0 0
        %721 = vmatpush1.bf16.msra.mxu0 0
        %722 = vmatprep.subr.bf16.mxu0 0
        %723 = vmatpush1.bf16.msra.mxu0 0
        %724 = vmatprep.subr.bf16.mxu0 0
        %725 = vmatpush1.bf16.msra.mxu0 0
        %726 = vmatprep.subr.bf16.mxu0 0
        %727 = vmatpush1.bf16.msra.mxu0 0
        %728 = vmatprep.subr.bf16.mxu0 0
        %729 = vmatpush1.bf16.msra.mxu0 0
        %730 = vmatprep.subr.bf16.mxu0 0
        %731 = vmatpush1.bf16.msra.mxu0 0
        %732 = vmatprep.subr.bf16.mxu0 0
        %733 = vmatpush1.bf16.msra.mxu0 %v716
        %734 = vmatprep.subr.bf16.mxu0 0
        %735 = vmatpush2.bf16.msra.mxu0 0
        %736 = vmatprep.subr.bf16.mxu0 0
        %737 = vmatpush2.bf16.msra.mxu0 0
        %738 = vmatprep.subr.bf16.mxu0 0
        %739 = vmatpush2.bf16.msra.mxu0 0
        %740 = vmatprep.subr.bf16.mxu0 0
        %741 = vmatpush2.bf16.msra.mxu0 0
        %742 = vmatprep.subr.bf16.mxu0 0
        %743 = vmatpush2.bf16.msra.mxu0 0
        %744 = vmatprep.subr.bf16.mxu0 0
        %745 = vmatpush2.bf16.msra.mxu0 0
        %746 = vmatprep.subr.bf16.mxu0 0
        %747 = vmatpush2.bf16.msra.mxu0 0
        %748 = vmatprep.subr.bf16.mxu0 0
        %749 = vmatpush2.bf16.msra.mxu0 0
        %750 = vmatprep.mubr.bf16.mxu0 0
        %751 = vmatmul.mubr.bf16.gmra.mxu0 %v713
        %v752 = vpop.f32.mrf.mxu0
        %v753 = vadd.f32 0.0, %v752
        %v754 = vpop.f32.mrf.mxu0
        %v755 = vpop.f32.mrf.mxu0
        %v756 = vadd.f32 0.0, %v755
        %v757 = vpop.f32.mrf.mxu0
        %758 = vdwg.mxu0
        %v759 = vadd.f32 %v705, %v753
        %v760 = vadd.f32 %v706, %v756
        %v761 = vld [vmem:[%s2] sm:$0x1]
        %v763 = vlaneseq
        %v764 = vshrl.u32 %v763, 7
        %v765 = vsub.s32 0, %v764
        %v766 = vrot.slane %v761, %v765
        %v768 = vadd.f32 %v759, %v766
        %v769 = vadd.f32 %v760, %v766
        %v770 = vmax.f32 %v768, 0.0
        %v771 = vmax.f32 %v769, 0.0
        %v772 = vld [vmem:[%s208] sm:$0x1]
        %v773 = vadd.f32 %v770, %v771
        %v774 = vrot.slane %v773, 4
        %v775 = vadd.f32 %v773, %v774
        %v776 = vrot.slane %v775, 2
        %v777 = vadd.f32 %v775, %v776
        %v778 = vrot.slane %v777, 1
        %v779 = vadd.f32 %v777, %v778
        %v780 = vadd.f32 %v772, %v779
        %781 = vst [vmem:[%s208] sm:$0x1] %v780
        %v782 = vld [vmem:[%s208 + $0x1] sm:$0x1]
        %v783 = vmul.f32 %v770, %v770
        %v784 = vmul.f32 %v771, %v771
        %v785 = vadd.f32 %v783, %v784
        %v786 = vrot.slane %v785, 4
        %v787 = vadd.f32 %v785, %v786
        %v788 = vrot.slane %v787, 2
        %v789 = vadd.f32 %v787, %v788
        %v790 = vrot.slane %v789, 1
        %v791 = vadd.f32 %v789, %v790
        %v792 = vadd.f32 %v782, %v791
        %793 = vst [vmem:[%s208 + $0x1] sm:$0x1] %v792
        %v794 = vpack.c.bf16 %v771, %v770
        %v796 = vunpack.c.l.b16 %v794
        %v797 = vunpack.c.h.b16 %v794
        %v798 = vpack.c.b16 %v796, %v796
        %v799 = vpack.c.b16 %v797, %v797
        %s802 = smul.u32 %s212, 2
        %s803 = smul.addr %s802, 4
        %s804 = scalar_lea.vmem %s204, %s803
        %805 = vst [vmem:[%s804] sm:$0xf] %v798
        %806 = vst [vmem:[%s804 + $0x4] sm:$0xf] %v799
      $region37: #{_lambda_.10} parent=31 // loop_footer
        %s216 = sadd.s32 1, %s212
      $region38: #{_lambda_.10} parent=31 // loop_footer_branch
        %211 = sbr.rel target = $region34
      $region39: #{_lambda_.10} parent=31 // loop_exit
        _
      %p807 = scmp.lt.s32.totalorder %s16, 1
      %s808 = scalar_select %p807, %s16, 1
      %s809 = smul.addr %s808, 32
      %s810 = smul.addr %s809, 4
      %s811 = scalar_lea.vmem %s3, %s810
      %p812 = scmp.lt.s32.totalorder %s16, 1
      %s813 = scalar_select %p812, %s16, 1
      %s814 = smul.addr %s813, 2
      %s815 = scalar_lea.vmem %s4, %s814
      // Predicated region
      $region40: #{_lambda_.10} parent=31 // pred_check
        %p816 = pneg %p102
      $region41: #{_lambda_.10} parent=31 // pred_check_branch
        %818 = sbr.rel (%p816) target = $region43
      $region42: #{_lambda_.10} parent=31 // pred_region
        _
      $region43: #{_lambda_.10} parent=31 // pred_fallthru
        _
      // Predicated region
      $region44: #{_lambda_.10} parent=31 // pred_check
        %p819 = pneg %p128
      $region45: #{_lambda_.10} parent=31 // pred_check_branch
        %821 = sbr.rel (%p819) target = $region47
      $region46: #{_lambda_.10} parent=31 // pred_region
        _
      $region47: #{_lambda_.10} parent=31 // pred_fallthru
        _
    $region32: #{_lambda_.10} parent=5 // pred_fallthru
      _
    %p822 = scmp.le.s32.totalorder 2, %s11
    // Predicated region
    $region48: #{_lambda_.10} parent=5 // pred_check
      %p823 = pneg %p822
    $region49: #{_lambda_.10} parent=5 // pred_check_branch
      %825 = sbr.rel (%p823) target = $region51
    $region50: #{_lambda_.10} parent=5 // pred_region
      %s826 = ssub.s32 %s11, 2
      // Predicated region
      $region52: #{_lambda_.10} parent=50 // pred_check
        %p827 = pneg %p108
      $region53: #{_lambda_.10} parent=50 // pred_check_branch
        %829 = sbr.rel (%p827) target = $region55
      $region54: #{_lambda_.10} parent=50 // pred_region
        %p830 = scmp.lt.s32.totalorder %s17, 1
        %s831 = scalar_select %p830, %s17, 1
        %s832 = smul.addr %s831, 32
        %s833 = smul.addr %s832, 4
        %s834 = scalar_lea.vmem %s3, %s833
      $region55: #{_lambda_.10} parent=50 // pred_fallthru
        _
      // Predicated region
      $region56: #{_lambda_.10} parent=50 // pred_check
        %p835 = pneg %p134
      $region57: #{_lambda_.10} parent=50 // pred_check_branch
        %837 = sbr.rel (%p835) target = $region59
      $region58: #{_lambda_.10} parent=50 // pred_region
        %p838 = scmp.lt.s32.totalorder %s17, 1
        %s839 = scalar_select %p838, %s17, 1
        %s840 = smul.addr %s839, 2
        %s841 = scalar_lea.vmem %s4, %s840
      $region59: #{_lambda_.10} parent=50 // pred_fallthru
        _
    $region51: #{_lambda_.10} parent=5 // pred_fallthru
      _
  $region6: #{_lambda_.10} parent=0 // loop_footer
    %s15 = sadd.s32 1, %s11
  $region7: #{_lambda_.10} parent=0 // loop_footer_branch
    %10 = sbr.rel target = $region3
  $region8: #{_lambda_.10} parent=0 // loop_exit
    _

</llo_original>
